<compile_context>
chip_gen: v6e
topology: v6e:2x2x1
jax: 0.10.0
libtpu: 0.0.40
codegen_flags: <defaults>
</compile_context>

<pallas_src>
from functools import partial

import jax
import jax.numpy as jnp
from jax.experimental import pallas as pl
from jax.experimental.pallas import tpu as pltpu


def _round_up(x, m):
    return ((x + m - 1) // m) * m


# ----------------------------------------------------------------------------
# Fused Inception kernel (one grid step = one image).
# ----------------------------------------------------------------------------
def _inception_kernel(x_ref, wr_ref, br_ref, w3_ref, b3_ref, wp_ref, bp_ref,
                      o_ref, red_pad, pool_pad):
    # x_ref:    (1, H, W, Cin)                     f32
    # wr_ref:   (Cin, ch1_pad + rt_pad)            bf16  fused pointwise weights
    # br_ref:   (1, ch1_pad + rt_pad)              f32
    # w3_ref:   (3, 3*rt_pad, ch3 + ch5)           bf16  per-dy K-concat 3x3 weights
    # b3_ref:   (1, ch3 + ch5)                     f32
    # wp_ref:   (Cin, pool_proj)                   bf16
    # bp_ref:   (1, pool_proj)                     f32
    # o_ref:    (1, H*W, cout)                     f32
    # red_pad:  (H+2, W+2, rt_pad)                 bf16  scratch (zero halo ring)
    # pool_pad: (H+2, W+2, Cin)                    f32   scratch (-inf halo ring)
    _, H, W, Cin = x_ref.shape
    HW = H * W
    rt_pad = red_pad.shape[2]                 # padded r2 + r3 (multiple of 128)
    ch1_pad = wr_ref.shape[1] - rt_pad        # padded ch1x1 (multiple of 128)
    c33 = w3_ref.shape[2]                     # ch3 + ch5
    cpool = wp_ref.shape[1]
    cout = o_ref.shape[2]
    ch1 = cout - c33 - cpool                  # true branch1 width

    x3 = x_ref[0]                             # (H, W, Cin) f32
    xf = x3.reshape(HW, Cin).astype(jnp.bfloat16)

    # ---- fused pointwise stage: branch1 1x1 + branch2/3 reduce 1x1 --------
    red = jnp.dot(xf, wr_ref[...], preferred_element_type=jnp.float32)
    red = jnp.maximum(red + br_ref[...], 0.0)     # (HW, ch1_pad + rt_pad) f32

    y1 = red[:, :ch1]                             # branch1 output (lane offset 0)

    # ---- zero halo ring (every step), bf16 interior written once ----------
    zrow = jnp.zeros((1, W + 2, rt_pad), red_pad.dtype)
    zcol = jnp.zeros((H + 2, 1, rt_pad), red_pad.dtype)
    red_pad[0:1, :, :] = zrow
    red_pad[H + 1:H + 2, :, :] = zrow
    red_pad[:, 0:1, :] = zcol
    red_pad[:, W + 1:W + 2, :] = zcol
    red_pad[1:H + 1, 1:W + 1, :] = (
        red[:, ch1_pad:].astype(red_pad.dtype).reshape(H, W, rt_pad))

    # ---- fused 3x3 convs (branches 2 & 3): 3 dots, K = 3 * rt_pad ---------
    acc = None
    for dy in range(3):
        tap = jnp.concatenate(
            [red_pad[dy:dy + H, dx:dx + W, :].reshape(HW, rt_pad)
             for dx in range(3)], axis=1)                 # (HW, 3*rt_pad) bf16
        part = jnp.dot(tap, w3_ref[dy], preferred_element_type=jnp.float32)
        acc = part if acc is None else acc + part
    y23 = jnp.maximum(acc + b3_ref[...], 0.0)             # (HW, ch3 + ch5)

    # ---- branch4: separable 3x3 maxpool (-inf ring) + 1x1 projection ------
    ninf_row = jnp.full((1, W + 2, Cin), -jnp.inf, pool_pad.dtype)
    ninf_col = jnp.full((H + 2, 1, Cin), -jnp.inf, pool_pad.dtype)
    pool_pad[0:1, :, :] = ninf_row
    pool_pad[H + 1:H + 2, :, :] = ninf_row
    pool_pad[:, 0:1, :] = ninf_col
    pool_pad[:, W + 1:W + 2, :] = ninf_col
    pool_pad[1:H + 1, 1:W + 1, :] = x3

    rm = jnp.maximum(jnp.maximum(pool_pad[0:H, :, :], pool_pad[1:H + 1, :, :]),
                     pool_pad[2:H + 2, :, :])             # (H, W+2, Cin)
    m = jnp.maximum(jnp.maximum(rm[:, 0:W, :], rm[:, 1:W + 1, :]),
                    rm[:, 2:W + 2, :])                    # (H, W, Cin)

    y4 = jnp.dot(m.reshape(HW, Cin).astype(jnp.bfloat16), wp_ref[...],
                 preferred_element_type=jnp.float32)
    y4 = jnp.maximum(y4 + bp_ref[...], 0.0)               # (HW, pool_proj)

    # ---- single lane-dense concatenated output store ----------------------
    out = jnp.concatenate([y1, y23, y4], axis=-1)         # (HW, cout) f32
    o_ref[0, :, :] = out.astype(o_ref.dtype)


# ----------------------------------------------------------------------------
# Parameter init (per-branch, like the PyTorch module) and packing (fused).
# ----------------------------------------------------------------------------
def init_inception_params(key, input_channel, ch1x1, ch3x3_reduce, ch3x3,
                          ch5x5_reduce, ch5x5, pool_proj):
    ks = jax.random.split(key, 12)
    s = 0.1
    return {
        "b1_w": jax.random.normal(ks[0], (input_channel, ch1x1), jnp.float32) * s,
        "b1_b": jax.random.normal(ks[1], (ch1x1,), jnp.float32) * s,
        "b2_w1": jax.random.normal(ks[2], (input_channel, ch3x3_reduce), jnp.float32) * s,
        "b2_b1": jax.random.normal(ks[3], (ch3x3_reduce,), jnp.float32) * s,
        "b2_w2": jax.random.normal(ks[4], (9, ch3x3_reduce, ch3x3), jnp.float32) * s,
        "b2_b2": jax.random.normal(ks[5], (ch3x3,), jnp.float32) * s,
        "b3_w1": jax.random.normal(ks[6], (input_channel, ch5x5_reduce), jnp.float32) * s,
        "b3_b1": jax.random.normal(ks[7], (ch5x5_reduce,), jnp.float32) * s,
        "b3_w2": jax.random.normal(ks[8], (9, ch5x5_reduce, ch5x5), jnp.float32) * s,
        "b3_b2": jax.random.normal(ks[9], (ch5x5,), jnp.float32) * s,
        "b4_w": jax.random.normal(ks[10], (input_channel, pool_proj), jnp.float32) * s,
        "b4_b": jax.random.normal(ks[11], (pool_proj,), jnp.float32) * s,
    }


def pack_inception_params(p, lane=128):
    """Fuse + 128-lane-align per-branch weights into the kernel layout."""
    cin, ch1 = p["b1_w"].shape
    r2 = p["b2_w1"].shape[1]
    r3 = p["b3_w1"].shape[1]
    ch3 = p["b2_w2"].shape[2]
    ch5 = p["b3_w2"].shape[2]
    rt = r2 + r3
    ch1_pad = _round_up(ch1, lane)
    rt_pad = _round_up(rt, lane)

    # Pointwise stage: [branch1 | pad | b2-reduce | b3-reduce | pad] (lane aligned).
    wr = jnp.zeros((cin, ch1_pad + rt_pad), jnp.float32)
    wr = wr.at[:, :ch1].set(p["b1_w"])
    wr = wr.at[:, ch1_pad:ch1_pad + r2].set(p["b2_w1"])
    wr = wr.at[:, ch1_pad + r2:ch1_pad + rt].set(p["b3_w1"])
    br = jnp.zeros((1, ch1_pad + rt_pad), jnp.float32)
    br = br.at[0, :ch1].set(p["b1_b"])
    br = br.at[0, ch1_pad:ch1_pad + r2].set(p["b2_b1"])
    br = br.at[0, ch1_pad + r2:ch1_pad + rt].set(p["b3_b1"])

    # 3x3 stage: per-dy K-concat of the three dx taps, block-diagonal across
    # the two 3x3 convs; padded K rows are zero (padded red columns are zero
    # too, so they contribute exactly 0).
    w2 = p["b2_w2"].reshape(3, 3, r2, ch3)
    w5 = p["b3_w2"].reshape(3, 3, r3, ch5)
    w3 = jnp.zeros((3, 3 * rt_pad, ch3 + ch5), jnp.float32)
    for dy in range(3):
        for dx in range(3):
            base = dx * rt_pad
            w3 = w3.at[dy, base:base + r2, :ch3].set(w2[dy, dx])
            w3 = w3.at[dy, base + r2:base + rt, ch3:].set(w5[dy, dx])
    b3 = jnp.concatenate([p["b2_b2"], p["b3_b2"]])[None, :]

    return {
        "wr": wr.astype(jnp.bfloat16),
        "br": br.astype(jnp.float32),
        "w3": w3.astype(jnp.bfloat16),
        "b3": b3.astype(jnp.float32),
        "wp": p["b4_w"].astype(jnp.bfloat16),
        "bp": p["b4_b"][None, :].astype(jnp.float32),
    }


# ----------------------------------------------------------------------------
# Forward: NCHW -> NHWC -> single fused pallas_call -> NCHW.
# ----------------------------------------------------------------------------
@partial(jax.jit, static_argnames=("ch1",))
def inception_v1_forward(x_nchw, packed, *, ch1):
    x = jnp.transpose(x_nchw, (0, 2, 3, 1))           # NCHW -> NHWC
    N, H, W, Cin = x.shape
    wr, br = packed["wr"], packed["br"]
    w3, b3 = packed["w3"], packed["b3"]
    wp, bp = packed["wp"], packed["bp"]
    cr = wr.shape[1]
    rt_pad = w3.shape[1] // 3
    c33 = w3.shape[2]
    cpool = wp.shape[1]
    cout = ch1 + c33 + cpool
    HW = H * W

    out = pl.pallas_call(
        _inception_kernel,
        out_shape=jax.ShapeDtypeStruct((N, HW, cout), jnp.float32),
        grid=(N,),
        in_specs=[
            pl.BlockSpec((1, H, W, Cin), lambda n: (n, 0, 0, 0)),
            pl.BlockSpec((Cin, cr), lambda n: (0, 0)),
            pl.BlockSpec((1, cr), lambda n: (0, 0)),
            pl.BlockSpec((3, 3 * rt_pad, c33), lambda n: (0, 0, 0)),
            pl.BlockSpec((1, c33), lambda n: (0, 0)),
            pl.BlockSpec((Cin, cpool), lambda n: (0, 0)),
            pl.BlockSpec((1, cpool), lambda n: (0, 0)),
        ],
        out_specs=pl.BlockSpec((1, HW, cout), lambda n: (n, 0, 0)),
        scratch_shapes=[
            pltpu.VMEM((H + 2, W + 2, rt_pad), jnp.bfloat16),
            pltpu.VMEM((H + 2, W + 2, Cin), jnp.float32),
        ],
        compiler_params=pltpu.CompilerParams(
            dimension_semantics=("parallel",),
            vmem_limit_bytes=64 * 1024 * 1024),
    )(x, wr, br, w3, b3, wp, bp)

    out = out.reshape(N, H, W, cout)
    return jnp.transpose(out, (0, 3, 1, 2))           # NHWC -> NCHW


# ----------------------------------------------------------------------------
# Pure-JAX reference (mirrors the kernel's bf16-operand / f32-accum math).
# ----------------------------------------------------------------------------
def _ref_conv(x, w_hwio, b, pad):
    y = jax.lax.conv_general_dilated(
        x.astype(jnp.bfloat16), w_hwio.astype(jnp.bfloat16), (1, 1),
        [(pad, pad), (pad, pad)],
        dimension_numbers=("NHWC", "HWIO", "NHWC"),
        preferred_element_type=jnp.float32)
    return jax.nn.relu(y + b)


def inception_v1_reference(x_nchw, params):
    x = jnp.transpose(x_nchw, (0, 2, 3, 1))

    def w1x1(w):
        return w.reshape(1, 1, *w.shape)

    def w3x3(w):
        return w.reshape(3, 3, w.shape[1], w.shape[2])

    b1 = _ref_conv(x, w1x1(params["b1_w"]), params["b1_b"], 0)
    b2 = _ref_conv(x, w1x1(params["b2_w1"]), params["b2_b1"], 0)
    b2 = _ref_conv(b2, w3x3(params["b2_w2"]), params["b2_b2"], 1)
    b3 = _ref_conv(x, w1x1(params["b3_w1"]), params["b3_b1"], 0)
    b3 = _ref_conv(b3, w3x3(params["b3_w2"]), params["b3_b2"], 1)
    b4 = jax.lax.reduce_window(
        x, -jnp.inf, jax.lax.max, (1, 3, 3, 1), (1, 1, 1, 1),
        [(0, 0), (1, 1), (1, 1), (0, 0)])
    b4 = _ref_conv(b4, w1x1(params["b4_w"]), params["b4_b"], 0)
    out = jnp.concatenate([b1, b2, b3, b4], axis=-1)
    return jnp.transpose(out, (0, 3, 1, 2))


if __name__ == "__main__":
    # Inception_v1(input_channel=4, ch1x1=8, ch3x3_reduce=4, ch3x3=8,
    #              ch5x5_reduce=4, ch5x5=8, pool_proj=8)
    N, C, H, W = 2, 4, 16, 16
    key = jax.random.PRNGKey(0)
    kx, kp = jax.random.split(key)
    x = jax.random.normal(kx, (N, C, H, W), jnp.float32)
    params = init_inception_params(kp, C, 8, 4, 8, 4, 8, 8)
    packed = pack_inception_params(params)
    ch1 = params["b1_w"].shape[1]

    out = inception_v1_forward(x, packed, ch1=ch1)
    out = jax.block_until_ready(out)

    ref = inception_v1_reference(x, params)
    assert out.shape == (N, 8 + 8 + 8 + 8, H, W), out.shape
    assert jnp.allclose(out, ref, atol=2e-2, rtol=2e-2), "mismatch vs reference"

    print("KERNEL_OK")
</pallas_src>

<mosaic_0001>
module attributes {stable_mosaic.version = 11 : i64} {
  func.func @_inception_kernel(%arg0: i32, %arg1: memref<1x16x16x4xf32, #tpu.memory_space<vmem>>, %arg2: memref<4x256xbf16, #tpu.memory_space<vmem>>, %arg3: memref<1x256xf32, #tpu.memory_space<vmem>>, %arg4: memref<3x384x16xbf16, #tpu.memory_space<vmem>>, %arg5: memref<1x16xf32, #tpu.memory_space<vmem>>, %arg6: memref<4x8xbf16, #tpu.memory_space<vmem>>, %arg7: memref<1x8xf32, #tpu.memory_space<vmem>>, %arg8: memref<1x256x32xf32, #tpu.memory_space<vmem>>, %arg9: memref<18x18x128xbf16, #tpu.memory_space<vmem>>, %arg10: memref<18x18x4xf32, #tpu.memory_space<vmem>>) attributes {dimension_semantics = [#tpu.dimension_semantics<parallel>], iteration_bounds = array<i64: 2>, scalar_prefetch = 0 : i64, scratch_operands = 2 : i64, tpu.core_type = #tpu.core_type<tc>, window_params = [{transform_indices = @transform_0, window_bounds = array<i64: 1, 16, 16, 4>}, {pipeline_mode = #tpu.pipeline_mode<synchronous>, transform_indices = @transform_1, window_bounds = array<i64: 4, 256>}, {pipeline_mode = #tpu.pipeline_mode<synchronous>, transform_indices = @transform_2, window_bounds = array<i64: 1, 256>}, {pipeline_mode = #tpu.pipeline_mode<synchronous>, transform_indices = @transform_3, window_bounds = array<i64: 3, 384, 16>}, {pipeline_mode = #tpu.pipeline_mode<synchronous>, transform_indices = @transform_4, window_bounds = array<i64: 1, 16>}, {pipeline_mode = #tpu.pipeline_mode<synchronous>, transform_indices = @transform_5, window_bounds = array<i64: 4, 8>}, {pipeline_mode = #tpu.pipeline_mode<synchronous>, transform_indices = @transform_6, window_bounds = array<i64: 1, 8>}, {transform_indices = @transform_7, window_bounds = array<i64: 1, 256, 32>}]} {
    %c0 = arith.constant 0 : index
    %c0_0 = arith.constant 0 : index
    %c0_1 = arith.constant 0 : index
    %c0_2 = arith.constant 0 : index
    %0 = vector.load %arg1[%c0, %c0_0, %c0_1, %c0_2] : memref<1x16x16x4xf32, #tpu.memory_space<vmem>>, vector<1x16x16x4xf32>
    %1 = vector.shape_cast %0 : vector<1x16x16x4xf32> to vector<16x16x4xf32>
    %2 = vector.shape_cast %1 : vector<16x16x4xf32> to vector<256x4xf32>
    %3 = arith.truncf %2 : vector<256x4xf32> to vector<256x4xbf16>
    %c0_3 = arith.constant 0 : index
    %c0_4 = arith.constant 0 : index
    %4 = vector.load %arg2[%c0_3, %c0_4] : memref<4x256xbf16, #tpu.memory_space<vmem>>, vector<4x256xbf16>
    %cst = arith.constant dense<0.000000e+00> : vector<256x256xf32>
    %5 = tpu.matmul %3, %4, %cst {dimension_numbers = #tpu.dot_dimension_numbers<[1], [0], [0], [1], [0, 0, 1, 1], [], []>} : vector<256x4xbf16>, vector<4x256xbf16>, vector<256x256xf32> -> vector<256x256xf32>
    %c0_5 = arith.constant 0 : index
    %c0_6 = arith.constant 0 : index
    %6 = vector.load %arg3[%c0_5, %c0_6] : memref<1x256xf32, #tpu.memory_space<vmem>>, vector<1x256xf32>
    %7 = vector.broadcast %6 : vector<1x256xf32> to vector<256x256xf32>
    %8 = arith.addf %5, %7 : vector<256x256xf32>
    %cst_7 = arith.constant 0.000000e+00 : f32
    %9 = vector.broadcast %cst_7 : f32 to vector<256x256xf32>
    %10 = arith.maximumf %8, %9 : vector<256x256xf32>
    %11 = vector.extract_strided_slice %10 {offsets = [0, 0], sizes = [256, 8], strides = [1, 1]} : vector<256x256xf32> to vector<256x8xf32>
    %cst_8 = arith.constant 0.000000e+00 : bf16
    %12 = vector.broadcast %cst_8 : bf16 to vector<1x18x128xbf16>
    %cst_9 = arith.constant 0.000000e+00 : bf16
    %13 = vector.broadcast %cst_9 : bf16 to vector<18x1x128xbf16>
    %c0_10 = arith.constant 0 : index
    %c0_11 = arith.constant 0 : index
    %c0_12 = arith.constant 0 : index
    %14 = vector.load %arg9[%c0_10, %c0_11, %c0_12] : memref<18x18x128xbf16, #tpu.memory_space<vmem>>, vector<1x18x128xbf16>
    tpu.vector_store %arg9[%c0_10, %c0_11, %c0_12], %12 {strides = array<i32>} : memref<18x18x128xbf16, #tpu.memory_space<vmem>>, vector<1x18x128xbf16>,
    %c17 = arith.constant 17 : index
    %c0_13 = arith.constant 0 : index
    %c0_14 = arith.constant 0 : index
    %15 = vector.load %arg9[%c17, %c0_13, %c0_14] : memref<18x18x128xbf16, #tpu.memory_space<vmem>>, vector<1x18x128xbf16>
    tpu.vector_store %arg9[%c17, %c0_13, %c0_14], %12 {strides = array<i32>} : memref<18x18x128xbf16, #tpu.memory_space<vmem>>, vector<1x18x128xbf16>,
    %c0_15 = arith.constant 0 : index
    %c0_16 = arith.constant 0 : index
    %c0_17 = arith.constant 0 : index
    %16 = vector.load %arg9[%c0_15, %c0_16, %c0_17] : memref<18x18x128xbf16, #tpu.memory_space<vmem>>, vector<18x1x128xbf16>
    tpu.vector_store %arg9[%c0_15, %c0_16, %c0_17], %13 {strides = array<i32>} : memref<18x18x128xbf16, #tpu.memory_space<vmem>>, vector<18x1x128xbf16>,
    %c0_18 = arith.constant 0 : index
    %c17_19 = arith.constant 17 : index
    %c0_20 = arith.constant 0 : index
    %17 = vector.load %arg9[%c0_18, %c17_19, %c0_20] : memref<18x18x128xbf16, #tpu.memory_space<vmem>>, vector<18x1x128xbf16>
    tpu.vector_store %arg9[%c0_18, %c17_19, %c0_20], %13 {strides = array<i32>} : memref<18x18x128xbf16, #tpu.memory_space<vmem>>, vector<18x1x128xbf16>,
    %18 = vector.extract_strided_slice %10 {offsets = [0, 128], sizes = [256, 128], strides = [1, 1]} : vector<256x256xf32> to vector<256x128xf32>
    %19 = arith.truncf %18 : vector<256x128xf32> to vector<256x128xbf16>
    %20 = vector.shape_cast %19 : vector<256x128xbf16> to vector<16x16x128xbf16>
    %c1 = arith.constant 1 : index
    %c1_21 = arith.constant 1 : index
    %c0_22 = arith.constant 0 : index
    %21 = vector.load %arg9[%c1, %c1_21, %c0_22] : memref<18x18x128xbf16, #tpu.memory_space<vmem>>, vector<16x16x128xbf16>
    tpu.vector_store %arg9[%c1, %c1_21, %c0_22], %20 {strides = array<i32>} : memref<18x18x128xbf16, #tpu.memory_space<vmem>>, vector<16x16x128xbf16>,
    %c0_23 = arith.constant 0 : index
    %c0_24 = arith.constant 0 : index
    %c0_25 = arith.constant 0 : index
    %22 = vector.load %arg9[%c0_23, %c0_24, %c0_25] : memref<18x18x128xbf16, #tpu.memory_space<vmem>>, vector<16x16x128xbf16>
    %23 = vector.shape_cast %22 : vector<16x16x128xbf16> to vector<256x128xbf16>
    %c0_26 = arith.constant 0 : index
    %c1_27 = arith.constant 1 : index
    %c0_28 = arith.constant 0 : index
    %24 = vector.load %arg9[%c0_26, %c1_27, %c0_28] : memref<18x18x128xbf16, #tpu.memory_space<vmem>>, vector<16x16x128xbf16>
    %25 = vector.shape_cast %24 : vector<16x16x128xbf16> to vector<256x128xbf16>
    %c0_29 = arith.constant 0 : index
    %c2 = arith.constant 2 : index
    %c0_30 = arith.constant 0 : index
    %26 = vector.load %arg9[%c0_29, %c2, %c0_30] : memref<18x18x128xbf16, #tpu.memory_space<vmem>>, vector<16x16x128xbf16>
    %27 = vector.shape_cast %26 : vector<16x16x128xbf16> to vector<256x128xbf16>
    %28 = tpu.concatenate %23, %25, %27 in 1 : vector<256x128xbf16>, vector<256x128xbf16>, vector<256x128xbf16> -> vector<256x384xbf16>
    %c0_31 = arith.constant 0 : index
    %c0_32 = arith.constant 0 : index
    %c0_33 = arith.constant 0 : index
    %29 = vector.load %arg4[%c0_31, %c0_32, %c0_33] : memref<3x384x16xbf16, #tpu.memory_space<vmem>>, vector<1x384x16xbf16>
    %30 = vector.shape_cast %29 : vector<1x384x16xbf16> to vector<384x16xbf16>
    %cst_34 = arith.constant dense<0.000000e+00> : vector<256x16xf32>
    %31 = tpu.matmul %28, %30, %cst_34 {dimension_numbers = #tpu.dot_dimension_numbers<[1], [0], [0], [1], [0, 0, 1, 1], [], []>} : vector<256x384xbf16>, vector<384x16xbf16>, vector<256x16xf32> -> vector<256x16xf32>
    %c1_35 = arith.constant 1 : index
    %c0_36 = arith.constant 0 : index
    %c0_37 = arith.constant 0 : index
    %32 = vector.load %arg9[%c1_35, %c0_36, %c0_37] : memref<18x18x128xbf16, #tpu.memory_space<vmem>>, vector<16x16x128xbf16>
    %33 = vector.shape_cast %32 : vector<16x16x128xbf16> to vector<256x128xbf16>
    %c1_38 = arith.constant 1 : index
    %c1_39 = arith.constant 1 : index
    %c0_40 = arith.constant 0 : index
    %34 = vector.load %arg9[%c1_38, %c1_39, %c0_40] : memref<18x18x128xbf16, #tpu.memory_space<vmem>>, vector<16x16x128xbf16>
    %35 = vector.shape_cast %34 : vector<16x16x128xbf16> to vector<256x128xbf16>
    %c1_41 = arith.constant 1 : index
    %c2_42 = arith.constant 2 : index
    %c0_43 = arith.constant 0 : index
    %36 = vector.load %arg9[%c1_41, %c2_42, %c0_43] : memref<18x18x128xbf16, #tpu.memory_space<vmem>>, vector<16x16x128xbf16>
    %37 = vector.shape_cast %36 : vector<16x16x128xbf16> to vector<256x128xbf16>
    %38 = tpu.concatenate %33, %35, %37 in 1 : vector<256x128xbf16>, vector<256x128xbf16>, vector<256x128xbf16> -> vector<256x384xbf16>
    %c1_44 = arith.constant 1 : index
    %c0_45 = arith.constant 0 : index
    %c0_46 = arith.constant 0 : index
    %39 = vector.load %arg4[%c1_44, %c0_45, %c0_46] : memref<3x384x16xbf16, #tpu.memory_space<vmem>>, vector<1x384x16xbf16>
    %40 = vector.shape_cast %39 : vector<1x384x16xbf16> to vector<384x16xbf16>
    %cst_47 = arith.constant dense<0.000000e+00> : vector<256x16xf32>
    %41 = tpu.matmul %38, %40, %cst_47 {dimension_numbers = #tpu.dot_dimension_numbers<[1], [0], [0], [1], [0, 0, 1, 1], [], []>} : vector<256x384xbf16>, vector<384x16xbf16>, vector<256x16xf32> -> vector<256x16xf32>
    %42 = arith.addf %31, %41 : vector<256x16xf32>
    %c2_48 = arith.constant 2 : index
    %c0_49 = arith.constant 0 : index
    %c0_50 = arith.constant 0 : index
    %43 = vector.load %arg9[%c2_48, %c0_49, %c0_50] : memref<18x18x128xbf16, #tpu.memory_space<vmem>>, vector<16x16x128xbf16>
    %44 = vector.shape_cast %43 : vector<16x16x128xbf16> to vector<256x128xbf16>
    %c2_51 = arith.constant 2 : index
    %c1_52 = arith.constant 1 : index
    %c0_53 = arith.constant 0 : index
    %45 = vector.load %arg9[%c2_51, %c1_52, %c0_53] : memref<18x18x128xbf16, #tpu.memory_space<vmem>>, vector<16x16x128xbf16>
    %46 = vector.shape_cast %45 : vector<16x16x128xbf16> to vector<256x128xbf16>
    %c2_54 = arith.constant 2 : index
    %c2_55 = arith.constant 2 : index
    %c0_56 = arith.constant 0 : index
    %47 = vector.load %arg9[%c2_54, %c2_55, %c0_56] : memref<18x18x128xbf16, #tpu.memory_space<vmem>>, vector<16x16x128xbf16>
    %48 = vector.shape_cast %47 : vector<16x16x128xbf16> to vector<256x128xbf16>
    %49 = tpu.concatenate %44, %46, %48 in 1 : vector<256x128xbf16>, vector<256x128xbf16>, vector<256x128xbf16> -> vector<256x384xbf16>
    %c2_57 = arith.constant 2 : index
    %c0_58 = arith.constant 0 : index
    %c0_59 = arith.constant 0 : index
    %50 = vector.load %arg4[%c2_57, %c0_58, %c0_59] : memref<3x384x16xbf16, #tpu.memory_space<vmem>>, vector<1x384x16xbf16>
    %51 = vector.shape_cast %50 : vector<1x384x16xbf16> to vector<384x16xbf16>
    %cst_60 = arith.constant dense<0.000000e+00> : vector<256x16xf32>
    %52 = tpu.matmul %49, %51, %cst_60 {dimension_numbers = #tpu.dot_dimension_numbers<[1], [0], [0], [1], [0, 0, 1, 1], [], []>} : vector<256x384xbf16>, vector<384x16xbf16>, vector<256x16xf32> -> vector<256x16xf32>
    %53 = arith.addf %42, %52 : vector<256x16xf32>
    %c0_61 = arith.constant 0 : index
    %c0_62 = arith.constant 0 : index
    %54 = vector.load %arg5[%c0_61, %c0_62] : memref<1x16xf32, #tpu.memory_space<vmem>>, vector<1x16xf32>
    %55 = vector.broadcast %54 : vector<1x16xf32> to vector<256x16xf32>
    %56 = arith.addf %53, %55 : vector<256x16xf32>
    %cst_63 = arith.constant 0.000000e+00 : f32
    %57 = vector.broadcast %cst_63 : f32 to vector<256x16xf32>
    %58 = arith.maximumf %56, %57 : vector<256x16xf32>
    %cst_64 = arith.constant 0xFF800000 : f32
    %59 = vector.broadcast %cst_64 : f32 to vector<1x18x4xf32>
    %cst_65 = arith.constant 0xFF800000 : f32
    %60 = vector.broadcast %cst_65 : f32 to vector<18x1x4xf32>
    %c0_66 = arith.constant 0 : index
    %c0_67 = arith.constant 0 : index
    %c0_68 = arith.constant 0 : index
    %61 = vector.load %arg10[%c0_66, %c0_67, %c0_68] : memref<18x18x4xf32, #tpu.memory_space<vmem>>, vector<1x18x4xf32>
    tpu.vector_store %arg10[%c0_66, %c0_67, %c0_68], %59 {strides = array<i32>} : memref<18x18x4xf32, #tpu.memory_space<vmem>>, vector<1x18x4xf32>,
    %c17_69 = arith.constant 17 : index
    %c0_70 = arith.constant 0 : index
    %c0_71 = arith.constant 0 : index
    %62 = vector.load %arg10[%c17_69, %c0_70, %c0_71] : memref<18x18x4xf32, #tpu.memory_space<vmem>>, vector<1x18x4xf32>
    tpu.vector_store %arg10[%c17_69, %c0_70, %c0_71], %59 {strides = array<i32>} : memref<18x18x4xf32, #tpu.memory_space<vmem>>, vector<1x18x4xf32>,
    %c0_72 = arith.constant 0 : index
    %c0_73 = arith.constant 0 : index
    %c0_74 = arith.constant 0 : index
    %63 = vector.load %arg10[%c0_72, %c0_73, %c0_74] : memref<18x18x4xf32, #tpu.memory_space<vmem>>, vector<18x1x4xf32>
    tpu.vector_store %arg10[%c0_72, %c0_73, %c0_74], %60 {strides = array<i32>} : memref<18x18x4xf32, #tpu.memory_space<vmem>>, vector<18x1x4xf32>,
    %c0_75 = arith.constant 0 : index
    %c17_76 = arith.constant 17 : index
    %c0_77 = arith.constant 0 : index
    %64 = vector.load %arg10[%c0_75, %c17_76, %c0_77] : memref<18x18x4xf32, #tpu.memory_space<vmem>>, vector<18x1x4xf32>
    tpu.vector_store %arg10[%c0_75, %c17_76, %c0_77], %60 {strides = array<i32>} : memref<18x18x4xf32, #tpu.memory_space<vmem>>, vector<18x1x4xf32>,
    %c1_78 = arith.constant 1 : index
    %c1_79 = arith.constant 1 : index
    %c0_80 = arith.constant 0 : index
    %65 = vector.load %arg10[%c1_78, %c1_79, %c0_80] : memref<18x18x4xf32, #tpu.memory_space<vmem>>, vector<16x16x4xf32>
    tpu.vector_store %arg10[%c1_78, %c1_79, %c0_80], %1 {strides = array<i32>} : memref<18x18x4xf32, #tpu.memory_space<vmem>>, vector<16x16x4xf32>,
    %c0_81 = arith.constant 0 : index
    %c0_82 = arith.constant 0 : index
    %c0_83 = arith.constant 0 : index
    %66 = vector.load %arg10[%c0_81, %c0_82, %c0_83] : memref<18x18x4xf32, #tpu.memory_space<vmem>>, vector<16x18x4xf32>
    %c1_84 = arith.constant 1 : index
    %c0_85 = arith.constant 0 : index
    %c0_86 = arith.constant 0 : index
    %67 = vector.load %arg10[%c1_84, %c0_85, %c0_86] : memref<18x18x4xf32, #tpu.memory_space<vmem>>, vector<16x18x4xf32>
    %68 = arith.maximumf %66, %67 : vector<16x18x4xf32>
    %c2_87 = arith.constant 2 : index
    %c0_88 = arith.constant 0 : index
    %c0_89 = arith.constant 0 : index
    %69 = vector.load %arg10[%c2_87, %c0_88, %c0_89] : memref<18x18x4xf32, #tpu.memory_space<vmem>>, vector<16x18x4xf32>
    %70 = arith.maximumf %68, %69 : vector<16x18x4xf32>
    %71 = vector.extract_strided_slice %70 {offsets = [0, 0, 0], sizes = [16, 16, 4], strides = [1, 1, 1]} : vector<16x18x4xf32> to vector<16x16x4xf32>
    %72 = vector.extract_strided_slice %70 {offsets = [0, 1, 0], sizes = [16, 16, 4], strides = [1, 1, 1]} : vector<16x18x4xf32> to vector<16x16x4xf32>
    %73 = arith.maximumf %71, %72 : vector<16x16x4xf32>
    %74 = vector.extract_strided_slice %70 {offsets = [0, 2, 0], sizes = [16, 16, 4], strides = [1, 1, 1]} : vector<16x18x4xf32> to vector<16x16x4xf32>
    %75 = arith.maximumf %73, %74 : vector<16x16x4xf32>
    %76 = vector.shape_cast %75 : vector<16x16x4xf32> to vector<256x4xf32>
    %77 = arith.truncf %76 : vector<256x4xf32> to vector<256x4xbf16>
    %c0_90 = arith.constant 0 : index
    %c0_91 = arith.constant 0 : index
    %78 = vector.load %arg6[%c0_90, %c0_91] : memref<4x8xbf16, #tpu.memory_space<vmem>>, vector<4x8xbf16>
    %cst_92 = arith.constant dense<0.000000e+00> : vector<256x8xf32>
    %79 = tpu.matmul %77, %78, %cst_92 {dimension_numbers = #tpu.dot_dimension_numbers<[1], [0], [0], [1], [0, 0, 1, 1], [], []>} : vector<256x4xbf16>, vector<4x8xbf16>, vector<256x8xf32> -> vector<256x8xf32>
    %c0_93 = arith.constant 0 : index
    %c0_94 = arith.constant 0 : index
    %80 = vector.load %arg7[%c0_93, %c0_94] : memref<1x8xf32, #tpu.memory_space<vmem>>, vector<1x8xf32>
    %81 = vector.broadcast %80 : vector<1x8xf32> to vector<256x8xf32>
    %82 = arith.addf %79, %81 : vector<256x8xf32>
    %cst_95 = arith.constant 0.000000e+00 : f32
    %83 = vector.broadcast %cst_95 : f32 to vector<256x8xf32>
    %84 = arith.maximumf %82, %83 : vector<256x8xf32>
    %85 = tpu.concatenate %11, %58, %84 in 1 : vector<256x8xf32>, vector<256x16xf32>, vector<256x8xf32> -> vector<256x32xf32>
    %c0_96 = arith.constant 0 : index
    %c0_97 = arith.constant 0 : index
    %c0_98 = arith.constant 0 : index
    %86 = vector.load %arg8[%c0_96, %c0_97, %c0_98] : memref<1x256x32xf32, #tpu.memory_space<vmem>>, vector<1x256x32xf32>
    %87 = vector.shape_cast %86 : vector<1x256x32xf32> to vector<256x32xf32>
    %88 = vector.shape_cast %85 : vector<256x32xf32> to vector<1x256x32xf32>
    tpu.vector_store %arg8[%c0_96, %c0_97, %c0_98], %88 {strides = array<i32>} : memref<1x256x32xf32, #tpu.memory_space<vmem>>, vector<1x256x32xf32>,
    return
  }
  func.func @transform_0(%arg0: i32) -> (i32, i32, i32, i32) {
    %c0_i32 = arith.constant 0 : i32
    %c0_i32_0 = arith.constant 0 : i32
    %c0_i32_1 = arith.constant 0 : i32
    %c0_i32_2 = arith.constant 0 : i32
    return %arg0, %c0_i32, %c0_i32_0, %c0_i32_1 : i32, i32, i32, i32
  }
  func.func @transform_1(%arg0: i32) -> (i32, i32) {
    %c0_i32 = arith.constant 0 : i32
    %c0_i32_0 = arith.constant 0 : i32
    %c0_i32_1 = arith.constant 0 : i32
    return %c0_i32, %c0_i32_0 : i32, i32
  }
  func.func @transform_2(%arg0: i32) -> (i32, i32) {
    %c0_i32 = arith.constant 0 : i32
    %c0_i32_0 = arith.constant 0 : i32
    %c0_i32_1 = arith.constant 0 : i32
    return %c0_i32, %c0_i32_0 : i32, i32
  }
  func.func @transform_3(%arg0: i32) -> (i32, i32, i32) {
    %c0_i32 = arith.constant 0 : i32
    %c0_i32_0 = arith.constant 0 : i32
    %c0_i32_1 = arith.constant 0 : i32
    %c0_i32_2 = arith.constant 0 : i32
    return %c0_i32, %c0_i32_0, %c0_i32_1 : i32, i32, i32
  }
  func.func @transform_4(%arg0: i32) -> (i32, i32) {
    %c0_i32 = arith.constant 0 : i32
    %c0_i32_0 = arith.constant 0 : i32
    %c0_i32_1 = arith.constant 0 : i32
    return %c0_i32, %c0_i32_0 : i32, i32
  }
  func.func @transform_5(%arg0: i32) -> (i32, i32) {
    %c0_i32 = arith.constant 0 : i32
    %c0_i32_0 = arith.constant 0 : i32
    %c0_i32_1 = arith.constant 0 : i32
    return %c0_i32, %c0_i32_0 : i32, i32
  }
  func.func @transform_6(%arg0: i32) -> (i32, i32) {
    %c0_i32 = arith.constant 0 : i32
    %c0_i32_0 = arith.constant 0 : i32
    %c0_i32_1 = arith.constant 0 : i32
    return %c0_i32, %c0_i32_0 : i32, i32
  }
  func.func @transform_7(%arg0: i32) -> (i32, i32, i32) {
    %c0_i32 = arith.constant 0 : i32
    %c0_i32_0 = arith.constant 0 : i32
    %c0_i32_1 = arith.constant 0 : i32
    return %arg0, %c0_i32, %c0_i32_0 : i32, i32, i32
  }
}

</mosaic_0001>

<llo_original>
// kernel: inception_v1_forward.1
$region0: #{inception_v1_forward.1}
  #allocation0 [shape = 'u32[]', space=smem, size = 0x4, offset = 0x4, fixed_abs, tag = 'smem constant byte address 0x4 - core index']
  #allocation1 [shape = 'u32[144,128]{1,0:T(1,128)}', space=vmem, size = 0x12000, scoped, tag = 'internal scratch']
  #allocation2 [shape = 'bf16[18,18,128]{2,1,0:T(8,128)(2,1)}', space=vmem, size = 0x1b000, scoped, tag = 'scratch operand']
  #allocation3 [shape = 'f32[18,18,4]{2,1,0:T(8,128)}', space=vmem, size = 0x36000, scoped, tag = 'scratch operand']
  %s0 = inlined_call_operand.vmem [shape: f32[2,16,16,4], index: 0, kind: input, shape index: {}]
  %s1 = inlined_call_operand.vmem [shape: bf16[4,256], index: 1, kind: input, shape index: {}]
  %s2 = inlined_call_operand.vmem [shape: f32[1,256], index: 2, kind: input, shape index: {}]
  %s3 = inlined_call_operand.vmem [shape: bf16[3,384,16], index: 3, kind: input, shape index: {}]
  %s4 = inlined_call_operand.vmem [shape: f32[1,16], index: 4, kind: input, shape index: {}]
  %s5 = inlined_call_operand.vmem [shape: bf16[4,8], index: 5, kind: input, shape index: {}]
  %s6 = inlined_call_operand.vmem [shape: f32[1,8], index: 6, kind: input, shape index: {}]
  %s7 = inlined_call_operand.hbm [shape: f32[2,256,32], index: 7, kind: output, shape index: {}]
  %s8 = sld [smem:[#allocation0]]
  $region61: #{inception_v1_forward.1} parent=0
    _
  %s10 = ssub.s32 1, %s8
  %s11 = scalar_select 0, %s10, %s8
  $region1: #{inception_v1_forward.1} parent=0
    #allocation4 [shape = 'u8[262144]{0}', space=vmem, size = 0x40000, scoped, tag = 'output window, operand 0']
    #allocation5 [shape = 's32[2]{0}', space=sflag, size = 0x8, scoped, tag = 'scoped memory for inception_v1_forward.1']
    %12 = vsyncpa [#allocation5], 0
    %s13 = scalar_lea.sflag [#allocation5], 1
    %14 = vsyncpa %s13, 0
    loop: start=0, step=1, limit=4
    $region2: #{inception_v1_forward.1} parent=1 // loop_pre_header
      _
    $region3: #{inception_v1_forward.1} parent=1 // loop_header
      %s16 = sphi 0, %s20
      %p17 = scmp.ge.s32.totalorder %s16, 4
      %s26 = sphi 0, %s28
      %s29 = sphi 0, %s26
      %s30 = sphi 0, %s29
      %s46 = sphi 0, %s30
      %s50 = sphi 0, %s50
      %s52 = sphi 0, %s50
      %s53 = sphi 0, %s52
      %s67 = sphi 0, %s53
      %s71 = sphi 0, %s71
      %s73 = sphi 0, %s71
      %s74 = sphi 0, %s73
      %s88 = sphi 0, %s74
      %s92 = sphi 0, %s92
      %s94 = sphi 0, %s92
      %s95 = sphi 0, %s94
      %s109 = sphi 0, %s95
      %s113 = sphi 0, %s113
      %s115 = sphi 0, %s113
      %s116 = sphi 0, %s115
      %s130 = sphi 0, %s116
      %s134 = sphi 0, %s134
      %s136 = sphi 0, %s134
      %s137 = sphi 0, %s136
      %s151 = sphi 0, %s137
      %s155 = sphi 0, %s155
      %s157 = sphi 0, %s155
      %s158 = sphi 0, %s157
      %s172 = sphi 0, %s158
      %s178 = sphi 0, %s180
      %s181 = sphi 0, %s178
      %s182 = sphi 0, %s181
      %s198 = sphi 0, %s182
    $region4: #{inception_v1_forward.1} parent=1 // loop_header_branch
      %19 = sbr.rel (%p17) target = $region8
    $region5: #{inception_v1_forward.1} parent=1 // loop_body
      %s21 = ssub.s32 %s16, 1
      %s22 = ssub.s32 %s16, 2
      %s23 = sadd.s32 %s16, 1
      %s24 = ssub.s32 %s16, %s23
      %p25 = scmp.eq.s32.totalorder %s24, 0
      %s27 = sadd.s32 %s26, 1
      %s28 = scalar_select %p25, %s26, %s27
      %p31 = pneg %p25
      %p32 = scmp.eq.s32.totalorder %s16, 1
      %p33 = por %p31, %p32
      %p34 = scmp.ne.s32.totalorder %s26, %s29
      %p35 = scmp.eq.s32.totalorder %s16, 0
      %p36 = por %p34, %p35
      %p37 = scmp.ne.s32.totalorder %s26, %s29
      %p38 = scmp.eq.s32.totalorder %s21, 1
      %p39 = por %p37, %p38
      %p40 = scmp.ne.s32.totalorder %s29, %s30
      %p41 = scmp.eq.s32.totalorder %s21, 0
      %p42 = por %p40, %p41
      %p43 = scmp.ne.s32.totalorder %s29, %s30
      %p44 = scmp.eq.s32.totalorder %s22, 1
      %p45 = por %p43, %p44
      %p47 = scmp.ne.s32.totalorder %s30, %s46
      %p48 = scmp.eq.s32.totalorder %s22, 0
      %p49 = por %p47, %p48
      %s51 = sadd.s32 %s50, 1
      %p54 = scmp.eq.s32.totalorder %s16, 1
      %p55 = scmp.ne.s32.totalorder %s50, %s52
      %p56 = scmp.eq.s32.totalorder %s16, 0
      %p57 = por %p55, %p56
      %p58 = scmp.ne.s32.totalorder %s50, %s52
      %p59 = scmp.eq.s32.totalorder %s21, 1
      %p60 = por %p58, %p59
      %p61 = scmp.ne.s32.totalorder %s52, %s53
      %p62 = scmp.eq.s32.totalorder %s21, 0
      %p63 = por %p61, %p62
      %p64 = scmp.ne.s32.totalorder %s52, %s53
      %p65 = scmp.eq.s32.totalorder %s22, 1
      %p66 = por %p64, %p65
      %p68 = scmp.ne.s32.totalorder %s53, %s67
      %p69 = scmp.eq.s32.totalorder %s22, 0
      %p70 = por %p68, %p69
      %s72 = sadd.s32 %s71, 1
      %p75 = scmp.eq.s32.totalorder %s16, 1
      %p76 = scmp.ne.s32.totalorder %s71, %s73
      %p77 = scmp.eq.s32.totalorder %s16, 0
      %p78 = por %p76, %p77
      %p79 = scmp.ne.s32.totalorder %s71, %s73
      %p80 = scmp.eq.s32.totalorder %s21, 1
      %p81 = por %p79, %p80
      %p82 = scmp.ne.s32.totalorder %s73, %s74
      %p83 = scmp.eq.s32.totalorder %s21, 0
      %p84 = por %p82, %p83
      %p85 = scmp.ne.s32.totalorder %s73, %s74
      %p86 = scmp.eq.s32.totalorder %s22, 1
      %p87 = por %p85, %p86
      %p89 = scmp.ne.s32.totalorder %s74, %s88
      %p90 = scmp.eq.s32.totalorder %s22, 0
      %p91 = por %p89, %p90
      %s93 = sadd.s32 %s92, 1
      %p96 = scmp.eq.s32.totalorder %s16, 1
      %p97 = scmp.ne.s32.totalorder %s92, %s94
      %p98 = scmp.eq.s32.totalorder %s16, 0
      %p99 = por %p97, %p98
      %p100 = scmp.ne.s32.totalorder %s92, %s94
      %p101 = scmp.eq.s32.totalorder %s21, 1
      %p102 = por %p100, %p101
      %p103 = scmp.ne.s32.totalorder %s94, %s95
      %p104 = scmp.eq.s32.totalorder %s21, 0
      %p105 = por %p103, %p104
      %p106 = scmp.ne.s32.totalorder %s94, %s95
      %p107 = scmp.eq.s32.totalorder %s22, 1
      %p108 = por %p106, %p107
      %p110 = scmp.ne.s32.totalorder %s95, %s109
      %p111 = scmp.eq.s32.totalorder %s22, 0
      %p112 = por %p110, %p111
      %s114 = sadd.s32 %s113, 1
      %p117 = scmp.eq.s32.totalorder %s16, 1
      %p118 = scmp.ne.s32.totalorder %s113, %s115
      %p119 = scmp.eq.s32.totalorder %s16, 0
      %p120 = por %p118, %p119
      %p121 = scmp.ne.s32.totalorder %s113, %s115
      %p122 = scmp.eq.s32.totalorder %s21, 1
      %p123 = por %p121, %p122
      %p124 = scmp.ne.s32.totalorder %s115, %s116
      %p125 = scmp.eq.s32.totalorder %s21, 0
      %p126 = por %p124, %p125
      %p127 = scmp.ne.s32.totalorder %s115, %s116
      %p128 = scmp.eq.s32.totalorder %s22, 1
      %p129 = por %p127, %p128
      %p131 = scmp.ne.s32.totalorder %s116, %s130
      %p132 = scmp.eq.s32.totalorder %s22, 0
      %p133 = por %p131, %p132
      %s135 = sadd.s32 %s134, 1
      %p138 = scmp.eq.s32.totalorder %s16, 1
      %p139 = scmp.ne.s32.totalorder %s134, %s136
      %p140 = scmp.eq.s32.totalorder %s16, 0
      %p141 = por %p139, %p140
      %p142 = scmp.ne.s32.totalorder %s134, %s136
      %p143 = scmp.eq.s32.totalorder %s21, 1
      %p144 = por %p142, %p143
      %p145 = scmp.ne.s32.totalorder %s136, %s137
      %p146 = scmp.eq.s32.totalorder %s21, 0
      %p147 = por %p145, %p146
      %p148 = scmp.ne.s32.totalorder %s136, %s137
      %p149 = scmp.eq.s32.totalorder %s22, 1
      %p150 = por %p148, %p149
      %p152 = scmp.ne.s32.totalorder %s137, %s151
      %p153 = scmp.eq.s32.totalorder %s22, 0
      %p154 = por %p152, %p153
      %s156 = sadd.s32 %s155, 1
      %p159 = scmp.eq.s32.totalorder %s16, 1
      %p160 = scmp.ne.s32.totalorder %s155, %s157
      %p161 = scmp.eq.s32.totalorder %s16, 0
      %p162 = por %p160, %p161
      %p163 = scmp.ne.s32.totalorder %s155, %s157
      %p164 = scmp.eq.s32.totalorder %s21, 1
      %p165 = por %p163, %p164
      %p166 = scmp.ne.s32.totalorder %s157, %s158
      %p167 = scmp.eq.s32.totalorder %s21, 0
      %p168 = por %p166, %p167
      %p169 = scmp.ne.s32.totalorder %s157, %s158
      %p170 = scmp.eq.s32.totalorder %s22, 1
      %p171 = por %p169, %p170
      %p173 = scmp.ne.s32.totalorder %s158, %s172
      %p174 = scmp.eq.s32.totalorder %s22, 0
      %p175 = por %p173, %p174
      %s176 = ssub.s32 %s16, %s23
      %p177 = scmp.eq.s32.totalorder %s176, 0
      %s179 = sadd.s32 %s178, 1
      %s180 = scalar_select %p177, %s178, %s179
      %p183 = pneg %p177
      %p184 = scmp.eq.s32.totalorder %s16, 1
      %p185 = por %p183, %p184
      %p186 = scmp.ne.s32.totalorder %s178, %s181
      %p187 = scmp.eq.s32.totalorder %s16, 0
      %p188 = por %p186, %p187
      %p189 = scmp.ne.s32.totalorder %s178, %s181
      %p190 = scmp.eq.s32.totalorder %s21, 1
      %p191 = por %p189, %p190
      %p192 = scmp.ne.s32.totalorder %s181, %s182
      %p193 = scmp.eq.s32.totalorder %s21, 0
      %p194 = por %p192, %p193
      %p195 = scmp.ne.s32.totalorder %s181, %s182
      %p196 = scmp.eq.s32.totalorder %s22, 1
      %p197 = por %p195, %p196
      %p199 = scmp.ne.s32.totalorder %s182, %s198
      %p200 = scmp.eq.s32.totalorder %s22, 0
      %p201 = por %p199, %p200
      %p202 = scmp.le.s32.totalorder 1, %s16
      %p203 = scmp.lt.s32.totalorder %s16, 3
      %p204 = pnand %p202, %p203
      %p205 = pneg %p204
      // Predicated region
      $region9: #{inception_v1_forward.1} parent=5 // pred_check
        _
      $region10: #{inception_v1_forward.1} parent=5 // pred_check_branch
        %207 = sbr.rel (%p204) target = $region12
      $region11: #{inception_v1_forward.1} parent=5 // pred_region
        %s208 = ssub.s32 %s16, 1
        // Predicated region
        $region13: #{inception_v1_forward.1} parent=11 // pred_check
          %p209 = pneg %p63
        $region14: #{inception_v1_forward.1} parent=11 // pred_check_branch
          %211 = sbr.rel (%p209) target = $region16
        $region15: #{inception_v1_forward.1} parent=11 // pred_region
          _
        $region16: #{inception_v1_forward.1} parent=11 // pred_fallthru
          _
        // Predicated region
        $region17: #{inception_v1_forward.1} parent=11 // pred_check
          %p212 = pneg %p84
        $region18: #{inception_v1_forward.1} parent=11 // pred_check_branch
          %214 = sbr.rel (%p212) target = $region20
        $region19: #{inception_v1_forward.1} parent=11 // pred_region
          _
        $region20: #{inception_v1_forward.1} parent=11 // pred_fallthru
          _
        // Predicated region
        $region21: #{inception_v1_forward.1} parent=11 // pred_check
          %p215 = pneg %p105
        $region22: #{inception_v1_forward.1} parent=11 // pred_check_branch
          %217 = sbr.rel (%p215) target = $region24
        $region23: #{inception_v1_forward.1} parent=11 // pred_region
          _
        $region24: #{inception_v1_forward.1} parent=11 // pred_fallthru
          _
        // Predicated region
        $region25: #{inception_v1_forward.1} parent=11 // pred_check
          %p218 = pneg %p126
        $region26: #{inception_v1_forward.1} parent=11 // pred_check_branch
          %220 = sbr.rel (%p218) target = $region28
        $region27: #{inception_v1_forward.1} parent=11 // pred_region
          _
        $region28: #{inception_v1_forward.1} parent=11 // pred_fallthru
          _
        // Predicated region
        $region29: #{inception_v1_forward.1} parent=11 // pred_check
          %p221 = pneg %p147
        $region30: #{inception_v1_forward.1} parent=11 // pred_check_branch
          %223 = sbr.rel (%p221) target = $region32
        $region31: #{inception_v1_forward.1} parent=11 // pred_region
          _
        $region32: #{inception_v1_forward.1} parent=11 // pred_fallthru
          _
        // Predicated region
        $region33: #{inception_v1_forward.1} parent=11 // pred_check
          %p224 = pneg %p168
        $region34: #{inception_v1_forward.1} parent=11 // pred_check_branch
          %226 = sbr.rel (%p224) target = $region36
        $region35: #{inception_v1_forward.1} parent=11 // pred_region
          _
        $region36: #{inception_v1_forward.1} parent=11 // pred_fallthru
          _
      $region12: #{inception_v1_forward.1} parent=5 // pred_fallthru
        _
      %p227 = scmp.lt.s32.totalorder %s16, 2
      // Predicated region
      $region37: #{inception_v1_forward.1} parent=5 // pred_check
        %p228 = pneg %p227
      $region38: #{inception_v1_forward.1} parent=5 // pred_check_branch
        %230 = sbr.rel (%p228) target = $region40
      $region39: #{inception_v1_forward.1} parent=5 // pred_region
        // Predicated region
        $region41: #{inception_v1_forward.1} parent=39 // pred_check
          %p231 = pneg %p36
        $region42: #{inception_v1_forward.1} parent=39 // pred_check_branch
          %233 = sbr.rel (%p231) target = $region44
        $region43: #{inception_v1_forward.1} parent=39 // pred_region
          %p234 = scmp.lt.s32.totalorder %s16, 1
          %s235 = scalar_select %p234, %s16, 1
          %s236 = smul.addr %s235, 32
          %s237 = smul.addr %s236, 8
          %s238 = scalar_lea.vmem %s0, %s237
        $region44: #{inception_v1_forward.1} parent=39 // pred_fallthru
          _
      $region40: #{inception_v1_forward.1} parent=5 // pred_fallthru
        _
      %p239 = scmp.le.s32.totalorder 1, %s16
      %p240 = scmp.lt.s32.totalorder %s16, 3
      %p241 = pnand %p239, %p240
      %p242 = pneg %p241
      // Predicated region
      $region45: #{inception_v1_forward.1} parent=5 // pred_check
        _
      $region46: #{inception_v1_forward.1} parent=5 // pred_check_branch
        %244 = sbr.rel (%p241) target = $region48
      $region47: #{inception_v1_forward.1} parent=5 // pred_region
        %s245 = ssub.s32 %s16, 1
        %p246 = scmp.lt.s32.totalorder %s21, 1
        %s247 = scalar_select %p246, %s21, 1
        %s248 = smul.addr %s247, 32
        %s249 = smul.addr %s248, 8
        %s250 = scalar_lea.vmem %s0, %s249
        %p251 = pneg %p42
        %p252 = pneg %p39
        %p253 = pneg %p63
        %p254 = pneg %p60
        %p255 = pneg %p84
        %p256 = pneg %p81
        %p257 = pneg %p105
        %p258 = pneg %p102
        %p259 = pneg %p126
        %p260 = pneg %p123
        %p261 = pneg %p147
        %p262 = pneg %p144
        %p263 = pneg %p168
        %p264 = pneg %p165
        %p265 = pneg %p194
        %p266 = pneg %p191
        %s267 = sand.u32 %s181, 1
        %s268 = scalar_lea.sflag [#allocation5], %s267
        %s269 = sand.u32 %s181, 1
        %s270 = smul.addr %s269, 256
        %s271 = scalar_lea.vmem [#allocation4], %s270
        %p272 = scmp.lt.s32.totalorder %s21, 1
        %s273 = scalar_select %p272, %s21, 1
        %s274 = smul.addr %s273, 32
        %s275 = smul.addr %s274, 8
        %s276 = scalar_lea.vmem %s0, %s275
        %v278 = vld [vmem:[%s276] sm:$0xff]
        %v279 = vld [vmem:[%s276 + $0x8] sm:$0xff]
        %v280 = vld [vmem:[%s276 + $0x10] sm:$0xff]
        %v281 = vld [vmem:[%s276 + $0x18] sm:$0xff]
        %v282 = vld [vmem:[%s276 + $0x20] sm:$0xff]
        %v283 = vld [vmem:[%s276 + $0x28] sm:$0xff]
        %v284 = vld [vmem:[%s276 + $0x30] sm:$0xff]
        %v285 = vld [vmem:[%s276 + $0x38] sm:$0xff]
        %v286 = vld [vmem:[%s276 + $0x40] sm:$0xff]
        %v287 = vld [vmem:[%s276 + $0x48] sm:$0xff]
        %v288 = vld [vmem:[%s276 + $0x50] sm:$0xff]
        %v289 = vld [vmem:[%s276 + $0x58] sm:$0xff]
        %v290 = vld [vmem:[%s276 + $0x60] sm:$0xff]
        %v291 = vld [vmem:[%s276 + $0x68] sm:$0xff]
        %v292 = vld [vmem:[%s276 + $0x70] sm:$0xff]
        %v293 = vld [vmem:[%s276 + $0x78] sm:$0xff]
        %v294 = vld [vmem:[%s276 + $0x80] sm:$0xff]
        %v295 = vld [vmem:[%s276 + $0x88] sm:$0xff]
        %v296 = vld [vmem:[%s276 + $0x90] sm:$0xff]
        %v297 = vld [vmem:[%s276 + $0x98] sm:$0xff]
        %v298 = vld [vmem:[%s276 + $0xa0] sm:$0xff]
        %v299 = vld [vmem:[%s276 + $0xa8] sm:$0xff]
        %v300 = vld [vmem:[%s276 + $0xb0] sm:$0xff]
        %v301 = vld [vmem:[%s276 + $0xb8] sm:$0xff]
        %v302 = vld [vmem:[%s276 + $0xc0] sm:$0xff]
        %v303 = vld [vmem:[%s276 + $0xc8] sm:$0xff]
        %v304 = vld [vmem:[%s276 + $0xd0] sm:$0xff]
        %v305 = vld [vmem:[%s276 + $0xd8] sm:$0xff]
        %v306 = vld [vmem:[%s276 + $0xe0] sm:$0xff]
        %v307 = vld [vmem:[%s276 + $0xe8] sm:$0xff]
        %v308 = vld [vmem:[%s276 + $0xf0] sm:$0xff]
        %v309 = vld [vmem:[%s276 + $0xf8] sm:$0xff]
        %v310 = vpack.c.bf16 %v279, %v278
        %v311 = vpack.c.bf16 %v281, %v280
        %v312 = vpack.c.bf16 %v283, %v282
        %v313 = vpack.c.bf16 %v285, %v284
        %v314 = vpack.c.bf16 %v287, %v286
        %v315 = vpack.c.bf16 %v289, %v288
        %v316 = vpack.c.bf16 %v291, %v290
        %v317 = vpack.c.bf16 %v293, %v292
        %v318 = vpack.c.bf16 %v295, %v294
        %v319 = vpack.c.bf16 %v297, %v296
        %v320 = vpack.c.bf16 %v299, %v298
        %v321 = vpack.c.bf16 %v301, %v300
        %v322 = vpack.c.bf16 %v303, %v302
        %v323 = vpack.c.bf16 %v305, %v304
        %v324 = vpack.c.bf16 %v307, %v306
        %v325 = vpack.c.bf16 %v309, %v308
        %v326 = vld [vmem:[%s1] sm:$0xf]
        %v327 = vld [vmem:[%s2] sm:$0x3]
        %v329 = vlaneseq
        %v330 = vshrl.u32 %v329, 7
        %v331 = vsub.s32 0, %v330
        %v332 = vrot.slane %v327, %v331
        %v333 = vlaneseq
        %v334 = vshrl.u32 %v333, 7
        %v335 = vsub.s32 1, %v334
        %v336 = vrot.slane %v327, %v335
        %v341 = vunpack.c.l.s4 1983009808
        %v342 = vunpack.c.0.s8 %v341
        %v343 = vlaneseq
        %v344 = vshrl.u32 %v343, 7
        %v345 = vsub.s32 %v342, %v344
        %v346 = vrot.slane %v326, %v345
        %v347 = vcombine.high %v346, %v346
        %vm348 = vcmask 31744
        %v350 = vsel %vm348, %v310, 0
        %v353 = vsel %vm348, %v311, 0
        %v356 = vsel %vm348, %v312, 0
        %v359 = vsel %vm348, %v313, 0
        %v362 = vsel %vm348, %v314, 0
        %v365 = vsel %vm348, %v315, 0
        %v368 = vsel %vm348, %v316, 0
        %v371 = vsel %vm348, %v317, 0
        %v374 = vsel %vm348, %v318, 0
        %v377 = vsel %vm348, %v319, 0
        %v380 = vsel %vm348, %v320, 0
        %v383 = vsel %vm348, %v321, 0
        %v386 = vsel %vm348, %v322, 0
        %v389 = vsel %vm348, %v323, 0
        %v392 = vsel %vm348, %v324, 0
        %v395 = vsel %vm348, %v325, 0
        %vm397 = vcmask 1041408
        %v399 = vsel %vm397, %v346, 0
        %v402 = vsel %vm397, %v347, 0
        %404 = vmatprep.subr.bf16.mxu0 0
        %405 = vmatpush1.bf16.msra.mxu0 0
        %406 = vmatprep.subr.bf16.mxu0 0
        %407 = vmatpush1.bf16.msra.mxu0 0
        %408 = vmatprep.subr.bf16.mxu0 0
        %409 = vmatpush1.bf16.msra.mxu0 0
        %410 = vmatprep.subr.bf16.mxu0 0
        %411 = vmatpush1.bf16.msra.mxu0 0
        %412 = vmatprep.subr.bf16.mxu0 0
        %413 = vmatpush1.bf16.msra.mxu0 0
        %414 = vmatprep.subr.bf16.mxu0 0
        %415 = vmatpush1.bf16.msra.mxu0 0
        %416 = vmatprep.subr.bf16.mxu0 0
        %417 = vmatpush1.bf16.msra.mxu0 0
        %418 = vmatprep.subr.bf16.mxu0 %v402
        %419 = vmatpush1.bf16.msra.mxu0 %v399
        %420 = vmatprep.subr.bf16.mxu0 0
        %421 = vmatpush2.bf16.msra.mxu0 0
        %422 = vmatprep.subr.bf16.mxu0 0
        %423 = vmatpush2.bf16.msra.mxu0 0
        %424 = vmatprep.subr.bf16.mxu0 0
        %425 = vmatpush2.bf16.msra.mxu0 0
        %426 = vmatprep.subr.bf16.mxu0 0
        %427 = vmatpush2.bf16.msra.mxu0 0
        %428 = vmatprep.subr.bf16.mxu0 0
        %429 = vmatpush2.bf16.msra.mxu0 0
        %430 = vmatprep.subr.bf16.mxu0 0
        %431 = vmatpush2.bf16.msra.mxu0 0
        %432 = vmatprep.subr.bf16.mxu0 0
        %433 = vmatpush2.bf16.msra.mxu0 0
        %434 = vmatprep.subr.bf16.mxu0 0
        %435 = vmatpush2.bf16.msra.mxu0 0
        %436 = vmatprep.mubr.bf16.mxu0 0
        %437 = vmatmul.mubr.bf16.gmra.mxu0 %v350
        %v438 = vpop.f32.mrf.mxu0
        %v439 = vadd.f32 %v332, %v438
        %v440 = vpop.f32.mrf.mxu0
        %v441 = vadd.f32 %v336, %v440
        %v442 = vpop.f32.mrf.mxu0
        %v443 = vadd.f32 %v332, %v442
        %v444 = vpop.f32.mrf.mxu0
        %v445 = vadd.f32 %v336, %v444
        %446 = vmatprep.mubr.bf16.mxu0 0
        %447 = vmatmul.mubr.bf16.gmra.mxu0 %v353
        %v448 = vpop.f32.mrf.mxu0
        %v449 = vadd.f32 %v332, %v448
        %v450 = vpop.f32.mrf.mxu0
        %v451 = vadd.f32 %v336, %v450
        %v452 = vpop.f32.mrf.mxu0
        %v453 = vadd.f32 %v332, %v452
        %v454 = vpop.f32.mrf.mxu0
        %v455 = vadd.f32 %v336, %v454
        %456 = vmatprep.mubr.bf16.mxu0 0
        %457 = vmatmul.mubr.bf16.gmra.mxu0 %v356
        %v458 = vpop.f32.mrf.mxu0
        %v459 = vadd.f32 %v332, %v458
        %v460 = vpop.f32.mrf.mxu0
        %v461 = vadd.f32 %v336, %v460
        %v462 = vpop.f32.mrf.mxu0
        %v463 = vadd.f32 %v332, %v462
        %v464 = vpop.f32.mrf.mxu0
        %v465 = vadd.f32 %v336, %v464
        %466 = vmatprep.mubr.bf16.mxu0 0
        %467 = vmatmul.mubr.bf16.gmra.mxu0 %v359
        %v468 = vpop.f32.mrf.mxu0
        %v469 = vadd.f32 %v332, %v468
        %v470 = vpop.f32.mrf.mxu0
        %v471 = vadd.f32 %v336, %v470
        %v472 = vpop.f32.mrf.mxu0
        %v473 = vadd.f32 %v332, %v472
        %v474 = vpop.f32.mrf.mxu0
        %v475 = vadd.f32 %v336, %v474
        %476 = vmatprep.mubr.bf16.mxu0 0
        %477 = vmatmul.mubr.bf16.gmra.mxu0 %v362
        %v478 = vpop.f32.mrf.mxu0
        %v479 = vadd.f32 %v332, %v478
        %v480 = vpop.f32.mrf.mxu0
        %v481 = vadd.f32 %v336, %v480
        %v482 = vpop.f32.mrf.mxu0
        %v483 = vadd.f32 %v332, %v482
        %v484 = vpop.f32.mrf.mxu0
        %v485 = vadd.f32 %v336, %v484
        %486 = vmatprep.mubr.bf16.mxu0 0
        %487 = vmatmul.mubr.bf16.gmra.mxu0 %v365
        %v488 = vpop.f32.mrf.mxu0
        %v489 = vadd.f32 %v332, %v488
        %v490 = vpop.f32.mrf.mxu0
        %v491 = vadd.f32 %v336, %v490
        %v492 = vpop.f32.mrf.mxu0
        %v493 = vadd.f32 %v332, %v492
        %v494 = vpop.f32.mrf.mxu0
        %v495 = vadd.f32 %v336, %v494
        %496 = vmatprep.mubr.bf16.mxu0 0
        %497 = vmatmul.mubr.bf16.gmra.mxu0 %v368
        %v498 = vpop.f32.mrf.mxu0
        %v499 = vadd.f32 %v332, %v498
        %v500 = vpop.f32.mrf.mxu0
        %v501 = vadd.f32 %v336, %v500
        %v502 = vpop.f32.mrf.mxu0
        %v503 = vadd.f32 %v332, %v502
        %v504 = vpop.f32.mrf.mxu0
        %v505 = vadd.f32 %v336, %v504
        %506 = vmatprep.mubr.bf16.mxu0 0
        %507 = vmatmul.mubr.bf16.gmra.mxu0 %v371
        %v508 = vpop.f32.mrf.mxu0
        %v509 = vadd.f32 %v332, %v508
        %v510 = vpop.f32.mrf.mxu0
        %v511 = vadd.f32 %v336, %v510
        %v512 = vpop.f32.mrf.mxu0
        %v513 = vadd.f32 %v332, %v512
        %v514 = vpop.f32.mrf.mxu0
        %v515 = vadd.f32 %v336, %v514
        %516 = vmatprep.mubr.bf16.mxu0 0
        %517 = vmatmul.mubr.bf16.gmra.mxu0 %v374
        %v518 = vpop.f32.mrf.mxu0
        %v519 = vadd.f32 %v332, %v518
        %v520 = vpop.f32.mrf.mxu0
        %v521 = vadd.f32 %v336, %v520
        %v522 = vpop.f32.mrf.mxu0
        %v523 = vadd.f32 %v332, %v522
        %v524 = vpop.f32.mrf.mxu0
        %v525 = vadd.f32 %v336, %v524
        %526 = vmatprep.mubr.bf16.mxu0 0
        %527 = vmatmul.mubr.bf16.gmra.mxu0 %v377
        %v528 = vpop.f32.mrf.mxu0
        %v529 = vadd.f32 %v332, %v528
        %v530 = vpop.f32.mrf.mxu0
        %v531 = vadd.f32 %v336, %v530
        %v532 = vpop.f32.mrf.mxu0
        %v533 = vadd.f32 %v332, %v532
        %v534 = vpop.f32.mrf.mxu0
        %v535 = vadd.f32 %v336, %v534
        %536 = vmatprep.mubr.bf16.mxu0 0
        %537 = vmatmul.mubr.bf16.gmra.mxu0 %v380
        %v538 = vpop.f32.mrf.mxu0
        %v539 = vadd.f32 %v332, %v538
        %v540 = vpop.f32.mrf.mxu0
        %v541 = vadd.f32 %v336, %v540
        %v542 = vpop.f32.mrf.mxu0
        %v543 = vadd.f32 %v332, %v542
        %v544 = vpop.f32.mrf.mxu0
        %v545 = vadd.f32 %v336, %v544
        %546 = vmatprep.mubr.bf16.mxu0 0
        %547 = vmatmul.mubr.bf16.gmra.mxu0 %v383
        %v548 = vpop.f32.mrf.mxu0
        %v549 = vadd.f32 %v332, %v548
        %v550 = vpop.f32.mrf.mxu0
        %v551 = vadd.f32 %v336, %v550
        %v552 = vpop.f32.mrf.mxu0
        %v553 = vadd.f32 %v332, %v552
        %v554 = vpop.f32.mrf.mxu0
        %v555 = vadd.f32 %v336, %v554
        %556 = vmatprep.mubr.bf16.mxu0 0
        %557 = vmatmul.mubr.bf16.gmra.mxu0 %v386
        %v558 = vpop.f32.mrf.mxu0
        %v559 = vadd.f32 %v332, %v558
        %v560 = vpop.f32.mrf.mxu0
        %v561 = vadd.f32 %v336, %v560
        %v562 = vpop.f32.mrf.mxu0
        %v563 = vadd.f32 %v332, %v562
        %v564 = vpop.f32.mrf.mxu0
        %v565 = vadd.f32 %v336, %v564
        %566 = vmatprep.mubr.bf16.mxu0 0
        %567 = vmatmul.mubr.bf16.gmra.mxu0 %v389
        %v568 = vpop.f32.mrf.mxu0
        %v569 = vadd.f32 %v332, %v568
        %v570 = vpop.f32.mrf.mxu0
        %v571 = vadd.f32 %v336, %v570
        %v572 = vpop.f32.mrf.mxu0
        %v573 = vadd.f32 %v332, %v572
        %v574 = vpop.f32.mrf.mxu0
        %v575 = vadd.f32 %v336, %v574
        %576 = vmatprep.mubr.bf16.mxu0 0
        %577 = vmatmul.mubr.bf16.gmra.mxu0 %v392
        %v578 = vpop.f32.mrf.mxu0
        %v579 = vadd.f32 %v332, %v578
        %v580 = vpop.f32.mrf.mxu0
        %v581 = vadd.f32 %v336, %v580
        %v582 = vpop.f32.mrf.mxu0
        %v583 = vadd.f32 %v332, %v582
        %v584 = vpop.f32.mrf.mxu0
        %v585 = vadd.f32 %v336, %v584
        %586 = vmatprep.mubr.bf16.mxu0 0
        %587 = vmatmul.mubr.bf16.gmra.mxu0 %v395
        %v588 = vpop.f32.mrf.mxu0
        %v589 = vadd.f32 %v332, %v588
        %v590 = vpop.f32.mrf.mxu0
        %v591 = vadd.f32 %v336, %v590
        %v592 = vpop.f32.mrf.mxu0
        %v593 = vadd.f32 %v332, %v592
        %v594 = vpop.f32.mrf.mxu0
        %v595 = vadd.f32 %v336, %v594
        %596 = vdwg.mxu0
        %v597 = vmax.f32 %v439, 0.0
        %v598 = vmax.f32 %v441, 0.0
        %v599 = vmax.f32 %v443, 0.0
        %v600 = vmax.f32 %v445, 0.0
        %v601 = vmax.f32 %v449, 0.0
        %v602 = vmax.f32 %v451, 0.0
        %v603 = vmax.f32 %v453, 0.0
        %v604 = vmax.f32 %v455, 0.0
        %v605 = vmax.f32 %v459, 0.0
        %v606 = vmax.f32 %v461, 0.0
        %v607 = vmax.f32 %v463, 0.0
        %v608 = vmax.f32 %v465, 0.0
        %v609 = vmax.f32 %v469, 0.0
        %v610 = vmax.f32 %v471, 0.0
        %v611 = vmax.f32 %v473, 0.0
        %v612 = vmax.f32 %v475, 0.0
        %v613 = vmax.f32 %v479, 0.0
        %v614 = vmax.f32 %v481, 0.0
        %v615 = vmax.f32 %v483, 0.0
        %v616 = vmax.f32 %v485, 0.0
        %v617 = vmax.f32 %v489, 0.0
        %v618 = vmax.f32 %v491, 0.0
        %v619 = vmax.f32 %v493, 0.0
        %v620 = vmax.f32 %v495, 0.0
        %v621 = vmax.f32 %v499, 0.0
        %v622 = vmax.f32 %v501, 0.0
        %v623 = vmax.f32 %v503, 0.0
        %v624 = vmax.f32 %v505, 0.0
        %v625 = vmax.f32 %v509, 0.0
        %v626 = vmax.f32 %v511, 0.0
        %v627 = vmax.f32 %v513, 0.0
        %v628 = vmax.f32 %v515, 0.0
        %v629 = vmax.f32 %v519, 0.0
        %v630 = vmax.f32 %v521, 0.0
        %v631 = vmax.f32 %v523, 0.0
        %v632 = vmax.f32 %v525, 0.0
        %v633 = vmax.f32 %v529, 0.0
        %v634 = vmax.f32 %v531, 0.0
        %v635 = vmax.f32 %v533, 0.0
        %v636 = vmax.f32 %v535, 0.0
        %v637 = vmax.f32 %v539, 0.0
        %v638 = vmax.f32 %v541, 0.0
        %v639 = vmax.f32 %v543, 0.0
        %v640 = vmax.f32 %v545, 0.0
        %v641 = vmax.f32 %v549, 0.0
        %v642 = vmax.f32 %v551, 0.0
        %v643 = vmax.f32 %v553, 0.0
        %v644 = vmax.f32 %v555, 0.0
        %v645 = vmax.f32 %v559, 0.0
        %v646 = vmax.f32 %v561, 0.0
        %v647 = vmax.f32 %v563, 0.0
        %v648 = vmax.f32 %v565, 0.0
        %v649 = vmax.f32 %v569, 0.0
        %v650 = vmax.f32 %v571, 0.0
        %v651 = vmax.f32 %v573, 0.0
        %v652 = vmax.f32 %v575, 0.0
        %v653 = vmax.f32 %v579, 0.0
        %v654 = vmax.f32 %v581, 0.0
        %v655 = vmax.f32 %v583, 0.0
        %v656 = vmax.f32 %v585, 0.0
        %v657 = vmax.f32 %v589, 0.0
        %v658 = vmax.f32 %v591, 0.0
        %v659 = vmax.f32 %v593, 0.0
        %v660 = vmax.f32 %v595, 0.0
        %661 = vst [vmem:[#allocation2] sm:$0xf] 0
        %662 = vst [vmem:[#allocation2 + $0x4] sm:$0xf] 0
        %663 = vst [vmem:[#allocation2 + $0x8] sm:$0x1] 0
        %s664 = scalar_lea.vmem [#allocation2], 204
        %665 = vst [vmem:[%s664] sm:$0xf] 0
        %666 = vst [vmem:[%s664 + $0x4] sm:$0xf] 0
        %667 = vst [vmem:[%s664 + $0x8] sm:$0x1] 0
        %vm668 = vcmask 1040384
        %vm669 = vsmask.f32 256
        %vm670 = vmand %vm668, %vm669
        %v671 = vld [vmem:[#allocation2] sm:$0x1]
        %v672 = vsel %vm670, 0, %v671
        %673 = vst [vmem:[#allocation2] sm:$0x1] %v672
        %v674 = vld [vmem:[#allocation2 + $0xc] sm:$0x1]
        %v675 = vsel %vm670, 0, %v674
        %676 = vst [vmem:[#allocation2 + $0xc] sm:$0x1] %v675
        %v677 = vld [vmem:[#allocation2 + $0x18] sm:$0x1]
        %v678 = vsel %vm670, 0, %v677
        %679 = vst [vmem:[#allocation2 + $0x18] sm:$0x1] %v678
        %v680 = vld [vmem:[#allocation2 + $0x24] sm:$0x1]
        %v681 = vsel %vm670, 0, %v680
        %682 = vst [vmem:[#allocation2 + $0x24] sm:$0x1] %v681
        %v683 = vld [vmem:[#allocation2 + $0x30] sm:$0x1]
        %v684 = vsel %vm670, 0, %v683
        %685 = vst [vmem:[#allocation2 + $0x30] sm:$0x1] %v684
        %v686 = vld [vmem:[#allocation2 + $0x3c] sm:$0x1]
        %v687 = vsel %vm670, 0, %v686
        %688 = vst [vmem:[#allocation2 + $0x3c] sm:$0x1] %v687
        %v689 = vld [vmem:[#allocation2 + $0x48] sm:$0x1]
        %v690 = vsel %vm670, 0, %v689
        %691 = vst [vmem:[#allocation2 + $0x48] sm:$0x1] %v690
        %v692 = vld [vmem:[#allocation2 + $0x54] sm:$0x1]
        %v693 = vsel %vm670, 0, %v692
        %694 = vst [vmem:[#allocation2 + $0x54] sm:$0x1] %v693
        %v695 = vld [vmem:[#allocation2 + $0x60] sm:$0x1]
        %v696 = vsel %vm670, 0, %v695
        %697 = vst [vmem:[#allocation2 + $0x60] sm:$0x1] %v696
        %v698 = vld [vmem:[#allocation2 + $0x6c] sm:$0x1]
        %v699 = vsel %vm670, 0, %v698
        %700 = vst [vmem:[#allocation2 + $0x6c] sm:$0x1] %v699
        %v701 = vld [vmem:[#allocation2 + $0x78] sm:$0x1]
        %v702 = vsel %vm670, 0, %v701
        %703 = vst [vmem:[#allocation2 + $0x78] sm:$0x1] %v702
        %v704 = vld [vmem:[#allocation2 + $0x84] sm:$0x1]
        %v705 = vsel %vm670, 0, %v704
        %706 = vst [vmem:[#allocation2 + $0x84] sm:$0x1] %v705
        %v707 = vld [vmem:[#allocation2 + $0x90] sm:$0x1]
        %v708 = vsel %vm670, 0, %v707
        %709 = vst [vmem:[#allocation2 + $0x90] sm:$0x1] %v708
        %v710 = vld [vmem:[#allocation2 + $0x9c] sm:$0x1]
        %v711 = vsel %vm670, 0, %v710
        %712 = vst [vmem:[#allocation2 + $0x9c] sm:$0x1] %v711
        %v713 = vld [vmem:[#allocation2 + $0xa8] sm:$0x1]
        %v714 = vsel %vm670, 0, %v713
        %715 = vst [vmem:[#allocation2 + $0xa8] sm:$0x1] %v714
        %v716 = vld [vmem:[#allocation2 + $0xb4] sm:$0x1]
        %v717 = vsel %vm670, 0, %v716
        %718 = vst [vmem:[#allocation2 + $0xb4] sm:$0x1] %v717
        %v719 = vld [vmem:[#allocation2 + $0xc0] sm:$0x1]
        %v720 = vsel %vm670, 0, %v719
        %721 = vst [vmem:[#allocation2 + $0xc0] sm:$0x1] %v720
        %v722 = vld [vmem:[#allocation2 + $0xcc] sm:$0x1]
        %v723 = vsel %vm670, 0, %v722
        %724 = vst [vmem:[#allocation2 + $0xcc] sm:$0x1] %v723
        %vm725 = vsmask.f32 7938
        %vm726 = vmand %vm668, %vm725
        %v727 = vld [vmem:[#allocation2 + $0x8] sm:$0x1]
        %v728 = vsel %vm726, 0, %v727
        %729 = vst [vmem:[#allocation2 + $0x8] sm:$0x1] %v728
        %v730 = vld [vmem:[#allocation2 + $0x14] sm:$0x1]
        %v731 = vsel %vm726, 0, %v730
        %732 = vst [vmem:[#allocation2 + $0x14] sm:$0x1] %v731
        %v733 = vld [vmem:[#allocation2 + $0x20] sm:$0x1]
        %v734 = vsel %vm726, 0, %v733
        %735 = vst [vmem:[#allocation2 + $0x20] sm:$0x1] %v734
        %v736 = vld [vmem:[#allocation2 + $0x2c] sm:$0x1]
        %v737 = vsel %vm726, 0, %v736
        %738 = vst [vmem:[#allocation2 + $0x2c] sm:$0x1] %v737
        %v739 = vld [vmem:[#allocation2 + $0x38] sm:$0x1]
        %v740 = vsel %vm726, 0, %v739
        %741 = vst [vmem:[#allocation2 + $0x38] sm:$0x1] %v740
        %v742 = vld [vmem:[#allocation2 + $0x44] sm:$0x1]
        %v743 = vsel %vm726, 0, %v742
        %744 = vst [vmem:[#allocation2 + $0x44] sm:$0x1] %v743
        %v745 = vld [vmem:[#allocation2 + $0x50] sm:$0x1]
        %v746 = vsel %vm726, 0, %v745
        %747 = vst [vmem:[#allocation2 + $0x50] sm:$0x1] %v746
        %v748 = vld [vmem:[#allocation2 + $0x5c] sm:$0x1]
        %v749 = vsel %vm726, 0, %v748
        %750 = vst [vmem:[#allocation2 + $0x5c] sm:$0x1] %v749
        %v751 = vld [vmem:[#allocation2 + $0x68] sm:$0x1]
        %v752 = vsel %vm726, 0, %v751
        %753 = vst [vmem:[#allocation2 + $0x68] sm:$0x1] %v752
        %v754 = vld [vmem:[#allocation2 + $0x74] sm:$0x1]
        %v755 = vsel %vm726, 0, %v754
        %756 = vst [vmem:[#allocation2 + $0x74] sm:$0x1] %v755
        %v757 = vld [vmem:[#allocation2 + $0x80] sm:$0x1]
        %v758 = vsel %vm726, 0, %v757
        %759 = vst [vmem:[#allocation2 + $0x80] sm:$0x1] %v758
        %v760 = vld [vmem:[#allocation2 + $0x8c] sm:$0x1]
        %v761 = vsel %vm726, 0, %v760
        %762 = vst [vmem:[#allocation2 + $0x8c] sm:$0x1] %v761
        %v763 = vld [vmem:[#allocation2 + $0x98] sm:$0x1]
        %v764 = vsel %vm726, 0, %v763
        %765 = vst [vmem:[#allocation2 + $0x98] sm:$0x1] %v764
        %v766 = vld [vmem:[#allocation2 + $0xa4] sm:$0x1]
        %v767 = vsel %vm726, 0, %v766
        %768 = vst [vmem:[#allocation2 + $0xa4] sm:$0x1] %v767
        %v769 = vld [vmem:[#allocation2 + $0xb0] sm:$0x1]
        %v770 = vsel %vm726, 0, %v769
        %771 = vst [vmem:[#allocation2 + $0xb0] sm:$0x1] %v770
        %v772 = vld [vmem:[#allocation2 + $0xbc] sm:$0x1]
        %v773 = vsel %vm726, 0, %v772
        %774 = vst [vmem:[#allocation2 + $0xbc] sm:$0x1] %v773
        %v775 = vld [vmem:[#allocation2 + $0xc8] sm:$0x1]
        %v776 = vsel %vm726, 0, %v775
        %777 = vst [vmem:[#allocation2 + $0xc8] sm:$0x1] %v776
        %v778 = vld [vmem:[#allocation2 + $0xd4] sm:$0x1]
        %v779 = vsel %vm726, 0, %v778
        %780 = vst [vmem:[#allocation2 + $0xd4] sm:$0x1] %v779
        %v781 = vpack.c.bf16 %v600, %v598
        %v782 = vpack.c.bf16 %v604, %v602
        %v783 = vpack.c.bf16 %v608, %v606
        %v784 = vpack.c.bf16 %v612, %v610
        %v785 = vpack.c.bf16 %v616, %v614
        %v786 = vpack.c.bf16 %v620, %v618
        %v787 = vpack.c.bf16 %v624, %v622
        %v788 = vpack.c.bf16 %v628, %v626
        %v789 = vpack.c.bf16 %v632, %v630
        %v790 = vpack.c.bf16 %v636, %v634
        %v791 = vpack.c.bf16 %v640, %v638
        %v792 = vpack.c.bf16 %v644, %v642
        %v793 = vpack.c.bf16 %v648, %v646
        %v794 = vpack.c.bf16 %v652, %v650
        %v795 = vpack.c.bf16 %v656, %v654
        %v796 = vpack.c.bf16 %v660, %v658
        %v813 = vunpack.c.l.b16 %v781
        %v814 = vunpack.c.h.b16 %v781
        %v815 = vunpack.c.l.b16 %v782
        %v816 = vunpack.c.h.b16 %v782
        %v817 = vunpack.c.l.b16 %v783
        %v818 = vunpack.c.h.b16 %v783
        %v819 = vunpack.c.l.b16 %v784
        %v820 = vunpack.c.h.b16 %v784
        %v821 = vunpack.c.l.b16 %v785
        %v822 = vunpack.c.h.b16 %v785
        %v823 = vunpack.c.l.b16 %v786
        %v824 = vunpack.c.h.b16 %v786
        %v825 = vunpack.c.l.b16 %v787
        %v826 = vunpack.c.h.b16 %v787
        %v827 = vunpack.c.l.b16 %v788
        %v828 = vunpack.c.h.b16 %v788
        %v829 = vunpack.c.l.b16 %v789
        %v830 = vunpack.c.h.b16 %v789
        %v831 = vunpack.c.l.b16 %v790
        %v832 = vunpack.c.h.b16 %v790
        %v833 = vunpack.c.l.b16 %v791
        %v834 = vunpack.c.h.b16 %v791
        %v835 = vunpack.c.l.b16 %v792
        %v836 = vunpack.c.h.b16 %v792
        %v837 = vunpack.c.l.b16 %v793
        %v838 = vunpack.c.h.b16 %v793
        %v839 = vunpack.c.l.b16 %v794
        %v840 = vunpack.c.h.b16 %v794
        %v841 = vunpack.c.l.b16 %v795
        %v842 = vunpack.c.h.b16 %v795
        %v843 = vunpack.c.l.b16 %v796
        %v844 = vunpack.c.h.b16 %v796
        %v845 = vpack.c.b16 %v813, %v813
        %v846 = vpack.c.b16 %v814, %v814
        %v847 = vpack.c.b16 %v815, %v815
        %v848 = vpack.c.b16 %v816, %v816
        %v849 = vpack.c.b16 %v817, %v817
        %v850 = vpack.c.b16 %v818, %v818
        %v851 = vpack.c.b16 %v819, %v819
        %v852 = vpack.c.b16 %v820, %v820
        %v853 = vpack.c.b16 %v821, %v821
        %v854 = vpack.c.b16 %v822, %v822
        %v855 = vpack.c.b16 %v823, %v823
        %v856 = vpack.c.b16 %v824, %v824
        %v857 = vpack.c.b16 %v825, %v825
        %v858 = vpack.c.b16 %v826, %v826
        %v859 = vpack.c.b16 %v827, %v827
        %v860 = vpack.c.b16 %v828, %v828
        %v861 = vpack.c.b16 %v829, %v829
        %v862 = vpack.c.b16 %v830, %v830
        %v863 = vpack.c.b16 %v831, %v831
        %v864 = vpack.c.b16 %v832, %v832
        %v865 = vpack.c.b16 %v833, %v833
        %v866 = vpack.c.b16 %v834, %v834
        %v867 = vpack.c.b16 %v835, %v835
        %v868 = vpack.c.b16 %v836, %v836
        %v869 = vpack.c.b16 %v837, %v837
        %v870 = vpack.c.b16 %v838, %v838
        %v871 = vpack.c.b16 %v839, %v839
        %v872 = vpack.c.b16 %v840, %v840
        %v873 = vpack.c.b16 %v841, %v841
        %v874 = vpack.c.b16 %v842, %v842
        %v875 = vpack.c.b16 %v843, %v843
        %v876 = vpack.c.b16 %v844, %v844
        %vm877 = vsmask.f32 4368
        %vm878 = vmor %vm669, %vm877
        %v880 = vshrl.u32 %v845, 16
        %v882 = vrot.slane %v880, 7
        %v883 = vshll.u32 %v845, 16
        %v885 = vor.u32 %v882, %v883
        %v886 = vrot.slane %v882, 4
        %v888 = vshrl.u32 %v846, 16
        %v890 = vrot.slane %v888, 7
        %v891 = vshll.u32 %v846, 16
        %v893 = vor.u32 %v890, %v891
        %v894 = vsel %vm878, %v886, %v893
        %v895 = vrot.slane %v890, 4
        %v897 = vshrl.u32 %v847, 16
        %v899 = vrot.slane %v897, 7
        %v900 = vshll.u32 %v847, 16
        %v902 = vor.u32 %v899, %v900
        %v903 = vrot.slane %v899, 4
        %v905 = vshrl.u32 %v848, 16
        %v907 = vrot.slane %v905, 7
        %v908 = vshll.u32 %v848, 16
        %v910 = vor.u32 %v907, %v908
        %v911 = vsel %vm878, %v903, %v910
        %v912 = vrot.slane %v907, 4
        %v914 = vshrl.u32 %v849, 16
        %v916 = vrot.slane %v914, 7
        %v917 = vshll.u32 %v849, 16
        %v919 = vor.u32 %v916, %v917
        %v920 = vrot.slane %v916, 4
        %v922 = vshrl.u32 %v850, 16
        %v924 = vrot.slane %v922, 7
        %v925 = vshll.u32 %v850, 16
        %v927 = vor.u32 %v924, %v925
        %v928 = vsel %vm878, %v920, %v927
        %v929 = vrot.slane %v924, 4
        %v931 = vshrl.u32 %v851, 16
        %v933 = vrot.slane %v931, 7
        %v934 = vshll.u32 %v851, 16
        %v936 = vor.u32 %v933, %v934
        %v937 = vrot.slane %v933, 4
        %v939 = vshrl.u32 %v852, 16
        %v941 = vrot.slane %v939, 7
        %v942 = vshll.u32 %v852, 16
        %v944 = vor.u32 %v941, %v942
        %v945 = vsel %vm878, %v937, %v944
        %v946 = vrot.slane %v941, 4
        %v948 = vshrl.u32 %v853, 16
        %v950 = vrot.slane %v948, 7
        %v951 = vshll.u32 %v853, 16
        %v953 = vor.u32 %v950, %v951
        %v954 = vrot.slane %v950, 4
        %v956 = vshrl.u32 %v854, 16
        %v958 = vrot.slane %v956, 7
        %v959 = vshll.u32 %v854, 16
        %v961 = vor.u32 %v958, %v959
        %v962 = vsel %vm878, %v954, %v961
        %v963 = vrot.slane %v958, 4
        %v965 = vshrl.u32 %v855, 16
        %v967 = vrot.slane %v965, 7
        %v968 = vshll.u32 %v855, 16
        %v970 = vor.u32 %v967, %v968
        %v971 = vrot.slane %v967, 4
        %v973 = vshrl.u32 %v856, 16
        %v975 = vrot.slane %v973, 7
        %v976 = vshll.u32 %v856, 16
        %v978 = vor.u32 %v975, %v976
        %v979 = vsel %vm878, %v971, %v978
        %v980 = vrot.slane %v975, 4
        %v982 = vshrl.u32 %v857, 16
        %v984 = vrot.slane %v982, 7
        %v985 = vshll.u32 %v857, 16
        %v987 = vor.u32 %v984, %v985
        %v988 = vrot.slane %v984, 4
        %v990 = vshrl.u32 %v858, 16
        %v992 = vrot.slane %v990, 7
        %v993 = vshll.u32 %v858, 16
        %v995 = vor.u32 %v992, %v993
        %v996 = vsel %vm878, %v988, %v995
        %v997 = vrot.slane %v992, 4
        %v999 = vshrl.u32 %v859, 16
        %v1001 = vrot.slane %v999, 7
        %v1002 = vshll.u32 %v859, 16
        %v1004 = vor.u32 %v1001, %v1002
        %v1005 = vrot.slane %v1001, 4
        %v1007 = vshrl.u32 %v860, 16
        %v1009 = vrot.slane %v1007, 7
        %v1010 = vshll.u32 %v860, 16
        %v1012 = vor.u32 %v1009, %v1010
        %v1013 = vsel %vm878, %v1005, %v1012
        %v1014 = vrot.slane %v1009, 4
        %v1016 = vshrl.u32 %v861, 16
        %v1018 = vrot.slane %v1016, 7
        %v1019 = vshll.u32 %v861, 16
        %v1021 = vor.u32 %v1018, %v1019
        %v1022 = vrot.slane %v1018, 4
        %v1024 = vshrl.u32 %v862, 16
        %v1026 = vrot.slane %v1024, 7
        %v1027 = vshll.u32 %v862, 16
        %v1029 = vor.u32 %v1026, %v1027
        %v1030 = vsel %vm878, %v1022, %v1029
        %v1031 = vrot.slane %v1026, 4
        %v1033 = vshrl.u32 %v863, 16
        %v1035 = vrot.slane %v1033, 7
        %v1036 = vshll.u32 %v863, 16
        %v1038 = vor.u32 %v1035, %v1036
        %v1039 = vrot.slane %v1035, 4
        %v1041 = vshrl.u32 %v864, 16
        %v1043 = vrot.slane %v1041, 7
        %v1044 = vshll.u32 %v864, 16
        %v1046 = vor.u32 %v1043, %v1044
        %v1047 = vsel %vm878, %v1039, %v1046
        %v1048 = vrot.slane %v1043, 4
        %v1050 = vshrl.u32 %v865, 16
        %v1052 = vrot.slane %v1050, 7
        %v1053 = vshll.u32 %v865, 16
        %v1055 = vor.u32 %v1052, %v1053
        %v1056 = vrot.slane %v1052, 4
        %v1058 = vshrl.u32 %v866, 16
        %v1060 = vrot.slane %v1058, 7
        %v1061 = vshll.u32 %v866, 16
        %v1063 = vor.u32 %v1060, %v1061
        %v1064 = vsel %vm878, %v1056, %v1063
        %v1065 = vrot.slane %v1060, 4
        %v1067 = vshrl.u32 %v867, 16
        %v1069 = vrot.slane %v1067, 7
        %v1070 = vshll.u32 %v867, 16
        %v1072 = vor.u32 %v1069, %v1070
        %v1073 = vrot.slane %v1069, 4
        %v1075 = vshrl.u32 %v868, 16
        %v1077 = vrot.slane %v1075, 7
        %v1078 = vshll.u32 %v868, 16
        %v1080 = vor.u32 %v1077, %v1078
        %v1081 = vsel %vm878, %v1073, %v1080
        %v1082 = vrot.slane %v1077, 4
        %v1084 = vshrl.u32 %v869, 16
        %v1086 = vrot.slane %v1084, 7
        %v1087 = vshll.u32 %v869, 16
        %v1089 = vor.u32 %v1086, %v1087
        %v1090 = vrot.slane %v1086, 4
        %v1092 = vshrl.u32 %v870, 16
        %v1094 = vrot.slane %v1092, 7
        %v1095 = vshll.u32 %v870, 16
        %v1097 = vor.u32 %v1094, %v1095
        %v1098 = vsel %vm878, %v1090, %v1097
        %v1099 = vrot.slane %v1094, 4
        %v1101 = vshrl.u32 %v871, 16
        %v1103 = vrot.slane %v1101, 7
        %v1104 = vshll.u32 %v871, 16
        %v1106 = vor.u32 %v1103, %v1104
        %v1107 = vrot.slane %v1103, 4
        %v1109 = vshrl.u32 %v872, 16
        %v1111 = vrot.slane %v1109, 7
        %v1112 = vshll.u32 %v872, 16
        %v1114 = vor.u32 %v1111, %v1112
        %v1115 = vsel %vm878, %v1107, %v1114
        %v1116 = vrot.slane %v1111, 4
        %v1118 = vshrl.u32 %v873, 16
        %v1120 = vrot.slane %v1118, 7
        %v1121 = vshll.u32 %v873, 16
        %v1123 = vor.u32 %v1120, %v1121
        %v1124 = vrot.slane %v1120, 4
        %v1126 = vshrl.u32 %v874, 16
        %v1128 = vrot.slane %v1126, 7
        %v1129 = vshll.u32 %v874, 16
        %v1131 = vor.u32 %v1128, %v1129
        %v1132 = vsel %vm878, %v1124, %v1131
        %v1133 = vrot.slane %v1128, 4
        %v1135 = vshrl.u32 %v875, 16
        %v1137 = vrot.slane %v1135, 7
        %v1138 = vshll.u32 %v875, 16
        %v1140 = vor.u32 %v1137, %v1138
        %v1141 = vrot.slane %v1137, 4
        %v1143 = vshrl.u32 %v876, 16
        %v1145 = vrot.slane %v1143, 7
        %v1146 = vshll.u32 %v876, 16
        %v1148 = vor.u32 %v1145, %v1146
        %v1149 = vsel %vm878, %v1141, %v1148
        %v1150 = vrot.slane %v1145, 4
        %s1199 = scalar_lea.vmem [#allocation2], 12
        %vm1200 = vcmask 1043456
        %vm1201 = vmand %vm1200, %vm725
        %v1202 = vld [vmem:[%s1199] sm:$0xf]
        %v1203 = vsel %vm1201, %v885, %v1202
        %1204 = vst [vmem:[%s1199] sm:$0xf] %v1203
        %1205 = vst [vmem:[%s1199 + $0x4] sm:$0xf] %v894
        %v1206 = vld [vmem:[%s1199 + $0x8] sm:$0x1]
        %v1207 = vsel %vm670, %v895, %v1206
        %1208 = vst [vmem:[%s1199 + $0x8] sm:$0x1] %v1207
        %v1209 = vld [vmem:[%s1199 + $0xc] sm:$0xf]
        %v1210 = vsel %vm1201, %v902, %v1209
        %1211 = vst [vmem:[%s1199 + $0xc] sm:$0xf] %v1210
        %1212 = vst [vmem:[%s1199 + $0x10] sm:$0xf] %v911
        %v1213 = vld [vmem:[%s1199 + $0x14] sm:$0x1]
        %v1214 = vsel %vm670, %v912, %v1213
        %1215 = vst [vmem:[%s1199 + $0x14] sm:$0x1] %v1214
        %v1216 = vld [vmem:[%s1199 + $0x18] sm:$0xf]
        %v1217 = vsel %vm1201, %v919, %v1216
        %1218 = vst [vmem:[%s1199 + $0x18] sm:$0xf] %v1217
        %1219 = vst [vmem:[%s1199 + $0x1c] sm:$0xf] %v928
        %v1220 = vld [vmem:[%s1199 + $0x20] sm:$0x1]
        %v1221 = vsel %vm670, %v929, %v1220
        %1222 = vst [vmem:[%s1199 + $0x20] sm:$0x1] %v1221
        %v1223 = vld [vmem:[%s1199 + $0x24] sm:$0xf]
        %v1224 = vsel %vm1201, %v936, %v1223
        %1225 = vst [vmem:[%s1199 + $0x24] sm:$0xf] %v1224
        %1226 = vst [vmem:[%s1199 + $0x28] sm:$0xf] %v945
        %v1227 = vld [vmem:[%s1199 + $0x2c] sm:$0x1]
        %v1228 = vsel %vm670, %v946, %v1227
        %1229 = vst [vmem:[%s1199 + $0x2c] sm:$0x1] %v1228
        %v1230 = vld [vmem:[%s1199 + $0x30] sm:$0xf]
        %v1231 = vsel %vm1201, %v953, %v1230
        %1232 = vst [vmem:[%s1199 + $0x30] sm:$0xf] %v1231
        %1233 = vst [vmem:[%s1199 + $0x34] sm:$0xf] %v962
        %v1234 = vld [vmem:[%s1199 + $0x38] sm:$0x1]
        %v1235 = vsel %vm670, %v963, %v1234
        %1236 = vst [vmem:[%s1199 + $0x38] sm:$0x1] %v1235
        %v1237 = vld [vmem:[%s1199 + $0x3c] sm:$0xf]
        %v1238 = vsel %vm1201, %v970, %v1237
        %1239 = vst [vmem:[%s1199 + $0x3c] sm:$0xf] %v1238
        %1240 = vst [vmem:[%s1199 + $0x40] sm:$0xf] %v979
        %v1241 = vld [vmem:[%s1199 + $0x44] sm:$0x1]
        %v1242 = vsel %vm670, %v980, %v1241
        %1243 = vst [vmem:[%s1199 + $0x44] sm:$0x1] %v1242
        %v1244 = vld [vmem:[%s1199 + $0x48] sm:$0xf]
        %v1245 = vsel %vm1201, %v987, %v1244
        %1246 = vst [vmem:[%s1199 + $0x48] sm:$0xf] %v1245
        %1247 = vst [vmem:[%s1199 + $0x4c] sm:$0xf] %v996
        %v1248 = vld [vmem:[%s1199 + $0x50] sm:$0x1]
        %v1249 = vsel %vm670, %v997, %v1248
        %1250 = vst [vmem:[%s1199 + $0x50] sm:$0x1] %v1249
        %v1251 = vld [vmem:[%s1199 + $0x54] sm:$0xf]
        %v1252 = vsel %vm1201, %v1004, %v1251
        %1253 = vst [vmem:[%s1199 + $0x54] sm:$0xf] %v1252
        %1254 = vst [vmem:[%s1199 + $0x58] sm:$0xf] %v1013
        %v1255 = vld [vmem:[%s1199 + $0x5c] sm:$0x1]
        %v1256 = vsel %vm670, %v1014, %v1255
        %1257 = vst [vmem:[%s1199 + $0x5c] sm:$0x1] %v1256
        %v1258 = vld [vmem:[%s1199 + $0x60] sm:$0xf]
        %v1259 = vsel %vm1201, %v1021, %v1258
        %1260 = vst [vmem:[%s1199 + $0x60] sm:$0xf] %v1259
        %1261 = vst [vmem:[%s1199 + $0x64] sm:$0xf] %v1030
        %v1262 = vld [vmem:[%s1199 + $0x68] sm:$0x1]
        %v1263 = vsel %vm670, %v1031, %v1262
        %1264 = vst [vmem:[%s1199 + $0x68] sm:$0x1] %v1263
        %v1265 = vld [vmem:[%s1199 + $0x6c] sm:$0xf]
        %v1266 = vsel %vm1201, %v1038, %v1265
        %1267 = vst [vmem:[%s1199 + $0x6c] sm:$0xf] %v1266
        %1268 = vst [vmem:[%s1199 + $0x70] sm:$0xf] %v1047
        %v1269 = vld [vmem:[%s1199 + $0x74] sm:$0x1]
        %v1270 = vsel %vm670, %v1048, %v1269
        %1271 = vst [vmem:[%s1199 + $0x74] sm:$0x1] %v1270
        %v1272 = vld [vmem:[%s1199 + $0x78] sm:$0xf]
        %v1273 = vsel %vm1201, %v1055, %v1272
        %1274 = vst [vmem:[%s1199 + $0x78] sm:$0xf] %v1273
        %1275 = vst [vmem:[%s1199 + $0x7c] sm:$0xf] %v1064
        %v1276 = vld [vmem:[%s1199 + $0x80] sm:$0x1]
        %v1277 = vsel %vm670, %v1065, %v1276
        %1278 = vst [vmem:[%s1199 + $0x80] sm:$0x1] %v1277
        %v1279 = vld [vmem:[%s1199 + $0x84] sm:$0xf]
        %v1280 = vsel %vm1201, %v1072, %v1279
        %1281 = vst [vmem:[%s1199 + $0x84] sm:$0xf] %v1280
        %1282 = vst [vmem:[%s1199 + $0x88] sm:$0xf] %v1081
        %v1283 = vld [vmem:[%s1199 + $0x8c] sm:$0x1]
        %v1284 = vsel %vm670, %v1082, %v1283
        %1285 = vst [vmem:[%s1199 + $0x8c] sm:$0x1] %v1284
        %v1286 = vld [vmem:[%s1199 + $0x90] sm:$0xf]
        %v1287 = vsel %vm1201, %v1089, %v1286
        %1288 = vst [vmem:[%s1199 + $0x90] sm:$0xf] %v1287
        %1289 = vst [vmem:[%s1199 + $0x94] sm:$0xf] %v1098
        %v1290 = vld [vmem:[%s1199 + $0x98] sm:$0x1]
        %v1291 = vsel %vm670, %v1099, %v1290
        %1292 = vst [vmem:[%s1199 + $0x98] sm:$0x1] %v1291
        %v1293 = vld [vmem:[%s1199 + $0x9c] sm:$0xf]
        %v1294 = vsel %vm1201, %v1106, %v1293
        %1295 = vst [vmem:[%s1199 + $0x9c] sm:$0xf] %v1294
        %1296 = vst [vmem:[%s1199 + $0xa0] sm:$0xf] %v1115
        %v1297 = vld [vmem:[%s1199 + $0xa4] sm:$0x1]
        %v1298 = vsel %vm670, %v1116, %v1297
        %1299 = vst [vmem:[%s1199 + $0xa4] sm:$0x1] %v1298
        %v1300 = vld [vmem:[%s1199 + $0xa8] sm:$0xf]
        %v1301 = vsel %vm1201, %v1123, %v1300
        %1302 = vst [vmem:[%s1199 + $0xa8] sm:$0xf] %v1301
        %1303 = vst [vmem:[%s1199 + $0xac] sm:$0xf] %v1132
        %v1304 = vld [vmem:[%s1199 + $0xb0] sm:$0x1]
        %v1305 = vsel %vm670, %v1133, %v1304
        %1306 = vst [vmem:[%s1199 + $0xb0] sm:$0x1] %v1305
        %v1307 = vld [vmem:[%s1199 + $0xb4] sm:$0xf]
        %v1308 = vsel %vm1201, %v1140, %v1307
        %1309 = vst [vmem:[%s1199 + $0xb4] sm:$0xf] %v1308
        %1310 = vst [vmem:[%s1199 + $0xb8] sm:$0xf] %v1149
        %v1311 = vld [vmem:[%s1199 + $0xbc] sm:$0x1]
        %v1312 = vsel %vm670, %v1150, %v1311
        %1313 = vst [vmem:[%s1199 + $0xbc] sm:$0x1] %v1312
        %v1314 = vld [vmem:[#allocation2] sm:$0xf]
        %v1315 = vld [vmem:[#allocation2 + $0x4] sm:$0xf]
        %v1316 = vld [vmem:[#allocation2 + $0xc] sm:$0xf]
        %v1317 = vld [vmem:[#allocation2 + $0x10] sm:$0xf]
        %v1318 = vld [vmem:[#allocation2 + $0x18] sm:$0xf]
        %v1319 = vld [vmem:[#allocation2 + $0x1c] sm:$0xf]
        %v1320 = vld [vmem:[#allocation2 + $0x24] sm:$0xf]
        %v1321 = vld [vmem:[#allocation2 + $0x28] sm:$0xf]
        %v1322 = vld [vmem:[#allocation2 + $0x30] sm:$0xf]
        %v1323 = vld [vmem:[#allocation2 + $0x34] sm:$0xf]
        %v1324 = vld [vmem:[#allocation2 + $0x3c] sm:$0xf]
        %v1325 = vld [vmem:[#allocation2 + $0x40] sm:$0xf]
        %v1326 = vld [vmem:[#allocation2 + $0x48] sm:$0xf]
        %v1327 = vld [vmem:[#allocation2 + $0x4c] sm:$0xf]
        %v1328 = vld [vmem:[#allocation2 + $0x54] sm:$0xf]
        %v1329 = vld [vmem:[#allocation2 + $0x58] sm:$0xf]
        %v1330 = vld [vmem:[#allocation2 + $0x60] sm:$0xf]
        %v1331 = vld [vmem:[#allocation2 + $0x64] sm:$0xf]
        %v1332 = vld [vmem:[#allocation2 + $0x6c] sm:$0xf]
        %v1333 = vld [vmem:[#allocation2 + $0x70] sm:$0xf]
        %v1334 = vld [vmem:[#allocation2 + $0x78] sm:$0xf]
        %v1335 = vld [vmem:[#allocation2 + $0x7c] sm:$0xf]
        %v1336 = vld [vmem:[#allocation2 + $0x84] sm:$0xf]
        %v1337 = vld [vmem:[#allocation2 + $0x88] sm:$0xf]
        %v1338 = vld [vmem:[#allocation2 + $0x90] sm:$0xf]
        %v1339 = vld [vmem:[#allocation2 + $0x94] sm:$0xf]
        %v1340 = vld [vmem:[#allocation2 + $0x9c] sm:$0xf]
        %v1341 = vld [vmem:[#allocation2 + $0xa0] sm:$0xf]
        %v1342 = vld [vmem:[#allocation2 + $0xa8] sm:$0xf]
        %v1343 = vld [vmem:[#allocation2 + $0xac] sm:$0xf]
        %v1344 = vld [vmem:[#allocation2 + $0xb4] sm:$0xf]
        %v1345 = vld [vmem:[#allocation2 + $0xb8] sm:$0xf]
        %v1346 = vld [vmem:[#allocation2 + $0x8] sm:$0x1]
        %v1347 = vld [vmem:[#allocation2 + $0x14] sm:$0x1]
        %v1348 = vld [vmem:[#allocation2 + $0x20] sm:$0x1]
        %v1349 = vld [vmem:[#allocation2 + $0x2c] sm:$0x1]
        %v1350 = vld [vmem:[#allocation2 + $0x38] sm:$0x1]
        %v1351 = vld [vmem:[#allocation2 + $0x44] sm:$0x1]
        %v1352 = vld [vmem:[#allocation2 + $0x50] sm:$0x1]
        %v1353 = vld [vmem:[#allocation2 + $0x5c] sm:$0x1]
        %v1354 = vld [vmem:[#allocation2 + $0x68] sm:$0x1]
        %v1355 = vld [vmem:[#allocation2 + $0x74] sm:$0x1]
        %v1356 = vld [vmem:[#allocation2 + $0x80] sm:$0x1]
        %v1357 = vld [vmem:[#allocation2 + $0x8c] sm:$0x1]
        %v1358 = vld [vmem:[#allocation2 + $0x98] sm:$0x1]
        %v1359 = vld [vmem:[#allocation2 + $0xa4] sm:$0x1]
        %v1360 = vld [vmem:[#allocation2 + $0xb0] sm:$0x1]
        %v1361 = vld [vmem:[#allocation2 + $0xbc] sm:$0x1]
        %vm1362 = vsmask.f32 3328
        %vm1363 = vsmask.f32 7440
        %vm1364 = vmor %vm1362, %vm1363
        %v1366 = vshrl.u32 %v1314, 16
        %v1368 = vrot.slane %v1366, 4
        %v1369 = vshll.u32 %v1314, 16
        %v1371 = vrot.slane %v1369, 5
        %v1372 = vor.u32 %v1368, %v1371
        %v1373 = vrot.slane %v1372, 4
        %v1375 = vshll.u32 %v1315, 16
        %v1377 = vrot.slane %v1375, 5
        %v1378 = vsel %vm1364, %v1373, %v1377
        %v1379 = vshrl.u32 %v1315, 16
        %v1381 = vrot.slane %v1379, 4
        %v1382 = vor.u32 %v1381, %v1377
        %v1383 = vrot.slane %v1382, 4
        %v1385 = vshll.u32 %v1346, 16
        %v1387 = vrot.slane %v1385, 5
        %v1388 = vsel %vm1364, %v1383, %v1387
        %v1390 = vshrl.u32 %v1316, 16
        %v1392 = vrot.slane %v1390, 4
        %v1393 = vshll.u32 %v1316, 16
        %v1395 = vrot.slane %v1393, 5
        %v1396 = vor.u32 %v1392, %v1395
        %v1397 = vrot.slane %v1396, 4
        %v1399 = vshll.u32 %v1317, 16
        %v1401 = vrot.slane %v1399, 5
        %v1402 = vsel %vm1364, %v1397, %v1401
        %v1403 = vshrl.u32 %v1317, 16
        %v1405 = vrot.slane %v1403, 4
        %v1406 = vor.u32 %v1405, %v1401
        %v1407 = vrot.slane %v1406, 4
        %v1409 = vshll.u32 %v1347, 16
        %v1411 = vrot.slane %v1409, 5
        %v1412 = vsel %vm1364, %v1407, %v1411
        %v1414 = vshrl.u32 %v1318, 16
        %v1416 = vrot.slane %v1414, 4
        %v1417 = vshll.u32 %v1318, 16
        %v1419 = vrot.slane %v1417, 5
        %v1420 = vor.u32 %v1416, %v1419
        %v1421 = vrot.slane %v1420, 4
        %v1423 = vshll.u32 %v1319, 16
        %v1425 = vrot.slane %v1423, 5
        %v1426 = vsel %vm1364, %v1421, %v1425
        %v1427 = vshrl.u32 %v1319, 16
        %v1429 = vrot.slane %v1427, 4
        %v1430 = vor.u32 %v1429, %v1425
        %v1431 = vrot.slane %v1430, 4
        %v1433 = vshll.u32 %v1348, 16
        %v1435 = vrot.slane %v1433, 5
        %v1436 = vsel %vm1364, %v1431, %v1435
        %v1438 = vshrl.u32 %v1320, 16
        %v1440 = vrot.slane %v1438, 4
        %v1441 = vshll.u32 %v1320, 16
        %v1443 = vrot.slane %v1441, 5
        %v1444 = vor.u32 %v1440, %v1443
        %v1445 = vrot.slane %v1444, 4
        %v1447 = vshll.u32 %v1321, 16
        %v1449 = vrot.slane %v1447, 5
        %v1450 = vsel %vm1364, %v1445, %v1449
        %v1451 = vshrl.u32 %v1321, 16
        %v1453 = vrot.slane %v1451, 4
        %v1454 = vor.u32 %v1453, %v1449
        %v1455 = vrot.slane %v1454, 4
        %v1457 = vshll.u32 %v1349, 16
        %v1459 = vrot.slane %v1457, 5
        %v1460 = vsel %vm1364, %v1455, %v1459
        %v1462 = vshrl.u32 %v1322, 16
        %v1464 = vrot.slane %v1462, 4
        %v1465 = vshll.u32 %v1322, 16
        %v1467 = vrot.slane %v1465, 5
        %v1468 = vor.u32 %v1464, %v1467
        %v1469 = vrot.slane %v1468, 4
        %v1471 = vshll.u32 %v1323, 16
        %v1473 = vrot.slane %v1471, 5
        %v1474 = vsel %vm1364, %v1469, %v1473
        %v1475 = vshrl.u32 %v1323, 16
        %v1477 = vrot.slane %v1475, 4
        %v1478 = vor.u32 %v1477, %v1473
        %v1479 = vrot.slane %v1478, 4
        %v1481 = vshll.u32 %v1350, 16
        %v1483 = vrot.slane %v1481, 5
        %v1484 = vsel %vm1364, %v1479, %v1483
        %v1486 = vshrl.u32 %v1324, 16
        %v1488 = vrot.slane %v1486, 4
        %v1489 = vshll.u32 %v1324, 16
        %v1491 = vrot.slane %v1489, 5
        %v1492 = vor.u32 %v1488, %v1491
        %v1493 = vrot.slane %v1492, 4
        %v1495 = vshll.u32 %v1325, 16
        %v1497 = vrot.slane %v1495, 5
        %v1498 = vsel %vm1364, %v1493, %v1497
        %v1499 = vshrl.u32 %v1325, 16
        %v1501 = vrot.slane %v1499, 4
        %v1502 = vor.u32 %v1501, %v1497
        %v1503 = vrot.slane %v1502, 4
        %v1505 = vshll.u32 %v1351, 16
        %v1507 = vrot.slane %v1505, 5
        %v1508 = vsel %vm1364, %v1503, %v1507
        %v1510 = vshrl.u32 %v1326, 16
        %v1512 = vrot.slane %v1510, 4
        %v1513 = vshll.u32 %v1326, 16
        %v1515 = vrot.slane %v1513, 5
        %v1516 = vor.u32 %v1512, %v1515
        %v1517 = vrot.slane %v1516, 4
        %v1519 = vshll.u32 %v1327, 16
        %v1521 = vrot.slane %v1519, 5
        %v1522 = vsel %vm1364, %v1517, %v1521
        %v1523 = vshrl.u32 %v1327, 16
        %v1525 = vrot.slane %v1523, 4
        %v1526 = vor.u32 %v1525, %v1521
        %v1527 = vrot.slane %v1526, 4
        %v1529 = vshll.u32 %v1352, 16
        %v1531 = vrot.slane %v1529, 5
        %v1532 = vsel %vm1364, %v1527, %v1531
        %v1534 = vshrl.u32 %v1328, 16
        %v1536 = vrot.slane %v1534, 4
        %v1537 = vshll.u32 %v1328, 16
        %v1539 = vrot.slane %v1537, 5
        %v1540 = vor.u32 %v1536, %v1539
        %v1541 = vrot.slane %v1540, 4
        %v1543 = vshll.u32 %v1329, 16
        %v1545 = vrot.slane %v1543, 5
        %v1546 = vsel %vm1364, %v1541, %v1545
        %v1547 = vshrl.u32 %v1329, 16
        %v1549 = vrot.slane %v1547, 4
        %v1550 = vor.u32 %v1549, %v1545
        %v1551 = vrot.slane %v1550, 4
        %v1553 = vshll.u32 %v1353, 16
        %v1555 = vrot.slane %v1553, 5
        %v1556 = vsel %vm1364, %v1551, %v1555
        %v1558 = vshrl.u32 %v1330, 16
        %v1560 = vrot.slane %v1558, 4
        %v1561 = vshll.u32 %v1330, 16
        %v1563 = vrot.slane %v1561, 5
        %v1564 = vor.u32 %v1560, %v1563
        %v1565 = vrot.slane %v1564, 4
        %v1567 = vshll.u32 %v1331, 16
        %v1569 = vrot.slane %v1567, 5
        %v1570 = vsel %vm1364, %v1565, %v1569
        %v1571 = vshrl.u32 %v1331, 16
        %v1573 = vrot.slane %v1571, 4
        %v1574 = vor.u32 %v1573, %v1569
        %v1575 = vrot.slane %v1574, 4
        %v1577 = vshll.u32 %v1354, 16
        %v1579 = vrot.slane %v1577, 5
        %v1580 = vsel %vm1364, %v1575, %v1579
        %v1582 = vshrl.u32 %v1332, 16
        %v1584 = vrot.slane %v1582, 4
        %v1585 = vshll.u32 %v1332, 16
        %v1587 = vrot.slane %v1585, 5
        %v1588 = vor.u32 %v1584, %v1587
        %v1589 = vrot.slane %v1588, 4
        %v1591 = vshll.u32 %v1333, 16
        %v1593 = vrot.slane %v1591, 5
        %v1594 = vsel %vm1364, %v1589, %v1593
        %v1595 = vshrl.u32 %v1333, 16
        %v1597 = vrot.slane %v1595, 4
        %v1598 = vor.u32 %v1597, %v1593
        %v1599 = vrot.slane %v1598, 4
        %v1601 = vshll.u32 %v1355, 16
        %v1603 = vrot.slane %v1601, 5
        %v1604 = vsel %vm1364, %v1599, %v1603
        %v1606 = vshrl.u32 %v1334, 16
        %v1608 = vrot.slane %v1606, 4
        %v1609 = vshll.u32 %v1334, 16
        %v1611 = vrot.slane %v1609, 5
        %v1612 = vor.u32 %v1608, %v1611
        %v1613 = vrot.slane %v1612, 4
        %v1615 = vshll.u32 %v1335, 16
        %v1617 = vrot.slane %v1615, 5
        %v1618 = vsel %vm1364, %v1613, %v1617
        %v1619 = vshrl.u32 %v1335, 16
        %v1621 = vrot.slane %v1619, 4
        %v1622 = vor.u32 %v1621, %v1617
        %v1623 = vrot.slane %v1622, 4
        %v1625 = vshll.u32 %v1356, 16
        %v1627 = vrot.slane %v1625, 5
        %v1628 = vsel %vm1364, %v1623, %v1627
        %v1630 = vshrl.u32 %v1336, 16
        %v1632 = vrot.slane %v1630, 4
        %v1633 = vshll.u32 %v1336, 16
        %v1635 = vrot.slane %v1633, 5
        %v1636 = vor.u32 %v1632, %v1635
        %v1637 = vrot.slane %v1636, 4
        %v1639 = vshll.u32 %v1337, 16
        %v1641 = vrot.slane %v1639, 5
        %v1642 = vsel %vm1364, %v1637, %v1641
        %v1643 = vshrl.u32 %v1337, 16
        %v1645 = vrot.slane %v1643, 4
        %v1646 = vor.u32 %v1645, %v1641
        %v1647 = vrot.slane %v1646, 4
        %v1649 = vshll.u32 %v1357, 16
        %v1651 = vrot.slane %v1649, 5
        %v1652 = vsel %vm1364, %v1647, %v1651
        %v1654 = vshrl.u32 %v1338, 16
        %v1656 = vrot.slane %v1654, 4
        %v1657 = vshll.u32 %v1338, 16
        %v1659 = vrot.slane %v1657, 5
        %v1660 = vor.u32 %v1656, %v1659
        %v1661 = vrot.slane %v1660, 4
        %v1663 = vshll.u32 %v1339, 16
        %v1665 = vrot.slane %v1663, 5
        %v1666 = vsel %vm1364, %v1661, %v1665
        %v1667 = vshrl.u32 %v1339, 16
        %v1669 = vrot.slane %v1667, 4
        %v1670 = vor.u32 %v1669, %v1665
        %v1671 = vrot.slane %v1670, 4
        %v1673 = vshll.u32 %v1358, 16
        %v1675 = vrot.slane %v1673, 5
        %v1676 = vsel %vm1364, %v1671, %v1675
        %v1678 = vshrl.u32 %v1340, 16
        %v1680 = vrot.slane %v1678, 4
        %v1681 = vshll.u32 %v1340, 16
        %v1683 = vrot.slane %v1681, 5
        %v1684 = vor.u32 %v1680, %v1683
        %v1685 = vrot.slane %v1684, 4
        %v1687 = vshll.u32 %v1341, 16
        %v1689 = vrot.slane %v1687, 5
        %v1690 = vsel %vm1364, %v1685, %v1689
        %v1691 = vshrl.u32 %v1341, 16
        %v1693 = vrot.slane %v1691, 4
        %v1694 = vor.u32 %v1693, %v1689
        %v1695 = vrot.slane %v1694, 4
        %v1697 = vshll.u32 %v1359, 16
        %v1699 = vrot.slane %v1697, 5
        %v1700 = vsel %vm1364, %v1695, %v1699
        %v1702 = vshrl.u32 %v1342, 16
        %v1704 = vrot.slane %v1702, 4
        %v1705 = vshll.u32 %v1342, 16
        %v1707 = vrot.slane %v1705, 5
        %v1708 = vor.u32 %v1704, %v1707
        %v1709 = vrot.slane %v1708, 4
        %v1711 = vshll.u32 %v1343, 16
        %v1713 = vrot.slane %v1711, 5
        %v1714 = vsel %vm1364, %v1709, %v1713
        %v1715 = vshrl.u32 %v1343, 16
        %v1717 = vrot.slane %v1715, 4
        %v1718 = vor.u32 %v1717, %v1713
        %v1719 = vrot.slane %v1718, 4
        %v1721 = vshll.u32 %v1360, 16
        %v1723 = vrot.slane %v1721, 5
        %v1724 = vsel %vm1364, %v1719, %v1723
        %v1726 = vshrl.u32 %v1344, 16
        %v1728 = vrot.slane %v1726, 4
        %v1729 = vshll.u32 %v1344, 16
        %v1731 = vrot.slane %v1729, 5
        %v1732 = vor.u32 %v1728, %v1731
        %v1733 = vrot.slane %v1732, 4
        %v1735 = vshll.u32 %v1345, 16
        %v1737 = vrot.slane %v1735, 5
        %v1738 = vsel %vm1364, %v1733, %v1737
        %v1739 = vshrl.u32 %v1345, 16
        %v1741 = vrot.slane %v1739, 4
        %v1742 = vor.u32 %v1741, %v1737
        %v1743 = vrot.slane %v1742, 4
        %v1745 = vshll.u32 %v1361, 16
        %v1747 = vrot.slane %v1745, 5
        %v1748 = vsel %vm1364, %v1743, %v1747
        %v1749 = vld [vmem:[#allocation2] sm:$0xe]
        %v1750 = vld [vmem:[#allocation2 + $0xc] sm:$0xe]
        %v1751 = vld [vmem:[#allocation2 + $0x18] sm:$0xe]
        %v1752 = vld [vmem:[#allocation2 + $0x24] sm:$0xe]
        %v1753 = vld [vmem:[#allocation2 + $0x30] sm:$0xe]
        %v1754 = vld [vmem:[#allocation2 + $0x3c] sm:$0xe]
        %v1755 = vld [vmem:[#allocation2 + $0x48] sm:$0xe]
        %v1756 = vld [vmem:[#allocation2 + $0x54] sm:$0xe]
        %v1757 = vld [vmem:[#allocation2 + $0x60] sm:$0xe]
        %v1758 = vld [vmem:[#allocation2 + $0x6c] sm:$0xe]
        %v1759 = vld [vmem:[#allocation2 + $0x78] sm:$0xe]
        %v1760 = vld [vmem:[#allocation2 + $0x84] sm:$0xe]
        %v1761 = vld [vmem:[#allocation2 + $0x90] sm:$0xe]
        %v1762 = vld [vmem:[#allocation2 + $0x9c] sm:$0xe]
        %v1763 = vld [vmem:[#allocation2 + $0xa8] sm:$0xe]
        %v1764 = vld [vmem:[#allocation2 + $0xb4] sm:$0xe]
        %vm1813 = vcmask 1042432
        %vm1814 = vcmask 1046532
        %vm1815 = vmor %vm1813, %vm1814
        %v1816 = vrot.slane %v1749, 5
        %v1817 = vrot.slane %v1816, 4
        %v1818 = vrot.slane %v1315, 5
        %v1819 = vsel %vm1815, %v1817, %v1818
        %v1820 = vrot.slane %v1818, 4
        %v1821 = vrot.slane %v1346, 5
        %v1822 = vsel %vm1815, %v1820, %v1821
        %v1823 = vrot.slane %v1750, 5
        %v1824 = vrot.slane %v1823, 4
        %v1825 = vrot.slane %v1317, 5
        %v1826 = vsel %vm1815, %v1824, %v1825
        %v1827 = vrot.slane %v1825, 4
        %v1828 = vrot.slane %v1347, 5
        %v1829 = vsel %vm1815, %v1827, %v1828
        %v1830 = vrot.slane %v1751, 5
        %v1831 = vrot.slane %v1830, 4
        %v1832 = vrot.slane %v1319, 5
        %v1833 = vsel %vm1815, %v1831, %v1832
        %v1834 = vrot.slane %v1832, 4
        %v1835 = vrot.slane %v1348, 5
        %v1836 = vsel %vm1815, %v1834, %v1835
        %v1837 = vrot.slane %v1752, 5
        %v1838 = vrot.slane %v1837, 4
        %v1839 = vrot.slane %v1321, 5
        %v1840 = vsel %vm1815, %v1838, %v1839
        %v1841 = vrot.slane %v1839, 4
        %v1842 = vrot.slane %v1349, 5
        %v1843 = vsel %vm1815, %v1841, %v1842
        %v1844 = vrot.slane %v1753, 5
        %v1845 = vrot.slane %v1844, 4
        %v1846 = vrot.slane %v1323, 5
        %v1847 = vsel %vm1815, %v1845, %v1846
        %v1848 = vrot.slane %v1846, 4
        %v1849 = vrot.slane %v1350, 5
        %v1850 = vsel %vm1815, %v1848, %v1849
        %v1851 = vrot.slane %v1754, 5
        %v1852 = vrot.slane %v1851, 4
        %v1853 = vrot.slane %v1325, 5
        %v1854 = vsel %vm1815, %v1852, %v1853
        %v1855 = vrot.slane %v1853, 4
        %v1856 = vrot.slane %v1351, 5
        %v1857 = vsel %vm1815, %v1855, %v1856
        %v1858 = vrot.slane %v1755, 5
        %v1859 = vrot.slane %v1858, 4
        %v1860 = vrot.slane %v1327, 5
        %v1861 = vsel %vm1815, %v1859, %v1860
        %v1862 = vrot.slane %v1860, 4
        %v1863 = vrot.slane %v1352, 5
        %v1864 = vsel %vm1815, %v1862, %v1863
        %v1865 = vrot.slane %v1756, 5
        %v1866 = vrot.slane %v1865, 4
        %v1867 = vrot.slane %v1329, 5
        %v1868 = vsel %vm1815, %v1866, %v1867
        %v1869 = vrot.slane %v1867, 4
        %v1870 = vrot.slane %v1353, 5
        %v1871 = vsel %vm1815, %v1869, %v1870
        %v1872 = vrot.slane %v1757, 5
        %v1873 = vrot.slane %v1872, 4
        %v1874 = vrot.slane %v1331, 5
        %v1875 = vsel %vm1815, %v1873, %v1874
        %v1876 = vrot.slane %v1874, 4
        %v1877 = vrot.slane %v1354, 5
        %v1878 = vsel %vm1815, %v1876, %v1877
        %v1879 = vrot.slane %v1758, 5
        %v1880 = vrot.slane %v1879, 4
        %v1881 = vrot.slane %v1333, 5
        %v1882 = vsel %vm1815, %v1880, %v1881
        %v1883 = vrot.slane %v1881, 4
        %v1884 = vrot.slane %v1355, 5
        %v1885 = vsel %vm1815, %v1883, %v1884
        %v1886 = vrot.slane %v1759, 5
        %v1887 = vrot.slane %v1886, 4
        %v1888 = vrot.slane %v1335, 5
        %v1889 = vsel %vm1815, %v1887, %v1888
        %v1890 = vrot.slane %v1888, 4
        %v1891 = vrot.slane %v1356, 5
        %v1892 = vsel %vm1815, %v1890, %v1891
        %v1893 = vrot.slane %v1760, 5
        %v1894 = vrot.slane %v1893, 4
        %v1895 = vrot.slane %v1337, 5
        %v1896 = vsel %vm1815, %v1894, %v1895
        %v1897 = vrot.slane %v1895, 4
        %v1898 = vrot.slane %v1357, 5
        %v1899 = vsel %vm1815, %v1897, %v1898
        %v1900 = vrot.slane %v1761, 5
        %v1901 = vrot.slane %v1900, 4
        %v1902 = vrot.slane %v1339, 5
        %v1903 = vsel %vm1815, %v1901, %v1902
        %v1904 = vrot.slane %v1902, 4
        %v1905 = vrot.slane %v1358, 5
        %v1906 = vsel %vm1815, %v1904, %v1905
        %v1907 = vrot.slane %v1762, 5
        %v1908 = vrot.slane %v1907, 4
        %v1909 = vrot.slane %v1341, 5
        %v1910 = vsel %vm1815, %v1908, %v1909
        %v1911 = vrot.slane %v1909, 4
        %v1912 = vrot.slane %v1359, 5
        %v1913 = vsel %vm1815, %v1911, %v1912
        %v1914 = vrot.slane %v1763, 5
        %v1915 = vrot.slane %v1914, 4
        %v1916 = vrot.slane %v1343, 5
        %v1917 = vsel %vm1815, %v1915, %v1916
        %v1918 = vrot.slane %v1916, 4
        %v1919 = vrot.slane %v1360, 5
        %v1920 = vsel %vm1815, %v1918, %v1919
        %v1921 = vrot.slane %v1764, 5
        %v1922 = vrot.slane %v1921, 4
        %v1923 = vrot.slane %v1345, 5
        %v1924 = vsel %vm1815, %v1922, %v1923
        %v1925 = vrot.slane %v1923, 4
        %v1926 = vrot.slane %v1361, 5
        %v1927 = vsel %vm1815, %v1925, %v1926
        %v1944 = vunpack.c.l.b16 %v1314
        %v1945 = vunpack.c.l.b16 %v1315
        %v1946 = vunpack.c.l.b16 %v1316
        %v1947 = vunpack.c.l.b16 %v1317
        %v1948 = vunpack.c.l.b16 %v1318
        %v1949 = vunpack.c.l.b16 %v1319
        %v1950 = vunpack.c.l.b16 %v1320
        %v1951 = vunpack.c.l.b16 %v1321
        %v1952 = vunpack.c.l.b16 %v1322
        %v1953 = vunpack.c.l.b16 %v1323
        %v1954 = vunpack.c.l.b16 %v1324
        %v1955 = vunpack.c.l.b16 %v1325
        %v1956 = vunpack.c.l.b16 %v1326
        %v1957 = vunpack.c.l.b16 %v1327
        %v1958 = vunpack.c.l.b16 %v1328
        %v1959 = vunpack.c.l.b16 %v1329
        %v1960 = vunpack.c.l.b16 %v1330
        %v1961 = vunpack.c.l.b16 %v1331
        %v1962 = vunpack.c.l.b16 %v1332
        %v1963 = vunpack.c.l.b16 %v1333
        %v1964 = vunpack.c.l.b16 %v1334
        %v1965 = vunpack.c.l.b16 %v1335
        %v1966 = vunpack.c.l.b16 %v1336
        %v1967 = vunpack.c.l.b16 %v1337
        %v1968 = vunpack.c.l.b16 %v1338
        %v1969 = vunpack.c.l.b16 %v1339
        %v1970 = vunpack.c.l.b16 %v1340
        %v1971 = vunpack.c.l.b16 %v1341
        %v1972 = vunpack.c.l.b16 %v1342
        %v1973 = vunpack.c.l.b16 %v1343
        %v1974 = vunpack.c.l.b16 %v1344
        %v1975 = vunpack.c.l.b16 %v1345
        %v1976 = vpack.c.b16 %v1945, %v1944
        %v1977 = vpack.c.b16 %v1947, %v1946
        %v1978 = vpack.c.b16 %v1949, %v1948
        %v1979 = vpack.c.b16 %v1951, %v1950
        %v1980 = vpack.c.b16 %v1953, %v1952
        %v1981 = vpack.c.b16 %v1955, %v1954
        %v1982 = vpack.c.b16 %v1957, %v1956
        %v1983 = vpack.c.b16 %v1959, %v1958
        %v1984 = vpack.c.b16 %v1961, %v1960
        %v1985 = vpack.c.b16 %v1963, %v1962
        %v1986 = vpack.c.b16 %v1965, %v1964
        %v1987 = vpack.c.b16 %v1967, %v1966
        %v1988 = vpack.c.b16 %v1969, %v1968
        %v1989 = vpack.c.b16 %v1971, %v1970
        %v1990 = vpack.c.b16 %v1973, %v1972
        %v1991 = vpack.c.b16 %v1975, %v1974
        %v2008 = vunpack.c.l.b16 %v1378
        %v2009 = vunpack.c.l.b16 %v1388
        %v2010 = vunpack.c.l.b16 %v1402
        %v2011 = vunpack.c.l.b16 %v1412
        %v2012 = vunpack.c.l.b16 %v1426
        %v2013 = vunpack.c.l.b16 %v1436
        %v2014 = vunpack.c.l.b16 %v1450
        %v2015 = vunpack.c.l.b16 %v1460
        %v2016 = vunpack.c.l.b16 %v1474
        %v2017 = vunpack.c.l.b16 %v1484
        %v2018 = vunpack.c.l.b16 %v1498
        %v2019 = vunpack.c.l.b16 %v1508
        %v2020 = vunpack.c.l.b16 %v1522
        %v2021 = vunpack.c.l.b16 %v1532
        %v2022 = vunpack.c.l.b16 %v1546
        %v2023 = vunpack.c.l.b16 %v1556
        %v2024 = vunpack.c.l.b16 %v1570
        %v2025 = vunpack.c.l.b16 %v1580
        %v2026 = vunpack.c.l.b16 %v1594
        %v2027 = vunpack.c.l.b16 %v1604
        %v2028 = vunpack.c.l.b16 %v1618
        %v2029 = vunpack.c.l.b16 %v1628
        %v2030 = vunpack.c.l.b16 %v1642
        %v2031 = vunpack.c.l.b16 %v1652
        %v2032 = vunpack.c.l.b16 %v1666
        %v2033 = vunpack.c.l.b16 %v1676
        %v2034 = vunpack.c.l.b16 %v1690
        %v2035 = vunpack.c.l.b16 %v1700
        %v2036 = vunpack.c.l.b16 %v1714
        %v2037 = vunpack.c.l.b16 %v1724
        %v2038 = vunpack.c.l.b16 %v1738
        %v2039 = vunpack.c.l.b16 %v1748
        %v2040 = vpack.c.b16 %v2009, %v2008
        %v2041 = vpack.c.b16 %v2011, %v2010
        %v2042 = vpack.c.b16 %v2013, %v2012
        %v2043 = vpack.c.b16 %v2015, %v2014
        %v2044 = vpack.c.b16 %v2017, %v2016
        %v2045 = vpack.c.b16 %v2019, %v2018
        %v2046 = vpack.c.b16 %v2021, %v2020
        %v2047 = vpack.c.b16 %v2023, %v2022
        %v2048 = vpack.c.b16 %v2025, %v2024
        %v2049 = vpack.c.b16 %v2027, %v2026
        %v2050 = vpack.c.b16 %v2029, %v2028
        %v2051 = vpack.c.b16 %v2031, %v2030
        %v2052 = vpack.c.b16 %v2033, %v2032
        %v2053 = vpack.c.b16 %v2035, %v2034
        %v2054 = vpack.c.b16 %v2037, %v2036
        %v2055 = vpack.c.b16 %v2039, %v2038
        %v2072 = vunpack.c.l.b16 %v1819
        %v2073 = vunpack.c.l.b16 %v1822
        %v2074 = vunpack.c.l.b16 %v1826
        %v2075 = vunpack.c.l.b16 %v1829
        %v2076 = vunpack.c.l.b16 %v1833
        %v2077 = vunpack.c.l.b16 %v1836
        %v2078 = vunpack.c.l.b16 %v1840
        %v2079 = vunpack.c.l.b16 %v1843
        %v2080 = vunpack.c.l.b16 %v1847
        %v2081 = vunpack.c.l.b16 %v1850
        %v2082 = vunpack.c.l.b16 %v1854
        %v2083 = vunpack.c.l.b16 %v1857
        %v2084 = vunpack.c.l.b16 %v1861
        %v2085 = vunpack.c.l.b16 %v1864
        %v2086 = vunpack.c.l.b16 %v1868
        %v2087 = vunpack.c.l.b16 %v1871
        %v2088 = vunpack.c.l.b16 %v1875
        %v2089 = vunpack.c.l.b16 %v1878
        %v2090 = vunpack.c.l.b16 %v1882
        %v2091 = vunpack.c.l.b16 %v1885
        %v2092 = vunpack.c.l.b16 %v1889
        %v2093 = vunpack.c.l.b16 %v1892
        %v2094 = vunpack.c.l.b16 %v1896
        %v2095 = vunpack.c.l.b16 %v1899
        %v2096 = vunpack.c.l.b16 %v1903
        %v2097 = vunpack.c.l.b16 %v1906
        %v2098 = vunpack.c.l.b16 %v1910
        %v2099 = vunpack.c.l.b16 %v1913
        %v2100 = vunpack.c.l.b16 %v1917
        %v2101 = vunpack.c.l.b16 %v1920
        %v2102 = vunpack.c.l.b16 %v1924
        %v2103 = vunpack.c.l.b16 %v1927
        %v2104 = vpack.c.b16 %v2073, %v2072
        %v2105 = vpack.c.b16 %v2075, %v2074
        %v2106 = vpack.c.b16 %v2077, %v2076
        %v2107 = vpack.c.b16 %v2079, %v2078
        %v2108 = vpack.c.b16 %v2081, %v2080
        %v2109 = vpack.c.b16 %v2083, %v2082
        %v2110 = vpack.c.b16 %v2085, %v2084
        %v2111 = vpack.c.b16 %v2087, %v2086
        %v2112 = vpack.c.b16 %v2089, %v2088
        %v2113 = vpack.c.b16 %v2091, %v2090
        %v2114 = vpack.c.b16 %v2093, %v2092
        %v2115 = vpack.c.b16 %v2095, %v2094
        %v2116 = vpack.c.b16 %v2097, %v2096
        %v2117 = vpack.c.b16 %v2099, %v2098
        %v2118 = vpack.c.b16 %v2101, %v2100
        %v2119 = vpack.c.b16 %v2103, %v2102
        %v2136 = vld [vmem:[%s3] sm:$0xf]
        %v2137 = vld [vmem:[%s3 + $0x4] sm:$0xf]
        %v2138 = vld [vmem:[%s3 + $0x8] sm:$0xf]
        %v2139 = vld [vmem:[%s3 + $0xc] sm:$0xf]
        %v2140 = vld [vmem:[%s3 + $0x10] sm:$0xf]
        %v2141 = vld [vmem:[%s3 + $0x14] sm:$0xf]
        %v2142 = vld [vmem:[%s3 + $0x18] sm:$0xf]
        %v2143 = vld [vmem:[%s3 + $0x1c] sm:$0xf]
        %v2144 = vld [vmem:[%s3 + $0x20] sm:$0xf]
        %v2145 = vld [vmem:[%s3 + $0x24] sm:$0xf]
        %v2146 = vld [vmem:[%s3 + $0x28] sm:$0xf]
        %v2147 = vld [vmem:[%s3 + $0x2c] sm:$0xf]
        %v2148 = vld [vmem:[%s3 + $0x30] sm:$0xf]
        %v2149 = vld [vmem:[%s3 + $0x34] sm:$0xf]
        %v2150 = vld [vmem:[%s3 + $0x38] sm:$0xf]
        %v2151 = vld [vmem:[%s3 + $0x3c] sm:$0xf]
        %v2152 = vld [vmem:[%s3 + $0x40] sm:$0xf]
        %v2153 = vld [vmem:[%s3 + $0x44] sm:$0xf]
        %v2154 = vld [vmem:[%s3 + $0x48] sm:$0xf]
        %v2155 = vld [vmem:[%s3 + $0x4c] sm:$0xf]
        %v2156 = vld [vmem:[%s3 + $0x50] sm:$0xf]
        %v2157 = vld [vmem:[%s3 + $0x54] sm:$0xf]
        %v2158 = vld [vmem:[%s3 + $0x58] sm:$0xf]
        %v2159 = vld [vmem:[%s3 + $0x5c] sm:$0xf]
        %v2160 = vld [vmem:[%s3 + $0x60] sm:$0xf]
        %v2161 = vld [vmem:[%s3 + $0x64] sm:$0xf]
        %v2162 = vld [vmem:[%s3 + $0x68] sm:$0xf]
        %v2163 = vld [vmem:[%s3 + $0x6c] sm:$0xf]
        %v2164 = vld [vmem:[%s3 + $0x70] sm:$0xf]
        %v2165 = vld [vmem:[%s3 + $0x74] sm:$0xf]
        %v2166 = vld [vmem:[%s3 + $0x78] sm:$0xf]
        %v2167 = vld [vmem:[%s3 + $0x7c] sm:$0xf]
        %v2168 = vld [vmem:[%s3 + $0x80] sm:$0xf]
        %v2169 = vld [vmem:[%s3 + $0x84] sm:$0xf]
        %v2170 = vld [vmem:[%s3 + $0x88] sm:$0xf]
        %v2171 = vld [vmem:[%s3 + $0x8c] sm:$0xf]
        %v2172 = vld [vmem:[%s3 + $0x90] sm:$0xf]
        %v2173 = vld [vmem:[%s3 + $0x94] sm:$0xf]
        %v2174 = vld [vmem:[%s3 + $0x98] sm:$0xf]
        %v2175 = vld [vmem:[%s3 + $0x9c] sm:$0xf]
        %v2176 = vld [vmem:[%s3 + $0xa0] sm:$0xf]
        %v2177 = vld [vmem:[%s3 + $0xa4] sm:$0xf]
        %v2178 = vld [vmem:[%s3 + $0xa8] sm:$0xf]
        %v2179 = vld [vmem:[%s3 + $0xac] sm:$0xf]
        %v2180 = vld [vmem:[%s3 + $0xb0] sm:$0xf]
        %v2181 = vld [vmem:[%s3 + $0xb4] sm:$0xf]
        %v2182 = vld [vmem:[%s3 + $0xb8] sm:$0xf]
        %v2183 = vld [vmem:[%s3 + $0xbc] sm:$0xf]
        %v2184 = vld [vmem:[%s1199] sm:$0xf]
        %v2185 = vld [vmem:[%s1199 + $0x4] sm:$0xf]
        %v2186 = vld [vmem:[%s1199 + $0xc] sm:$0xf]
        %v2187 = vld [vmem:[%s1199 + $0x10] sm:$0xf]
        %v2188 = vld [vmem:[%s1199 + $0x18] sm:$0xf]
        %v2189 = vld [vmem:[%s1199 + $0x1c] sm:$0xf]
        %v2190 = vld [vmem:[%s1199 + $0x24] sm:$0xf]
        %v2191 = vld [vmem:[%s1199 + $0x28] sm:$0xf]
        %v2192 = vld [vmem:[%s1199 + $0x30] sm:$0xf]
        %v2193 = vld [vmem:[%s1199 + $0x34] sm:$0xf]
        %v2194 = vld [vmem:[%s1199 + $0x3c] sm:$0xf]
        %v2195 = vld [vmem:[%s1199 + $0x40] sm:$0xf]
        %v2196 = vld [vmem:[%s1199 + $0x48] sm:$0xf]
        %v2197 = vld [vmem:[%s1199 + $0x4c] sm:$0xf]
        %v2198 = vld [vmem:[%s1199 + $0x54] sm:$0xf]
        %v2199 = vld [vmem:[%s1199 + $0x58] sm:$0xf]
        %v2200 = vld [vmem:[%s1199 + $0x60] sm:$0xf]
        %v2201 = vld [vmem:[%s1199 + $0x64] sm:$0xf]
        %v2202 = vld [vmem:[%s1199 + $0x6c] sm:$0xf]
        %v2203 = vld [vmem:[%s1199 + $0x70] sm:$0xf]
        %v2204 = vld [vmem:[%s1199 + $0x78] sm:$0xf]
        %v2205 = vld [vmem:[%s1199 + $0x7c] sm:$0xf]
        %v2206 = vld [vmem:[%s1199 + $0x84] sm:$0xf]
        %v2207 = vld [vmem:[%s1199 + $0x88] sm:$0xf]
        %v2208 = vld [vmem:[%s1199 + $0x90] sm:$0xf]
        %v2209 = vld [vmem:[%s1199 + $0x94] sm:$0xf]
        %v2210 = vld [vmem:[%s1199 + $0x9c] sm:$0xf]
        %v2211 = vld [vmem:[%s1199 + $0xa0] sm:$0xf]
        %v2212 = vld [vmem:[%s1199 + $0xa8] sm:$0xf]
        %v2213 = vld [vmem:[%s1199 + $0xac] sm:$0xf]
        %v2214 = vld [vmem:[%s1199 + $0xb4] sm:$0xf]
        %v2215 = vld [vmem:[%s1199 + $0xb8] sm:$0xf]
        %v2216 = vld [vmem:[%s1199 + $0x8] sm:$0x1]
        %v2217 = vld [vmem:[%s1199 + $0x14] sm:$0x1]
        %v2218 = vld [vmem:[%s1199 + $0x20] sm:$0x1]
        %v2219 = vld [vmem:[%s1199 + $0x2c] sm:$0x1]
        %v2220 = vld [vmem:[%s1199 + $0x38] sm:$0x1]
        %v2221 = vld [vmem:[%s1199 + $0x44] sm:$0x1]
        %v2222 = vld [vmem:[%s1199 + $0x50] sm:$0x1]
        %v2223 = vld [vmem:[%s1199 + $0x5c] sm:$0x1]
        %v2224 = vld [vmem:[%s1199 + $0x68] sm:$0x1]
        %v2225 = vld [vmem:[%s1199 + $0x74] sm:$0x1]
        %v2226 = vld [vmem:[%s1199 + $0x80] sm:$0x1]
        %v2227 = vld [vmem:[%s1199 + $0x8c] sm:$0x1]
        %v2228 = vld [vmem:[%s1199 + $0x98] sm:$0x1]
        %v2229 = vld [vmem:[%s1199 + $0xa4] sm:$0x1]
        %v2230 = vld [vmem:[%s1199 + $0xb0] sm:$0x1]
        %v2231 = vld [vmem:[%s1199 + $0xbc] sm:$0x1]
        %v2233 = vshrl.u32 %v2184, 16
        %v2235 = vrot.slane %v2233, 4
        %v2236 = vshll.u32 %v2184, 16
        %v2238 = vrot.slane %v2236, 5
        %v2239 = vor.u32 %v2235, %v2238
        %v2240 = vrot.slane %v2239, 4
        %v2242 = vshll.u32 %v2185, 16
        %v2244 = vrot.slane %v2242, 5
        %v2245 = vsel %vm1364, %v2240, %v2244
        %v2246 = vshrl.u32 %v2185, 16
        %v2248 = vrot.slane %v2246, 4
        %v2249 = vor.u32 %v2248, %v2244
        %v2250 = vrot.slane %v2249, 4
        %v2252 = vshll.u32 %v2216, 16
        %v2254 = vrot.slane %v2252, 5
        %v2255 = vsel %vm1364, %v2250, %v2254
        %v2257 = vshrl.u32 %v2186, 16
        %v2259 = vrot.slane %v2257, 4
        %v2260 = vshll.u32 %v2186, 16
        %v2262 = vrot.slane %v2260, 5
        %v2263 = vor.u32 %v2259, %v2262
        %v2264 = vrot.slane %v2263, 4
        %v2266 = vshll.u32 %v2187, 16
        %v2268 = vrot.slane %v2266, 5
        %v2269 = vsel %vm1364, %v2264, %v2268
        %v2270 = vshrl.u32 %v2187, 16
        %v2272 = vrot.slane %v2270, 4
        %v2273 = vor.u32 %v2272, %v2268
        %v2274 = vrot.slane %v2273, 4
        %v2276 = vshll.u32 %v2217, 16
        %v2278 = vrot.slane %v2276, 5
        %v2279 = vsel %vm1364, %v2274, %v2278
        %v2281 = vshrl.u32 %v2188, 16
        %v2283 = vrot.slane %v2281, 4
        %v2284 = vshll.u32 %v2188, 16
        %v2286 = vrot.slane %v2284, 5
        %v2287 = vor.u32 %v2283, %v2286
        %v2288 = vrot.slane %v2287, 4
        %v2290 = vshll.u32 %v2189, 16
        %v2292 = vrot.slane %v2290, 5
        %v2293 = vsel %vm1364, %v2288, %v2292
        %v2294 = vshrl.u32 %v2189, 16
        %v2296 = vrot.slane %v2294, 4
        %v2297 = vor.u32 %v2296, %v2292
        %v2298 = vrot.slane %v2297, 4
        %v2300 = vshll.u32 %v2218, 16
        %v2302 = vrot.slane %v2300, 5
        %v2303 = vsel %vm1364, %v2298, %v2302
        %v2305 = vshrl.u32 %v2190, 16
        %v2307 = vrot.slane %v2305, 4
        %v2308 = vshll.u32 %v2190, 16
        %v2310 = vrot.slane %v2308, 5
        %v2311 = vor.u32 %v2307, %v2310
        %v2312 = vrot.slane %v2311, 4
        %v2314 = vshll.u32 %v2191, 16
        %v2316 = vrot.slane %v2314, 5
        %v2317 = vsel %vm1364, %v2312, %v2316
        %v2318 = vshrl.u32 %v2191, 16
        %v2320 = vrot.slane %v2318, 4
        %v2321 = vor.u32 %v2320, %v2316
        %v2322 = vrot.slane %v2321, 4
        %v2324 = vshll.u32 %v2219, 16
        %v2326 = vrot.slane %v2324, 5
        %v2327 = vsel %vm1364, %v2322, %v2326
        %v2329 = vshrl.u32 %v2192, 16
        %v2331 = vrot.slane %v2329, 4
        %v2332 = vshll.u32 %v2192, 16
        %v2334 = vrot.slane %v2332, 5
        %v2335 = vor.u32 %v2331, %v2334
        %v2336 = vrot.slane %v2335, 4
        %v2338 = vshll.u32 %v2193, 16
        %v2340 = vrot.slane %v2338, 5
        %v2341 = vsel %vm1364, %v2336, %v2340
        %v2342 = vshrl.u32 %v2193, 16
        %v2344 = vrot.slane %v2342, 4
        %v2345 = vor.u32 %v2344, %v2340
        %v2346 = vrot.slane %v2345, 4
        %v2348 = vshll.u32 %v2220, 16
        %v2350 = vrot.slane %v2348, 5
        %v2351 = vsel %vm1364, %v2346, %v2350
        %v2353 = vshrl.u32 %v2194, 16
        %v2355 = vrot.slane %v2353, 4
        %v2356 = vshll.u32 %v2194, 16
        %v2358 = vrot.slane %v2356, 5
        %v2359 = vor.u32 %v2355, %v2358
        %v2360 = vrot.slane %v2359, 4
        %v2362 = vshll.u32 %v2195, 16
        %v2364 = vrot.slane %v2362, 5
        %v2365 = vsel %vm1364, %v2360, %v2364
        %v2366 = vshrl.u32 %v2195, 16
        %v2368 = vrot.slane %v2366, 4
        %v2369 = vor.u32 %v2368, %v2364
        %v2370 = vrot.slane %v2369, 4
        %v2372 = vshll.u32 %v2221, 16
        %v2374 = vrot.slane %v2372, 5
        %v2375 = vsel %vm1364, %v2370, %v2374
        %v2377 = vshrl.u32 %v2196, 16
        %v2379 = vrot.slane %v2377, 4
        %v2380 = vshll.u32 %v2196, 16
        %v2382 = vrot.slane %v2380, 5
        %v2383 = vor.u32 %v2379, %v2382
        %v2384 = vrot.slane %v2383, 4
        %v2386 = vshll.u32 %v2197, 16
        %v2388 = vrot.slane %v2386, 5
        %v2389 = vsel %vm1364, %v2384, %v2388
        %v2390 = vshrl.u32 %v2197, 16
        %v2392 = vrot.slane %v2390, 4
        %v2393 = vor.u32 %v2392, %v2388
        %v2394 = vrot.slane %v2393, 4
        %v2396 = vshll.u32 %v2222, 16
        %v2398 = vrot.slane %v2396, 5
        %v2399 = vsel %vm1364, %v2394, %v2398
        %v2401 = vshrl.u32 %v2198, 16
        %v2403 = vrot.slane %v2401, 4
        %v2404 = vshll.u32 %v2198, 16
        %v2406 = vrot.slane %v2404, 5
        %v2407 = vor.u32 %v2403, %v2406
        %v2408 = vrot.slane %v2407, 4
        %v2410 = vshll.u32 %v2199, 16
        %v2412 = vrot.slane %v2410, 5
        %v2413 = vsel %vm1364, %v2408, %v2412
        %v2414 = vshrl.u32 %v2199, 16
        %v2416 = vrot.slane %v2414, 4
        %v2417 = vor.u32 %v2416, %v2412
        %v2418 = vrot.slane %v2417, 4
        %v2420 = vshll.u32 %v2223, 16
        %v2422 = vrot.slane %v2420, 5
        %v2423 = vsel %vm1364, %v2418, %v2422
        %v2425 = vshrl.u32 %v2200, 16
        %v2427 = vrot.slane %v2425, 4
        %v2428 = vshll.u32 %v2200, 16
        %v2430 = vrot.slane %v2428, 5
        %v2431 = vor.u32 %v2427, %v2430
        %v2432 = vrot.slane %v2431, 4
        %v2434 = vshll.u32 %v2201, 16
        %v2436 = vrot.slane %v2434, 5
        %v2437 = vsel %vm1364, %v2432, %v2436
        %v2438 = vshrl.u32 %v2201, 16
        %v2440 = vrot.slane %v2438, 4
        %v2441 = vor.u32 %v2440, %v2436
        %v2442 = vrot.slane %v2441, 4
        %v2444 = vshll.u32 %v2224, 16
        %v2446 = vrot.slane %v2444, 5
        %v2447 = vsel %vm1364, %v2442, %v2446
        %v2449 = vshrl.u32 %v2202, 16
        %v2451 = vrot.slane %v2449, 4
        %v2452 = vshll.u32 %v2202, 16
        %v2454 = vrot.slane %v2452, 5
        %v2455 = vor.u32 %v2451, %v2454
        %v2456 = vrot.slane %v2455, 4
        %v2458 = vshll.u32 %v2203, 16
        %v2460 = vrot.slane %v2458, 5
        %v2461 = vsel %vm1364, %v2456, %v2460
        %v2462 = vshrl.u32 %v2203, 16
        %v2464 = vrot.slane %v2462, 4
        %v2465 = vor.u32 %v2464, %v2460
        %v2466 = vrot.slane %v2465, 4
        %v2468 = vshll.u32 %v2225, 16
        %v2470 = vrot.slane %v2468, 5
        %v2471 = vsel %vm1364, %v2466, %v2470
        %v2473 = vshrl.u32 %v2204, 16
        %v2475 = vrot.slane %v2473, 4
        %v2476 = vshll.u32 %v2204, 16
        %v2478 = vrot.slane %v2476, 5
        %v2479 = vor.u32 %v2475, %v2478
        %v2480 = vrot.slane %v2479, 4
        %v2482 = vshll.u32 %v2205, 16
        %v2484 = vrot.slane %v2482, 5
        %v2485 = vsel %vm1364, %v2480, %v2484
        %v2486 = vshrl.u32 %v2205, 16
        %v2488 = vrot.slane %v2486, 4
        %v2489 = vor.u32 %v2488, %v2484
        %v2490 = vrot.slane %v2489, 4
        %v2492 = vshll.u32 %v2226, 16
        %v2494 = vrot.slane %v2492, 5
        %v2495 = vsel %vm1364, %v2490, %v2494
        %v2497 = vshrl.u32 %v2206, 16
        %v2499 = vrot.slane %v2497, 4
        %v2500 = vshll.u32 %v2206, 16
        %v2502 = vrot.slane %v2500, 5
        %v2503 = vor.u32 %v2499, %v2502
        %v2504 = vrot.slane %v2503, 4
        %v2506 = vshll.u32 %v2207, 16
        %v2508 = vrot.slane %v2506, 5
        %v2509 = vsel %vm1364, %v2504, %v2508
        %v2510 = vshrl.u32 %v2207, 16
        %v2512 = vrot.slane %v2510, 4
        %v2513 = vor.u32 %v2512, %v2508
        %v2514 = vrot.slane %v2513, 4
        %v2516 = vshll.u32 %v2227, 16
        %v2518 = vrot.slane %v2516, 5
        %v2519 = vsel %vm1364, %v2514, %v2518
        %v2521 = vshrl.u32 %v2208, 16
        %v2523 = vrot.slane %v2521, 4
        %v2524 = vshll.u32 %v2208, 16
        %v2526 = vrot.slane %v2524, 5
        %v2527 = vor.u32 %v2523, %v2526
        %v2528 = vrot.slane %v2527, 4
        %v2530 = vshll.u32 %v2209, 16
        %v2532 = vrot.slane %v2530, 5
        %v2533 = vsel %vm1364, %v2528, %v2532
        %v2534 = vshrl.u32 %v2209, 16
        %v2536 = vrot.slane %v2534, 4
        %v2537 = vor.u32 %v2536, %v2532
        %v2538 = vrot.slane %v2537, 4
        %v2540 = vshll.u32 %v2228, 16
        %v2542 = vrot.slane %v2540, 5
        %v2543 = vsel %vm1364, %v2538, %v2542
        %v2545 = vshrl.u32 %v2210, 16
        %v2547 = vrot.slane %v2545, 4
        %v2548 = vshll.u32 %v2210, 16
        %v2550 = vrot.slane %v2548, 5
        %v2551 = vor.u32 %v2547, %v2550
        %v2552 = vrot.slane %v2551, 4
        %v2554 = vshll.u32 %v2211, 16
        %v2556 = vrot.slane %v2554, 5
        %v2557 = vsel %vm1364, %v2552, %v2556
        %v2558 = vshrl.u32 %v2211, 16
        %v2560 = vrot.slane %v2558, 4
        %v2561 = vor.u32 %v2560, %v2556
        %v2562 = vrot.slane %v2561, 4
        %v2564 = vshll.u32 %v2229, 16
        %v2566 = vrot.slane %v2564, 5
        %v2567 = vsel %vm1364, %v2562, %v2566
        %v2569 = vshrl.u32 %v2212, 16
        %v2571 = vrot.slane %v2569, 4
        %v2572 = vshll.u32 %v2212, 16
        %v2574 = vrot.slane %v2572, 5
        %v2575 = vor.u32 %v2571, %v2574
        %v2576 = vrot.slane %v2575, 4
        %v2578 = vshll.u32 %v2213, 16
        %v2580 = vrot.slane %v2578, 5
        %v2581 = vsel %vm1364, %v2576, %v2580
        %v2582 = vshrl.u32 %v2213, 16
        %v2584 = vrot.slane %v2582, 4
        %v2585 = vor.u32 %v2584, %v2580
        %v2586 = vrot.slane %v2585, 4
        %v2588 = vshll.u32 %v2230, 16
        %v2590 = vrot.slane %v2588, 5
        %v2591 = vsel %vm1364, %v2586, %v2590
        %v2593 = vshrl.u32 %v2214, 16
        %v2595 = vrot.slane %v2593, 4
        %v2596 = vshll.u32 %v2214, 16
        %v2598 = vrot.slane %v2596, 5
        %v2599 = vor.u32 %v2595, %v2598
        %v2600 = vrot.slane %v2599, 4
        %v2602 = vshll.u32 %v2215, 16
        %v2604 = vrot.slane %v2602, 5
        %v2605 = vsel %vm1364, %v2600, %v2604
        %v2606 = vshrl.u32 %v2215, 16
        %v2608 = vrot.slane %v2606, 4
        %v2609 = vor.u32 %v2608, %v2604
        %v2610 = vrot.slane %v2609, 4
        %v2612 = vshll.u32 %v2231, 16
        %v2614 = vrot.slane %v2612, 5
        %v2615 = vsel %vm1364, %v2610, %v2614
        %v2616 = vld [vmem:[%s1199] sm:$0xe]
        %v2617 = vld [vmem:[%s1199 + $0xc] sm:$0xe]
        %v2618 = vld [vmem:[%s1199 + $0x18] sm:$0xe]
        %v2619 = vld [vmem:[%s1199 + $0x24] sm:$0xe]
        %v2620 = vld [vmem:[%s1199 + $0x30] sm:$0xe]
        %v2621 = vld [vmem:[%s1199 + $0x3c] sm:$0xe]
        %v2622 = vld [vmem:[%s1199 + $0x48] sm:$0xe]
        %v2623 = vld [vmem:[%s1199 + $0x54] sm:$0xe]
        %v2624 = vld [vmem:[%s1199 + $0x60] sm:$0xe]
        %v2625 = vld [vmem:[%s1199 + $0x6c] sm:$0xe]
        %v2626 = vld [vmem:[%s1199 + $0x78] sm:$0xe]
        %v2627 = vld [vmem:[%s1199 + $0x84] sm:$0xe]
        %v2628 = vld [vmem:[%s1199 + $0x90] sm:$0xe]
        %v2629 = vld [vmem:[%s1199 + $0x9c] sm:$0xe]
        %v2630 = vld [vmem:[%s1199 + $0xa8] sm:$0xe]
        %v2631 = vld [vmem:[%s1199 + $0xb4] sm:$0xe]
        %v2680 = vrot.slane %v2616, 5
        %v2681 = vrot.slane %v2680, 4
        %v2682 = vrot.slane %v2185, 5
        %v2683 = vsel %vm1815, %v2681, %v2682
        %v2684 = vrot.slane %v2682, 4
        %v2685 = vrot.slane %v2216, 5
        %v2686 = vsel %vm1815, %v2684, %v2685
        %v2687 = vrot.slane %v2617, 5
        %v2688 = vrot.slane %v2687, 4
        %v2689 = vrot.slane %v2187, 5
        %v2690 = vsel %vm1815, %v2688, %v2689
        %v2691 = vrot.slane %v2689, 4
        %v2692 = vrot.slane %v2217, 5
        %v2693 = vsel %vm1815, %v2691, %v2692
        %v2694 = vrot.slane %v2618, 5
        %v2695 = vrot.slane %v2694, 4
        %v2696 = vrot.slane %v2189, 5
        %v2697 = vsel %vm1815, %v2695, %v2696
        %v2698 = vrot.slane %v2696, 4
        %v2699 = vrot.slane %v2218, 5
        %v2700 = vsel %vm1815, %v2698, %v2699
        %v2701 = vrot.slane %v2619, 5
        %v2702 = vrot.slane %v2701, 4
        %v2703 = vrot.slane %v2191, 5
        %v2704 = vsel %vm1815, %v2702, %v2703
        %v2705 = vrot.slane %v2703, 4
        %v2706 = vrot.slane %v2219, 5
        %v2707 = vsel %vm1815, %v2705, %v2706
        %v2708 = vrot.slane %v2620, 5
        %v2709 = vrot.slane %v2708, 4
        %v2710 = vrot.slane %v2193, 5
        %v2711 = vsel %vm1815, %v2709, %v2710
        %v2712 = vrot.slane %v2710, 4
        %v2713 = vrot.slane %v2220, 5
        %v2714 = vsel %vm1815, %v2712, %v2713
        %v2715 = vrot.slane %v2621, 5
        %v2716 = vrot.slane %v2715, 4
        %v2717 = vrot.slane %v2195, 5
        %v2718 = vsel %vm1815, %v2716, %v2717
        %v2719 = vrot.slane %v2717, 4
        %v2720 = vrot.slane %v2221, 5
        %v2721 = vsel %vm1815, %v2719, %v2720
        %v2722 = vrot.slane %v2622, 5
        %v2723 = vrot.slane %v2722, 4
        %v2724 = vrot.slane %v2197, 5
        %v2725 = vsel %vm1815, %v2723, %v2724
        %v2726 = vrot.slane %v2724, 4
        %v2727 = vrot.slane %v2222, 5
        %v2728 = vsel %vm1815, %v2726, %v2727
        %v2729 = vrot.slane %v2623, 5
        %v2730 = vrot.slane %v2729, 4
        %v2731 = vrot.slane %v2199, 5
        %v2732 = vsel %vm1815, %v2730, %v2731
        %v2733 = vrot.slane %v2731, 4
        %v2734 = vrot.slane %v2223, 5
        %v2735 = vsel %vm1815, %v2733, %v2734
        %v2736 = vrot.slane %v2624, 5
        %v2737 = vrot.slane %v2736, 4
        %v2738 = vrot.slane %v2201, 5
        %v2739 = vsel %vm1815, %v2737, %v2738
        %v2740 = vrot.slane %v2738, 4
        %v2741 = vrot.slane %v2224, 5
        %v2742 = vsel %vm1815, %v2740, %v2741
        %v2743 = vrot.slane %v2625, 5
        %v2744 = vrot.slane %v2743, 4
        %v2745 = vrot.slane %v2203, 5
        %v2746 = vsel %vm1815, %v2744, %v2745
        %v2747 = vrot.slane %v2745, 4
        %v2748 = vrot.slane %v2225, 5
        %v2749 = vsel %vm1815, %v2747, %v2748
        %v2750 = vrot.slane %v2626, 5
        %v2751 = vrot.slane %v2750, 4
        %v2752 = vrot.slane %v2205, 5
        %v2753 = vsel %vm1815, %v2751, %v2752
        %v2754 = vrot.slane %v2752, 4
        %v2755 = vrot.slane %v2226, 5
        %v2756 = vsel %vm1815, %v2754, %v2755
        %v2757 = vrot.slane %v2627, 5
        %v2758 = vrot.slane %v2757, 4
        %v2759 = vrot.slane %v2207, 5
        %v2760 = vsel %vm1815, %v2758, %v2759
        %v2761 = vrot.slane %v2759, 4
        %v2762 = vrot.slane %v2227, 5
        %v2763 = vsel %vm1815, %v2761, %v2762
        %v2764 = vrot.slane %v2628, 5
        %v2765 = vrot.slane %v2764, 4
        %v2766 = vrot.slane %v2209, 5
        %v2767 = vsel %vm1815, %v2765, %v2766
        %v2768 = vrot.slane %v2766, 4
        %v2769 = vrot.slane %v2228, 5
        %v2770 = vsel %vm1815, %v2768, %v2769
        %v2771 = vrot.slane %v2629, 5
        %v2772 = vrot.slane %v2771, 4
        %v2773 = vrot.slane %v2211, 5
        %v2774 = vsel %vm1815, %v2772, %v2773
        %v2775 = vrot.slane %v2773, 4
        %v2776 = vrot.slane %v2229, 5
        %v2777 = vsel %vm1815, %v2775, %v2776
        %v2778 = vrot.slane %v2630, 5
        %v2779 = vrot.slane %v2778, 4
        %v2780 = vrot.slane %v2213, 5
        %v2781 = vsel %vm1815, %v2779, %v2780
        %v2782 = vrot.slane %v2780, 4
        %v2783 = vrot.slane %v2230, 5
        %v2784 = vsel %vm1815, %v2782, %v2783
        %v2785 = vrot.slane %v2631, 5
        %v2786 = vrot.slane %v2785, 4
        %v2787 = vrot.slane %v2215, 5
        %v2788 = vsel %vm1815, %v2786, %v2787
        %v2789 = vrot.slane %v2787, 4
        %v2790 = vrot.slane %v2231, 5
        %v2791 = vsel %vm1815, %v2789, %v2790
        %v2808 = vunpack.c.l.b16 %v2184
        %v2809 = vunpack.c.l.b16 %v2185
        %v2810 = vunpack.c.l.b16 %v2186
        %v2811 = vunpack.c.l.b16 %v2187
        %v2812 = vunpack.c.l.b16 %v2188
        %v2813 = vunpack.c.l.b16 %v2189
        %v2814 = vunpack.c.l.b16 %v2190
        %v2815 = vunpack.c.l.b16 %v2191
        %v2816 = vunpack.c.l.b16 %v2192
        %v2817 = vunpack.c.l.b16 %v2193
        %v2818 = vunpack.c.l.b16 %v2194
        %v2819 = vunpack.c.l.b16 %v2195
        %v2820 = vunpack.c.l.b16 %v2196
        %v2821 = vunpack.c.l.b16 %v2197
        %v2822 = vunpack.c.l.b16 %v2198
        %v2823 = vunpack.c.l.b16 %v2199
        %v2824 = vunpack.c.l.b16 %v2200
        %v2825 = vunpack.c.l.b16 %v2201
        %v2826 = vunpack.c.l.b16 %v2202
        %v2827 = vunpack.c.l.b16 %v2203
        %v2828 = vunpack.c.l.b16 %v2204
        %v2829 = vunpack.c.l.b16 %v2205
        %v2830 = vunpack.c.l.b16 %v2206
        %v2831 = vunpack.c.l.b16 %v2207
        %v2832 = vunpack.c.l.b16 %v2208
        %v2833 = vunpack.c.l.b16 %v2209
        %v2834 = vunpack.c.l.b16 %v2210
        %v2835 = vunpack.c.l.b16 %v2211
        %v2836 = vunpack.c.l.b16 %v2212
        %v2837 = vunpack.c.l.b16 %v2213
        %v2838 = vunpack.c.l.b16 %v2214
        %v2839 = vunpack.c.l.b16 %v2215
        %v2840 = vpack.c.b16 %v2809, %v2808
        %v2841 = vpack.c.b16 %v2811, %v2810
        %v2842 = vpack.c.b16 %v2813, %v2812
        %v2843 = vpack.c.b16 %v2815, %v2814
        %v2844 = vpack.c.b16 %v2817, %v2816
        %v2845 = vpack.c.b16 %v2819, %v2818
        %v2846 = vpack.c.b16 %v2821, %v2820
        %v2847 = vpack.c.b16 %v2823, %v2822
        %v2848 = vpack.c.b16 %v2825, %v2824
        %v2849 = vpack.c.b16 %v2827, %v2826
        %v2850 = vpack.c.b16 %v2829, %v2828
        %v2851 = vpack.c.b16 %v2831, %v2830
        %v2852 = vpack.c.b16 %v2833, %v2832
        %v2853 = vpack.c.b16 %v2835, %v2834
        %v2854 = vpack.c.b16 %v2837, %v2836
        %v2855 = vpack.c.b16 %v2839, %v2838
        %v2872 = vunpack.c.l.b16 %v2245
        %v2873 = vunpack.c.l.b16 %v2255
        %v2874 = vunpack.c.l.b16 %v2269
        %v2875 = vunpack.c.l.b16 %v2279
        %v2876 = vunpack.c.l.b16 %v2293
        %v2877 = vunpack.c.l.b16 %v2303
        %v2878 = vunpack.c.l.b16 %v2317
        %v2879 = vunpack.c.l.b16 %v2327
        %v2880 = vunpack.c.l.b16 %v2341
        %v2881 = vunpack.c.l.b16 %v2351
        %v2882 = vunpack.c.l.b16 %v2365
        %v2883 = vunpack.c.l.b16 %v2375
        %v2884 = vunpack.c.l.b16 %v2389
        %v2885 = vunpack.c.l.b16 %v2399
        %v2886 = vunpack.c.l.b16 %v2413
        %v2887 = vunpack.c.l.b16 %v2423
        %v2888 = vunpack.c.l.b16 %v2437
        %v2889 = vunpack.c.l.b16 %v2447
        %v2890 = vunpack.c.l.b16 %v2461
        %v2891 = vunpack.c.l.b16 %v2471
        %v2892 = vunpack.c.l.b16 %v2485
        %v2893 = vunpack.c.l.b16 %v2495
        %v2894 = vunpack.c.l.b16 %v2509
        %v2895 = vunpack.c.l.b16 %v2519
        %v2896 = vunpack.c.l.b16 %v2533
        %v2897 = vunpack.c.l.b16 %v2543
        %v2898 = vunpack.c.l.b16 %v2557
        %v2899 = vunpack.c.l.b16 %v2567
        %v2900 = vunpack.c.l.b16 %v2581
        %v2901 = vunpack.c.l.b16 %v2591
        %v2902 = vunpack.c.l.b16 %v2605
        %v2903 = vunpack.c.l.b16 %v2615
        %v2904 = vpack.c.b16 %v2873, %v2872
        %v2905 = vpack.c.b16 %v2875, %v2874
        %v2906 = vpack.c.b16 %v2877, %v2876
        %v2907 = vpack.c.b16 %v2879, %v2878
        %v2908 = vpack.c.b16 %v2881, %v2880
        %v2909 = vpack.c.b16 %v2883, %v2882
        %v2910 = vpack.c.b16 %v2885, %v2884
        %v2911 = vpack.c.b16 %v2887, %v2886
        %v2912 = vpack.c.b16 %v2889, %v2888
        %v2913 = vpack.c.b16 %v2891, %v2890
        %v2914 = vpack.c.b16 %v2893, %v2892
        %v2915 = vpack.c.b16 %v2895, %v2894
        %v2916 = vpack.c.b16 %v2897, %v2896
        %v2917 = vpack.c.b16 %v2899, %v2898
        %v2918 = vpack.c.b16 %v2901, %v2900
        %v2919 = vpack.c.b16 %v2903, %v2902
        %v2936 = vunpack.c.l.b16 %v2683
        %v2937 = vunpack.c.l.b16 %v2686
        %v2938 = vunpack.c.l.b16 %v2690
        %v2939 = vunpack.c.l.b16 %v2693
        %v2940 = vunpack.c.l.b16 %v2697
        %v2941 = vunpack.c.l.b16 %v2700
        %v2942 = vunpack.c.l.b16 %v2704
        %v2943 = vunpack.c.l.b16 %v2707
        %v2944 = vunpack.c.l.b16 %v2711
        %v2945 = vunpack.c.l.b16 %v2714
        %v2946 = vunpack.c.l.b16 %v2718
        %v2947 = vunpack.c.l.b16 %v2721
        %v2948 = vunpack.c.l.b16 %v2725
        %v2949 = vunpack.c.l.b16 %v2728
        %v2950 = vunpack.c.l.b16 %v2732
        %v2951 = vunpack.c.l.b16 %v2735
        %v2952 = vunpack.c.l.b16 %v2739
        %v2953 = vunpack.c.l.b16 %v2742
        %v2954 = vunpack.c.l.b16 %v2746
        %v2955 = vunpack.c.l.b16 %v2749
        %v2956 = vunpack.c.l.b16 %v2753
        %v2957 = vunpack.c.l.b16 %v2756
        %v2958 = vunpack.c.l.b16 %v2760
        %v2959 = vunpack.c.l.b16 %v2763
        %v2960 = vunpack.c.l.b16 %v2767
        %v2961 = vunpack.c.l.b16 %v2770
        %v2962 = vunpack.c.l.b16 %v2774
        %v2963 = vunpack.c.l.b16 %v2777
        %v2964 = vunpack.c.l.b16 %v2781
        %v2965 = vunpack.c.l.b16 %v2784
        %v2966 = vunpack.c.l.b16 %v2788
        %v2967 = vunpack.c.l.b16 %v2791
        %v2968 = vpack.c.b16 %v2937, %v2936
        %v2969 = vpack.c.b16 %v2939, %v2938
        %v2970 = vpack.c.b16 %v2941, %v2940
        %v2971 = vpack.c.b16 %v2943, %v2942
        %v2972 = vpack.c.b16 %v2945, %v2944
        %v2973 = vpack.c.b16 %v2947, %v2946
        %v2974 = vpack.c.b16 %v2949, %v2948
        %v2975 = vpack.c.b16 %v2951, %v2950
        %v2976 = vpack.c.b16 %v2953, %v2952
        %v2977 = vpack.c.b16 %v2955, %v2954
        %v2978 = vpack.c.b16 %v2957, %v2956
        %v2979 = vpack.c.b16 %v2959, %v2958
        %v2980 = vpack.c.b16 %v2961, %v2960
        %v2981 = vpack.c.b16 %v2963, %v2962
        %v2982 = vpack.c.b16 %v2965, %v2964
        %v2983 = vpack.c.b16 %v2967, %v2966
        %s3000 = scalar_lea.vmem %s3, 192
        %v3001 = vld [vmem:[%s3000] sm:$0xf]
        %v3002 = vld [vmem:[%s3000 + $0x4] sm:$0xf]
        %v3003 = vld [vmem:[%s3000 + $0x8] sm:$0xf]
        %v3004 = vld [vmem:[%s3000 + $0xc] sm:$0xf]
        %v3005 = vld [vmem:[%s3000 + $0x10] sm:$0xf]
        %v3006 = vld [vmem:[%s3000 + $0x14] sm:$0xf]
        %v3007 = vld [vmem:[%s3000 + $0x18] sm:$0xf]
        %v3008 = vld [vmem:[%s3000 + $0x1c] sm:$0xf]
        %v3009 = vld [vmem:[%s3000 + $0x20] sm:$0xf]
        %v3010 = vld [vmem:[%s3000 + $0x24] sm:$0xf]
        %v3011 = vld [vmem:[%s3000 + $0x28] sm:$0xf]
        %v3012 = vld [vmem:[%s3000 + $0x2c] sm:$0xf]
        %v3013 = vld [vmem:[%s3000 + $0x30] sm:$0xf]
        %v3014 = vld [vmem:[%s3000 + $0x34] sm:$0xf]
        %v3015 = vld [vmem:[%s3000 + $0x38] sm:$0xf]
        %v3016 = vld [vmem:[%s3000 + $0x3c] sm:$0xf]
        %v3017 = vld [vmem:[%s3000 + $0x40] sm:$0xf]
        %v3018 = vld [vmem:[%s3000 + $0x44] sm:$0xf]
        %v3019 = vld [vmem:[%s3000 + $0x48] sm:$0xf]
        %v3020 = vld [vmem:[%s3000 + $0x4c] sm:$0xf]
        %v3021 = vld [vmem:[%s3000 + $0x50] sm:$0xf]
        %v3022 = vld [vmem:[%s3000 + $0x54] sm:$0xf]
        %v3023 = vld [vmem:[%s3000 + $0x58] sm:$0xf]
        %v3024 = vld [vmem:[%s3000 + $0x5c] sm:$0xf]
        %v3025 = vld [vmem:[%s3000 + $0x60] sm:$0xf]
        %v3026 = vld [vmem:[%s3000 + $0x64] sm:$0xf]
        %v3027 = vld [vmem:[%s3000 + $0x68] sm:$0xf]
        %v3028 = vld [vmem:[%s3000 + $0x6c] sm:$0xf]
        %v3029 = vld [vmem:[%s3000 + $0x70] sm:$0xf]
        %v3030 = vld [vmem:[%s3000 + $0x74] sm:$0xf]
        %v3031 = vld [vmem:[%s3000 + $0x78] sm:$0xf]
        %v3032 = vld [vmem:[%s3000 + $0x7c] sm:$0xf]
        %v3033 = vld [vmem:[%s3000 + $0x80] sm:$0xf]
        %v3034 = vld [vmem:[%s3000 + $0x84] sm:$0xf]
        %v3035 = vld [vmem:[%s3000 + $0x88] sm:$0xf]
        %v3036 = vld [vmem:[%s3000 + $0x8c] sm:$0xf]
        %v3037 = vld [vmem:[%s3000 + $0x90] sm:$0xf]
        %v3038 = vld [vmem:[%s3000 + $0x94] sm:$0xf]
        %v3039 = vld [vmem:[%s3000 + $0x98] sm:$0xf]
        %v3040 = vld [vmem:[%s3000 + $0x9c] sm:$0xf]
        %v3041 = vld [vmem:[%s3000 + $0xa0] sm:$0xf]
        %v3042 = vld [vmem:[%s3000 + $0xa4] sm:$0xf]
        %v3043 = vld [vmem:[%s3000 + $0xa8] sm:$0xf]
        %v3044 = vld [vmem:[%s3000 + $0xac] sm:$0xf]
        %v3045 = vld [vmem:[%s3000 + $0xb0] sm:$0xf]
        %v3046 = vld [vmem:[%s3000 + $0xb4] sm:$0xf]
        %v3047 = vld [vmem:[%s3000 + $0xb8] sm:$0xf]
        %v3048 = vld [vmem:[%s3000 + $0xbc] sm:$0xf]
        %v3097 = vunpack.c.l.b16 %v3001
        %v3098 = vunpack.c.l.b16 %v3002
        %v3099 = vunpack.c.l.b16 %v3003
        %v3100 = vunpack.c.l.b16 %v3004
        %v3101 = vunpack.c.l.b16 %v3005
        %v3102 = vunpack.c.l.b16 %v3006
        %v3103 = vunpack.c.l.b16 %v3007
        %v3104 = vunpack.c.l.b16 %v3008
        %v3105 = vunpack.c.l.b16 %v3009
        %v3106 = vunpack.c.l.b16 %v3010
        %v3107 = vunpack.c.l.b16 %v3011
        %v3108 = vunpack.c.l.b16 %v3012
        %v3109 = vunpack.c.l.b16 %v3013
        %v3110 = vunpack.c.l.b16 %v3014
        %v3111 = vunpack.c.l.b16 %v3015
        %v3112 = vunpack.c.l.b16 %v3016
        %v3113 = vunpack.c.l.b16 %v3017
        %v3114 = vunpack.c.l.b16 %v3018
        %v3115 = vunpack.c.l.b16 %v3019
        %v3116 = vunpack.c.l.b16 %v3020
        %v3117 = vunpack.c.l.b16 %v3021
        %v3118 = vunpack.c.l.b16 %v3022
        %v3119 = vunpack.c.l.b16 %v3023
        %v3120 = vunpack.c.l.b16 %v3024
        %v3121 = vunpack.c.l.b16 %v3025
        %v3122 = vunpack.c.l.b16 %v3026
        %v3123 = vunpack.c.l.b16 %v3027
        %v3124 = vunpack.c.l.b16 %v3028
        %v3125 = vunpack.c.l.b16 %v3029
        %v3126 = vunpack.c.l.b16 %v3030
        %v3127 = vunpack.c.l.b16 %v3031
        %v3128 = vunpack.c.l.b16 %v3032
        %v3129 = vunpack.c.l.b16 %v3033
        %v3130 = vunpack.c.l.b16 %v3034
        %v3131 = vunpack.c.l.b16 %v3035
        %v3132 = vunpack.c.l.b16 %v3036
        %v3133 = vunpack.c.l.b16 %v3037
        %v3134 = vunpack.c.l.b16 %v3038
        %v3135 = vunpack.c.l.b16 %v3039
        %v3136 = vunpack.c.l.b16 %v3040
        %v3137 = vunpack.c.l.b16 %v3041
        %v3138 = vunpack.c.l.b16 %v3042
        %v3139 = vunpack.c.l.b16 %v3043
        %v3140 = vunpack.c.l.b16 %v3044
        %v3141 = vunpack.c.l.b16 %v3045
        %v3142 = vunpack.c.l.b16 %v3046
        %v3143 = vunpack.c.l.b16 %v3047
        %v3144 = vunpack.c.l.b16 %v3048
        %v3145 = vpack.c.b16 %v3098, %v3097
        %v3146 = vpack.c.b16 %v3100, %v3099
        %v3147 = vpack.c.b16 %v3102, %v3101
        %v3148 = vpack.c.b16 %v3104, %v3103
        %v3149 = vpack.c.b16 %v3106, %v3105
        %v3150 = vpack.c.b16 %v3108, %v3107
        %v3151 = vpack.c.b16 %v3110, %v3109
        %v3152 = vpack.c.b16 %v3112, %v3111
        %v3153 = vpack.c.b16 %v3114, %v3113
        %v3154 = vpack.c.b16 %v3116, %v3115
        %v3155 = vpack.c.b16 %v3118, %v3117
        %v3156 = vpack.c.b16 %v3120, %v3119
        %v3157 = vpack.c.b16 %v3122, %v3121
        %v3158 = vpack.c.b16 %v3124, %v3123
        %v3159 = vpack.c.b16 %v3126, %v3125
        %v3160 = vpack.c.b16 %v3128, %v3127
        %v3161 = vpack.c.b16 %v3130, %v3129
        %v3162 = vpack.c.b16 %v3132, %v3131
        %v3163 = vpack.c.b16 %v3134, %v3133
        %v3164 = vpack.c.b16 %v3136, %v3135
        %v3165 = vpack.c.b16 %v3138, %v3137
        %v3166 = vpack.c.b16 %v3140, %v3139
        %v3167 = vpack.c.b16 %v3142, %v3141
        %v3168 = vpack.c.b16 %v3144, %v3143
        %3193 = vmatprep.subr.bf16.mxu0 0
        %3194 = vmatpush1.bf16.msra.mxu0 %v3152
        %3195 = vmatprep.subr.bf16.mxu0 0
        %3196 = vmatpush1.bf16.msra.mxu0 %v3151
        %3197 = vmatprep.subr.bf16.mxu0 0
        %3198 = vmatpush1.bf16.msra.mxu0 %v3150
        %3199 = vmatprep.subr.bf16.mxu0 0
        %3200 = vmatpush1.bf16.msra.mxu0 %v3149
        %3201 = vmatprep.subr.bf16.mxu0 0
        %3202 = vmatpush1.bf16.msra.mxu0 %v3148
        %3203 = vmatprep.subr.bf16.mxu0 0
        %3204 = vmatpush1.bf16.msra.mxu0 %v3147
        %3205 = vmatprep.subr.bf16.mxu0 0
        %3206 = vmatpush1.bf16.msra.mxu0 %v3146
        %3207 = vmatprep.subr.bf16.mxu0 0
        %3208 = vmatpush1.bf16.msra.mxu0 %v3145
        %3209 = vmatprep.subr.bf16.mxu0 0
        %3210 = vmatpush2.bf16.msra.mxu0 %v3160
        %3211 = vmatprep.subr.bf16.mxu0 0
        %3212 = vmatpush2.bf16.msra.mxu0 %v3159
        %3213 = vmatprep.subr.bf16.mxu0 0
        %3214 = vmatpush2.bf16.msra.mxu0 %v3158
        %3215 = vmatprep.subr.bf16.mxu0 0
        %3216 = vmatpush2.bf16.msra.mxu0 %v3157
        %3217 = vmatprep.subr.bf16.mxu0 0
        %3218 = vmatpush2.bf16.msra.mxu0 %v3156
        %3219 = vmatprep.subr.bf16.mxu0 0
        %3220 = vmatpush2.bf16.msra.mxu0 %v3155
        %3221 = vmatprep.subr.bf16.mxu0 0
        %3222 = vmatpush2.bf16.msra.mxu0 %v3154
        %3223 = vmatprep.subr.bf16.mxu0 0
        %3224 = vmatpush2.bf16.msra.mxu0 %v3153
        %3225 = vmatprep.mubr.bf16.mxu0 %v2904
        %3226 = vmatmul.mubr.bf16.gmra.mxu0 %v2840
        %v3227 = vpop.f32.mrf.mxu0
        %v3228 = vadd.f32 0.0, %v3227
        %v3229 = vpop.f32.mrf.mxu0
        %v3230 = vpop.f32.mrf.mxu0
        %v3231 = vadd.f32 0.0, %v3230
        %v3232 = vpop.f32.mrf.mxu0
        %3233 = vmatprep.mubr.bf16.mxu0 %v2905
        %3234 = vmatmul.mubr.bf16.gmra.mxu0 %v2841
        %v3235 = vpop.f32.mrf.mxu0
        %v3236 = vadd.f32 0.0, %v3235
        %v3237 = vpop.f32.mrf.mxu0
        %v3238 = vpop.f32.mrf.mxu0
        %v3239 = vadd.f32 0.0, %v3238
        %v3240 = vpop.f32.mrf.mxu0
        %3241 = vmatprep.mubr.bf16.mxu0 %v2906
        %3242 = vmatmul.mubr.bf16.gmra.mxu0 %v2842
        %v3243 = vpop.f32.mrf.mxu0
        %v3244 = vadd.f32 0.0, %v3243
        %v3245 = vpop.f32.mrf.mxu0
        %v3246 = vpop.f32.mrf.mxu0
        %v3247 = vadd.f32 0.0, %v3246
        %v3248 = vpop.f32.mrf.mxu0
        %3249 = vmatprep.mubr.bf16.mxu0 %v2907
        %3250 = vmatmul.mubr.bf16.gmra.mxu0 %v2843
        %v3251 = vpop.f32.mrf.mxu0
        %v3252 = vadd.f32 0.0, %v3251
        %v3253 = vpop.f32.mrf.mxu0
        %v3254 = vpop.f32.mrf.mxu0
        %v3255 = vadd.f32 0.0, %v3254
        %v3256 = vpop.f32.mrf.mxu0
        %3257 = vmatprep.mubr.bf16.mxu0 %v2908
        %3258 = vmatmul.mubr.bf16.gmra.mxu0 %v2844
        %v3259 = vpop.f32.mrf.mxu0
        %v3260 = vadd.f32 0.0, %v3259
        %v3261 = vpop.f32.mrf.mxu0
        %v3262 = vpop.f32.mrf.mxu0
        %v3263 = vadd.f32 0.0, %v3262
        %v3264 = vpop.f32.mrf.mxu0
        %3265 = vmatprep.mubr.bf16.mxu0 %v2909
        %3266 = vmatmul.mubr.bf16.gmra.mxu0 %v2845
        %v3267 = vpop.f32.mrf.mxu0
        %v3268 = vadd.f32 0.0, %v3267
        %v3269 = vpop.f32.mrf.mxu0
        %v3270 = vpop.f32.mrf.mxu0
        %v3271 = vadd.f32 0.0, %v3270
        %v3272 = vpop.f32.mrf.mxu0
        %3273 = vmatprep.mubr.bf16.mxu0 %v2910
        %3274 = vmatmul.mubr.bf16.gmra.mxu0 %v2846
        %v3275 = vpop.f32.mrf.mxu0
        %v3276 = vadd.f32 0.0, %v3275
        %v3277 = vpop.f32.mrf.mxu0
        %v3278 = vpop.f32.mrf.mxu0
        %v3279 = vadd.f32 0.0, %v3278
        %v3280 = vpop.f32.mrf.mxu0
        %3281 = vmatprep.mubr.bf16.mxu0 %v2911
        %3282 = vmatmul.mubr.bf16.gmra.mxu0 %v2847
        %v3283 = vpop.f32.mrf.mxu0
        %v3284 = vadd.f32 0.0, %v3283
        %v3285 = vpop.f32.mrf.mxu0
        %v3286 = vpop.f32.mrf.mxu0
        %v3287 = vadd.f32 0.0, %v3286
        %v3288 = vpop.f32.mrf.mxu0
        %3289 = vmatprep.mubr.bf16.mxu0 %v2912
        %3290 = vmatmul.mubr.bf16.gmra.mxu0 %v2848
        %v3291 = vpop.f32.mrf.mxu0
        %v3292 = vadd.f32 0.0, %v3291
        %v3293 = vpop.f32.mrf.mxu0
        %v3294 = vpop.f32.mrf.mxu0
        %v3295 = vadd.f32 0.0, %v3294
        %v3296 = vpop.f32.mrf.mxu0
        %3297 = vmatprep.mubr.bf16.mxu0 %v2913
        %3298 = vmatmul.mubr.bf16.gmra.mxu0 %v2849
        %v3299 = vpop.f32.mrf.mxu0
        %v3300 = vadd.f32 0.0, %v3299
        %v3301 = vpop.f32.mrf.mxu0
        %v3302 = vpop.f32.mrf.mxu0
        %v3303 = vadd.f32 0.0, %v3302
        %v3304 = vpop.f32.mrf.mxu0
        %3305 = vmatprep.mubr.bf16.mxu0 %v2914
        %3306 = vmatmul.mubr.bf16.gmra.mxu0 %v2850
        %v3307 = vpop.f32.mrf.mxu0
        %v3308 = vadd.f32 0.0, %v3307
        %v3309 = vpop.f32.mrf.mxu0
        %v3310 = vpop.f32.mrf.mxu0
        %v3311 = vadd.f32 0.0, %v3310
        %v3312 = vpop.f32.mrf.mxu0
        %3313 = vmatprep.mubr.bf16.mxu0 %v2915
        %3314 = vmatmul.mubr.bf16.gmra.mxu0 %v2851
        %v3315 = vpop.f32.mrf.mxu0
        %v3316 = vadd.f32 0.0, %v3315
        %v3317 = vpop.f32.mrf.mxu0
        %v3318 = vpop.f32.mrf.mxu0
        %v3319 = vadd.f32 0.0, %v3318
        %v3320 = vpop.f32.mrf.mxu0
        %3321 = vmatprep.mubr.bf16.mxu0 %v2916
        %3322 = vmatmul.mubr.bf16.gmra.mxu0 %v2852
        %v3323 = vpop.f32.mrf.mxu0
        %v3324 = vadd.f32 0.0, %v3323
        %v3325 = vpop.f32.mrf.mxu0
        %v3326 = vpop.f32.mrf.mxu0
        %v3327 = vadd.f32 0.0, %v3326
        %v3328 = vpop.f32.mrf.mxu0
        %3329 = vmatprep.mubr.bf16.mxu0 %v2917
        %3330 = vmatmul.mubr.bf16.gmra.mxu0 %v2853
        %v3331 = vpop.f32.mrf.mxu0
        %v3332 = vadd.f32 0.0, %v3331
        %v3333 = vpop.f32.mrf.mxu0
        %v3334 = vpop.f32.mrf.mxu0
        %v3335 = vadd.f32 0.0, %v3334
        %v3336 = vpop.f32.mrf.mxu0
        %3337 = vmatprep.mubr.bf16.mxu0 %v2918
        %3338 = vmatmul.mubr.bf16.gmra.mxu0 %v2854
        %v3339 = vpop.f32.mrf.mxu0
        %v3340 = vadd.f32 0.0, %v3339
        %v3341 = vpop.f32.mrf.mxu0
        %v3342 = vpop.f32.mrf.mxu0
        %v3343 = vadd.f32 0.0, %v3342
        %v3344 = vpop.f32.mrf.mxu0
        %3345 = vmatprep.mubr.bf16.mxu0 %v2919
        %3346 = vmatmul.mubr.bf16.gmra.mxu0 %v2855
        %v3347 = vpop.f32.mrf.mxu0
        %v3348 = vadd.f32 0.0, %v3347
        %v3349 = vpop.f32.mrf.mxu0
        %v3350 = vpop.f32.mrf.mxu0
        %v3351 = vadd.f32 0.0, %v3350
        %v3352 = vpop.f32.mrf.mxu0
        %3353 = vdwg.mxu0
        %3354 = vmatprep.subr.bf16.mxu0 0
        %3355 = vmatpush1.bf16.msra.mxu0 %v3168
        %3356 = vmatprep.subr.bf16.mxu0 0
        %3357 = vmatpush1.bf16.msra.mxu0 %v3167
        %3358 = vmatprep.subr.bf16.mxu0 0
        %3359 = vmatpush1.bf16.msra.mxu0 %v3166
        %3360 = vmatprep.subr.bf16.mxu0 0
        %3361 = vmatpush1.bf16.msra.mxu0 %v3165
        %3362 = vmatprep.subr.bf16.mxu0 0
        %3363 = vmatpush1.bf16.msra.mxu0 %v3164
        %3364 = vmatprep.subr.bf16.mxu0 0
        %3365 = vmatpush1.bf16.msra.mxu0 %v3163
        %3366 = vmatprep.subr.bf16.mxu0 0
        %3367 = vmatpush1.bf16.msra.mxu0 %v3162
        %3368 = vmatprep.subr.bf16.mxu0 0
        %3369 = vmatpush1.bf16.msra.mxu0 %v3161
        %3370 = vmatprep.subr.bf16.mxu0 0
        %3371 = vmatpush2.bf16.msra.mxu0 0
        %3372 = vmatprep.subr.bf16.mxu0 0
        %3373 = vmatpush2.bf16.msra.mxu0 0
        %3374 = vmatprep.subr.bf16.mxu0 0
        %3375 = vmatpush2.bf16.msra.mxu0 0
        %3376 = vmatprep.subr.bf16.mxu0 0
        %3377 = vmatpush2.bf16.msra.mxu0 0
        %3378 = vmatprep.subr.bf16.mxu0 0
        %3379 = vmatpush2.bf16.msra.mxu0 0
        %3380 = vmatprep.subr.bf16.mxu0 0
        %3381 = vmatpush2.bf16.msra.mxu0 0
        %3382 = vmatprep.subr.bf16.mxu0 0
        %3383 = vmatpush2.bf16.msra.mxu0 0
        %3384 = vmatprep.subr.bf16.mxu0 0
        %3385 = vmatpush2.bf16.msra.mxu0 0
        %3386 = vmatprep.mubr.bf16.mxu0 0
        %3387 = vmatmul.mubr.bf16.gmra.mxu0 %v2968
        %v3388 = vpop.f32.mrf.mxu0
        %v3389 = vadd.f32 %v3228, %v3388
        %v3390 = vpop.f32.mrf.mxu0
        %v3391 = vpop.f32.mrf.mxu0
        %v3392 = vadd.f32 %v3231, %v3391
        %v3393 = vpop.f32.mrf.mxu0
        %3394 = vmatprep.mubr.bf16.mxu0 0
        %3395 = vmatmul.mubr.bf16.gmra.mxu0 %v2969
        %v3396 = vpop.f32.mrf.mxu0
        %v3397 = vadd.f32 %v3236, %v3396
        %v3398 = vpop.f32.mrf.mxu0
        %v3399 = vpop.f32.mrf.mxu0
        %v3400 = vadd.f32 %v3239, %v3399
        %v3401 = vpop.f32.mrf.mxu0
        %3402 = vmatprep.mubr.bf16.mxu0 0
        %3403 = vmatmul.mubr.bf16.gmra.mxu0 %v2970
        %v3404 = vpop.f32.mrf.mxu0
        %v3405 = vadd.f32 %v3244, %v3404
        %v3406 = vpop.f32.mrf.mxu0
        %v3407 = vpop.f32.mrf.mxu0
        %v3408 = vadd.f32 %v3247, %v3407
        %v3409 = vpop.f32.mrf.mxu0
        %3410 = vmatprep.mubr.bf16.mxu0 0
        %3411 = vmatmul.mubr.bf16.gmra.mxu0 %v2971
        %v3412 = vpop.f32.mrf.mxu0
        %v3413 = vadd.f32 %v3252, %v3412
        %v3414 = vpop.f32.mrf.mxu0
        %v3415 = vpop.f32.mrf.mxu0
        %v3416 = vadd.f32 %v3255, %v3415
        %v3417 = vpop.f32.mrf.mxu0
        %3418 = vmatprep.mubr.bf16.mxu0 0
        %3419 = vmatmul.mubr.bf16.gmra.mxu0 %v2972
        %v3420 = vpop.f32.mrf.mxu0
        %v3421 = vadd.f32 %v3260, %v3420
        %v3422 = vpop.f32.mrf.mxu0
        %v3423 = vpop.f32.mrf.mxu0
        %v3424 = vadd.f32 %v3263, %v3423
        %v3425 = vpop.f32.mrf.mxu0
        %3426 = vmatprep.mubr.bf16.mxu0 0
        %3427 = vmatmul.mubr.bf16.gmra.mxu0 %v2973
        %v3428 = vpop.f32.mrf.mxu0
        %v3429 = vadd.f32 %v3268, %v3428
        %v3430 = vpop.f32.mrf.mxu0
        %v3431 = vpop.f32.mrf.mxu0
        %v3432 = vadd.f32 %v3271, %v3431
        %v3433 = vpop.f32.mrf.mxu0
        %3434 = vmatprep.mubr.bf16.mxu0 0
        %3435 = vmatmul.mubr.bf16.gmra.mxu0 %v2974
        %v3436 = vpop.f32.mrf.mxu0
        %v3437 = vadd.f32 %v3276, %v3436
        %v3438 = vpop.f32.mrf.mxu0
        %v3439 = vpop.f32.mrf.mxu0
        %v3440 = vadd.f32 %v3279, %v3439
        %v3441 = vpop.f32.mrf.mxu0
        %3442 = vmatprep.mubr.bf16.mxu0 0
        %3443 = vmatmul.mubr.bf16.gmra.mxu0 %v2975
        %v3444 = vpop.f32.mrf.mxu0
        %v3445 = vadd.f32 %v3284, %v3444
        %v3446 = vpop.f32.mrf.mxu0
        %v3447 = vpop.f32.mrf.mxu0
        %v3448 = vadd.f32 %v3287, %v3447
        %v3449 = vpop.f32.mrf.mxu0
        %3450 = vmatprep.mubr.bf16.mxu0 0
        %3451 = vmatmul.mubr.bf16.gmra.mxu0 %v2976
        %v3452 = vpop.f32.mrf.mxu0
        %v3453 = vadd.f32 %v3292, %v3452
        %v3454 = vpop.f32.mrf.mxu0
        %v3455 = vpop.f32.mrf.mxu0
        %v3456 = vadd.f32 %v3295, %v3455
        %v3457 = vpop.f32.mrf.mxu0
        %3458 = vmatprep.mubr.bf16.mxu0 0
        %3459 = vmatmul.mubr.bf16.gmra.mxu0 %v2977
        %v3460 = vpop.f32.mrf.mxu0
        %v3461 = vadd.f32 %v3300, %v3460
        %v3462 = vpop.f32.mrf.mxu0
        %v3463 = vpop.f32.mrf.mxu0
        %v3464 = vadd.f32 %v3303, %v3463
        %v3465 = vpop.f32.mrf.mxu0
        %3466 = vmatprep.mubr.bf16.mxu0 0
        %3467 = vmatmul.mubr.bf16.gmra.mxu0 %v2978
        %v3468 = vpop.f32.mrf.mxu0
        %v3469 = vadd.f32 %v3308, %v3468
        %v3470 = vpop.f32.mrf.mxu0
        %v3471 = vpop.f32.mrf.mxu0
        %v3472 = vadd.f32 %v3311, %v3471
        %v3473 = vpop.f32.mrf.mxu0
        %3474 = vmatprep.mubr.bf16.mxu0 0
        %3475 = vmatmul.mubr.bf16.gmra.mxu0 %v2979
        %v3476 = vpop.f32.mrf.mxu0
        %v3477 = vadd.f32 %v3316, %v3476
        %v3478 = vpop.f32.mrf.mxu0
        %v3479 = vpop.f32.mrf.mxu0
        %v3480 = vadd.f32 %v3319, %v3479
        %v3481 = vpop.f32.mrf.mxu0
        %3482 = vmatprep.mubr.bf16.mxu0 0
        %3483 = vmatmul.mubr.bf16.gmra.mxu0 %v2980
        %v3484 = vpop.f32.mrf.mxu0
        %v3485 = vadd.f32 %v3324, %v3484
        %v3486 = vpop.f32.mrf.mxu0
        %v3487 = vpop.f32.mrf.mxu0
        %v3488 = vadd.f32 %v3327, %v3487
        %v3489 = vpop.f32.mrf.mxu0
        %3490 = vmatprep.mubr.bf16.mxu0 0
        %3491 = vmatmul.mubr.bf16.gmra.mxu0 %v2981
        %v3492 = vpop.f32.mrf.mxu0
        %v3493 = vadd.f32 %v3332, %v3492
        %v3494 = vpop.f32.mrf.mxu0
        %v3495 = vpop.f32.mrf.mxu0
        %v3496 = vadd.f32 %v3335, %v3495
        %v3497 = vpop.f32.mrf.mxu0
        %3498 = vmatprep.mubr.bf16.mxu0 0
        %3499 = vmatmul.mubr.bf16.gmra.mxu0 %v2982
        %v3500 = vpop.f32.mrf.mxu0
        %v3501 = vadd.f32 %v3340, %v3500
        %v3502 = vpop.f32.mrf.mxu0
        %v3503 = vpop.f32.mrf.mxu0
        %v3504 = vadd.f32 %v3343, %v3503
        %v3505 = vpop.f32.mrf.mxu0
        %3506 = vmatprep.mubr.bf16.mxu0 0
        %3507 = vmatmul.mubr.bf16.gmra.mxu0 %v2983
        %v3508 = vpop.f32.mrf.mxu0
        %v3509 = vadd.f32 %v3348, %v3508
        %v3510 = vpop.f32.mrf.mxu0
        %v3511 = vpop.f32.mrf.mxu0
        %v3512 = vadd.f32 %v3351, %v3511
        %v3513 = vpop.f32.mrf.mxu0
        %3514 = vdwg.mxu0
        %v3563 = vunpack.c.l.b16 %v2136
        %v3564 = vunpack.c.l.b16 %v2137
        %v3565 = vunpack.c.l.b16 %v2138
        %v3566 = vunpack.c.l.b16 %v2139
        %v3567 = vunpack.c.l.b16 %v2140
        %v3568 = vunpack.c.l.b16 %v2141
        %v3569 = vunpack.c.l.b16 %v2142
        %v3570 = vunpack.c.l.b16 %v2143
        %v3571 = vunpack.c.l.b16 %v2144
        %v3572 = vunpack.c.l.b16 %v2145
        %v3573 = vunpack.c.l.b16 %v2146
        %v3574 = vunpack.c.l.b16 %v2147
        %v3575 = vunpack.c.l.b16 %v2148
        %v3576 = vunpack.c.l.b16 %v2149
        %v3577 = vunpack.c.l.b16 %v2150
        %v3578 = vunpack.c.l.b16 %v2151
        %v3579 = vunpack.c.l.b16 %v2152
        %v3580 = vunpack.c.l.b16 %v2153
        %v3581 = vunpack.c.l.b16 %v2154
        %v3582 = vunpack.c.l.b16 %v2155
        %v3583 = vunpack.c.l.b16 %v2156
        %v3584 = vunpack.c.l.b16 %v2157
        %v3585 = vunpack.c.l.b16 %v2158
        %v3586 = vunpack.c.l.b16 %v2159
        %v3587 = vunpack.c.l.b16 %v2160
        %v3588 = vunpack.c.l.b16 %v2161
        %v3589 = vunpack.c.l.b16 %v2162
        %v3590 = vunpack.c.l.b16 %v2163
        %v3591 = vunpack.c.l.b16 %v2164
        %v3592 = vunpack.c.l.b16 %v2165
        %v3593 = vunpack.c.l.b16 %v2166
        %v3594 = vunpack.c.l.b16 %v2167
        %v3595 = vunpack.c.l.b16 %v2168
        %v3596 = vunpack.c.l.b16 %v2169
        %v3597 = vunpack.c.l.b16 %v2170
        %v3598 = vunpack.c.l.b16 %v2171
        %v3599 = vunpack.c.l.b16 %v2172
        %v3600 = vunpack.c.l.b16 %v2173
        %v3601 = vunpack.c.l.b16 %v2174
        %v3602 = vunpack.c.l.b16 %v2175
        %v3603 = vunpack.c.l.b16 %v2176
        %v3604 = vunpack.c.l.b16 %v2177
        %v3605 = vunpack.c.l.b16 %v2178
        %v3606 = vunpack.c.l.b16 %v2179
        %v3607 = vunpack.c.l.b16 %v2180
        %v3608 = vunpack.c.l.b16 %v2181
        %v3609 = vunpack.c.l.b16 %v2182
        %v3610 = vunpack.c.l.b16 %v2183
        %v3611 = vpack.c.b16 %v3564, %v3563
        %v3612 = vpack.c.b16 %v3566, %v3565
        %v3613 = vpack.c.b16 %v3568, %v3567
        %v3614 = vpack.c.b16 %v3570, %v3569
        %v3615 = vpack.c.b16 %v3572, %v3571
        %v3616 = vpack.c.b16 %v3574, %v3573
        %v3617 = vpack.c.b16 %v3576, %v3575
        %v3618 = vpack.c.b16 %v3578, %v3577
        %v3619 = vpack.c.b16 %v3580, %v3579
        %v3620 = vpack.c.b16 %v3582, %v3581
        %v3621 = vpack.c.b16 %v3584, %v3583
        %v3622 = vpack.c.b16 %v3586, %v3585
        %v3623 = vpack.c.b16 %v3588, %v3587
        %v3624 = vpack.c.b16 %v3590, %v3589
        %v3625 = vpack.c.b16 %v3592, %v3591
        %v3626 = vpack.c.b16 %v3594, %v3593
        %v3627 = vpack.c.b16 %v3596, %v3595
        %v3628 = vpack.c.b16 %v3598, %v3597
        %v3629 = vpack.c.b16 %v3600, %v3599
        %v3630 = vpack.c.b16 %v3602, %v3601
        %v3631 = vpack.c.b16 %v3604, %v3603
        %v3632 = vpack.c.b16 %v3606, %v3605
        %v3633 = vpack.c.b16 %v3608, %v3607
        %v3634 = vpack.c.b16 %v3610, %v3609
        %3659 = vmatprep.subr.bf16.mxu0 0
        %3660 = vmatpush1.bf16.msra.mxu0 %v3618
        %3661 = vmatprep.subr.bf16.mxu0 0
        %3662 = vmatpush1.bf16.msra.mxu0 %v3617
        %3663 = vmatprep.subr.bf16.mxu0 0
        %3664 = vmatpush1.bf16.msra.mxu0 %v3616
        %3665 = vmatprep.subr.bf16.mxu0 0
        %3666 = vmatpush1.bf16.msra.mxu0 %v3615
        %3667 = vmatprep.subr.bf16.mxu0 0
        %3668 = vmatpush1.bf16.msra.mxu0 %v3614
        %3669 = vmatprep.subr.bf16.mxu0 0
        %3670 = vmatpush1.bf16.msra.mxu0 %v3613
        %3671 = vmatprep.subr.bf16.mxu0 0
        %3672 = vmatpush1.bf16.msra.mxu0 %v3612
        %3673 = vmatprep.subr.bf16.mxu0 0
        %3674 = vmatpush1.bf16.msra.mxu0 %v3611
        %3675 = vmatprep.subr.bf16.mxu0 0
        %3676 = vmatpush2.bf16.msra.mxu0 %v3626
        %3677 = vmatprep.subr.bf16.mxu0 0
        %3678 = vmatpush2.bf16.msra.mxu0 %v3625
        %3679 = vmatprep.subr.bf16.mxu0 0
        %3680 = vmatpush2.bf16.msra.mxu0 %v3624
        %3681 = vmatprep.subr.bf16.mxu0 0
        %3682 = vmatpush2.bf16.msra.mxu0 %v3623
        %3683 = vmatprep.subr.bf16.mxu0 0
        %3684 = vmatpush2.bf16.msra.mxu0 %v3622
        %3685 = vmatprep.subr.bf16.mxu0 0
        %3686 = vmatpush2.bf16.msra.mxu0 %v3621
        %3687 = vmatprep.subr.bf16.mxu0 0
        %3688 = vmatpush2.bf16.msra.mxu0 %v3620
        %3689 = vmatprep.subr.bf16.mxu0 0
        %3690 = vmatpush2.bf16.msra.mxu0 %v3619
        %3691 = vmatprep.mubr.bf16.mxu0 %v2040
        %3692 = vmatmul.mubr.bf16.gmra.mxu0 %v1976
        %v3693 = vpop.f32.mrf.mxu0
        %v3694 = vadd.f32 %v3389, %v3693
        %v3695 = vpop.f32.mrf.mxu0
        %v3696 = vpop.f32.mrf.mxu0
        %v3697 = vadd.f32 %v3392, %v3696
        %v3698 = vpop.f32.mrf.mxu0
        %3699 = vmatprep.mubr.bf16.mxu0 %v2041
        %3700 = vmatmul.mubr.bf16.gmra.mxu0 %v1977
        %v3701 = vpop.f32.mrf.mxu0
        %v3702 = vadd.f32 %v3397, %v3701
        %v3703 = vpop.f32.mrf.mxu0
        %v3704 = vpop.f32.mrf.mxu0
        %v3705 = vadd.f32 %v3400, %v3704
        %v3706 = vpop.f32.mrf.mxu0
        %3707 = vmatprep.mubr.bf16.mxu0 %v2042
        %3708 = vmatmul.mubr.bf16.gmra.mxu0 %v1978
        %v3709 = vpop.f32.mrf.mxu0
        %v3710 = vadd.f32 %v3405, %v3709
        %v3711 = vpop.f32.mrf.mxu0
        %v3712 = vpop.f32.mrf.mxu0
        %v3713 = vadd.f32 %v3408, %v3712
        %v3714 = vpop.f32.mrf.mxu0
        %3715 = vmatprep.mubr.bf16.mxu0 %v2043
        %3716 = vmatmul.mubr.bf16.gmra.mxu0 %v1979
        %v3717 = vpop.f32.mrf.mxu0
        %v3718 = vadd.f32 %v3413, %v3717
        %v3719 = vpop.f32.mrf.mxu0
        %v3720 = vpop.f32.mrf.mxu0
        %v3721 = vadd.f32 %v3416, %v3720
        %v3722 = vpop.f32.mrf.mxu0
        %3723 = vmatprep.mubr.bf16.mxu0 %v2044
        %3724 = vmatmul.mubr.bf16.gmra.mxu0 %v1980
        %v3725 = vpop.f32.mrf.mxu0
        %v3726 = vadd.f32 %v3421, %v3725
        %v3727 = vpop.f32.mrf.mxu0
        %v3728 = vpop.f32.mrf.mxu0
        %v3729 = vadd.f32 %v3424, %v3728
        %v3730 = vpop.f32.mrf.mxu0
        %3731 = vmatprep.mubr.bf16.mxu0 %v2045
        %3732 = vmatmul.mubr.bf16.gmra.mxu0 %v1981
        %v3733 = vpop.f32.mrf.mxu0
        %v3734 = vadd.f32 %v3429, %v3733
        %v3735 = vpop.f32.mrf.mxu0
        %v3736 = vpop.f32.mrf.mxu0
        %v3737 = vadd.f32 %v3432, %v3736
        %v3738 = vpop.f32.mrf.mxu0
        %3739 = vmatprep.mubr.bf16.mxu0 %v2046
        %3740 = vmatmul.mubr.bf16.gmra.mxu0 %v1982
        %v3741 = vpop.f32.mrf.mxu0
        %v3742 = vadd.f32 %v3437, %v3741
        %v3743 = vpop.f32.mrf.mxu0
        %v3744 = vpop.f32.mrf.mxu0
        %v3745 = vadd.f32 %v3440, %v3744
        %v3746 = vpop.f32.mrf.mxu0
        %3747 = vmatprep.mubr.bf16.mxu0 %v2047
        %3748 = vmatmul.mubr.bf16.gmra.mxu0 %v1983
        %v3749 = vpop.f32.mrf.mxu0
        %v3750 = vadd.f32 %v3445, %v3749
        %v3751 = vpop.f32.mrf.mxu0
        %v3752 = vpop.f32.mrf.mxu0
        %v3753 = vadd.f32 %v3448, %v3752
        %v3754 = vpop.f32.mrf.mxu0
        %3755 = vmatprep.mubr.bf16.mxu0 %v2048
        %3756 = vmatmul.mubr.bf16.gmra.mxu0 %v1984
        %v3757 = vpop.f32.mrf.mxu0
        %v3758 = vadd.f32 %v3453, %v3757
        %v3759 = vpop.f32.mrf.mxu0
        %v3760 = vpop.f32.mrf.mxu0
        %v3761 = vadd.f32 %v3456, %v3760
        %v3762 = vpop.f32.mrf.mxu0
        %3763 = vmatprep.mubr.bf16.mxu0 %v2049
        %3764 = vmatmul.mubr.bf16.gmra.mxu0 %v1985
        %v3765 = vpop.f32.mrf.mxu0
        %v3766 = vadd.f32 %v3461, %v3765
        %v3767 = vpop.f32.mrf.mxu0
        %v3768 = vpop.f32.mrf.mxu0
        %v3769 = vadd.f32 %v3464, %v3768
        %v3770 = vpop.f32.mrf.mxu0
        %3771 = vmatprep.mubr.bf16.mxu0 %v2050
        %3772 = vmatmul.mubr.bf16.gmra.mxu0 %v1986
        %v3773 = vpop.f32.mrf.mxu0
        %v3774 = vadd.f32 %v3469, %v3773
        %v3775 = vpop.f32.mrf.mxu0
        %v3776 = vpop.f32.mrf.mxu0
        %v3777 = vadd.f32 %v3472, %v3776
        %v3778 = vpop.f32.mrf.mxu0
        %3779 = vmatprep.mubr.bf16.mxu0 %v2051
        %3780 = vmatmul.mubr.bf16.gmra.mxu0 %v1987
        %v3781 = vpop.f32.mrf.mxu0
        %v3782 = vadd.f32 %v3477, %v3781
        %v3783 = vpop.f32.mrf.mxu0
        %v3784 = vpop.f32.mrf.mxu0
        %v3785 = vadd.f32 %v3480, %v3784
        %v3786 = vpop.f32.mrf.mxu0
        %3787 = vmatprep.mubr.bf16.mxu0 %v2052
        %3788 = vmatmul.mubr.bf16.gmra.mxu0 %v1988
        %v3789 = vpop.f32.mrf.mxu0
        %v3790 = vadd.f32 %v3485, %v3789
        %v3791 = vpop.f32.mrf.mxu0
        %v3792 = vpop.f32.mrf.mxu0
        %v3793 = vadd.f32 %v3488, %v3792
        %v3794 = vpop.f32.mrf.mxu0
        %3795 = vmatprep.mubr.bf16.mxu0 %v2053
        %3796 = vmatmul.mubr.bf16.gmra.mxu0 %v1989
        %v3797 = vpop.f32.mrf.mxu0
        %v3798 = vadd.f32 %v3493, %v3797
        %v3799 = vpop.f32.mrf.mxu0
        %v3800 = vpop.f32.mrf.mxu0
        %v3801 = vadd.f32 %v3496, %v3800
        %v3802 = vpop.f32.mrf.mxu0
        %3803 = vmatprep.mubr.bf16.mxu0 %v2054
        %3804 = vmatmul.mubr.bf16.gmra.mxu0 %v1990
        %v3805 = vpop.f32.mrf.mxu0
        %v3806 = vadd.f32 %v3501, %v3805
        %v3807 = vpop.f32.mrf.mxu0
        %v3808 = vpop.f32.mrf.mxu0
        %v3809 = vadd.f32 %v3504, %v3808
        %v3810 = vpop.f32.mrf.mxu0
        %3811 = vmatprep.mubr.bf16.mxu0 %v2055
        %3812 = vmatmul.mubr.bf16.gmra.mxu0 %v1991
        %v3813 = vpop.f32.mrf.mxu0
        %v3814 = vadd.f32 %v3509, %v3813
        %v3815 = vpop.f32.mrf.mxu0
        %v3816 = vpop.f32.mrf.mxu0
        %v3817 = vadd.f32 %v3512, %v3816
        %v3818 = vpop.f32.mrf.mxu0
        %3819 = vdwg.mxu0
        %3820 = vmatprep.subr.bf16.mxu0 0
        %3821 = vmatpush1.bf16.msra.mxu0 %v3634
        %3822 = vmatprep.subr.bf16.mxu0 0
        %3823 = vmatpush1.bf16.msra.mxu0 %v3633
        %3824 = vmatprep.subr.bf16.mxu0 0
        %3825 = vmatpush1.bf16.msra.mxu0 %v3632
        %3826 = vmatprep.subr.bf16.mxu0 0
        %3827 = vmatpush1.bf16.msra.mxu0 %v3631
        %3828 = vmatprep.subr.bf16.mxu0 0
        %3829 = vmatpush1.bf16.msra.mxu0 %v3630
        %3830 = vmatprep.subr.bf16.mxu0 0
        %3831 = vmatpush1.bf16.msra.mxu0 %v3629
        %3832 = vmatprep.subr.bf16.mxu0 0
        %3833 = vmatpush1.bf16.msra.mxu0 %v3628
        %3834 = vmatprep.subr.bf16.mxu0 0
        %3835 = vmatpush1.bf16.msra.mxu0 %v3627
        %3836 = vmatprep.subr.bf16.mxu0 0
        %3837 = vmatpush2.bf16.msra.mxu0 0
        %3838 = vmatprep.subr.bf16.mxu0 0
        %3839 = vmatpush2.bf16.msra.mxu0 0
        %3840 = vmatprep.subr.bf16.mxu0 0
        %3841 = vmatpush2.bf16.msra.mxu0 0
        %3842 = vmatprep.subr.bf16.mxu0 0
        %3843 = vmatpush2.bf16.msra.mxu0 0
        %3844 = vmatprep.subr.bf16.mxu0 0
        %3845 = vmatpush2.bf16.msra.mxu0 0
        %3846 = vmatprep.subr.bf16.mxu0 0
        %3847 = vmatpush2.bf16.msra.mxu0 0
        %3848 = vmatprep.subr.bf16.mxu0 0
        %3849 = vmatpush2.bf16.msra.mxu0 0
        %3850 = vmatprep.subr.bf16.mxu0 0
        %3851 = vmatpush2.bf16.msra.mxu0 0
        %3852 = vmatprep.mubr.bf16.mxu0 0
        %3853 = vmatmul.mubr.bf16.gmra.mxu0 %v2104
        %v3854 = vpop.f32.mrf.mxu0
        %v3855 = vadd.f32 %v3694, %v3854
        %v3856 = vpop.f32.mrf.mxu0
        %v3857 = vpop.f32.mrf.mxu0
        %v3858 = vadd.f32 %v3697, %v3857
        %v3859 = vpop.f32.mrf.mxu0
        %3860 = vmatprep.mubr.bf16.mxu0 0
        %3861 = vmatmul.mubr.bf16.gmra.mxu0 %v2105
        %v3862 = vpop.f32.mrf.mxu0
        %v3863 = vadd.f32 %v3702, %v3862
        %v3864 = vpop.f32.mrf.mxu0
        %v3865 = vpop.f32.mrf.mxu0
        %v3866 = vadd.f32 %v3705, %v3865
        %v3867 = vpop.f32.mrf.mxu0
        %3868 = vmatprep.mubr.bf16.mxu0 0
        %3869 = vmatmul.mubr.bf16.gmra.mxu0 %v2106
        %v3870 = vpop.f32.mrf.mxu0
        %v3871 = vadd.f32 %v3710, %v3870
        %v3872 = vpop.f32.mrf.mxu0
        %v3873 = vpop.f32.mrf.mxu0
        %v3874 = vadd.f32 %v3713, %v3873
        %v3875 = vpop.f32.mrf.mxu0
        %3876 = vmatprep.mubr.bf16.mxu0 0
        %3877 = vmatmul.mubr.bf16.gmra.mxu0 %v2107
        %v3878 = vpop.f32.mrf.mxu0
        %v3879 = vadd.f32 %v3718, %v3878
        %v3880 = vpop.f32.mrf.mxu0
        %v3881 = vpop.f32.mrf.mxu0
        %v3882 = vadd.f32 %v3721, %v3881
        %v3883 = vpop.f32.mrf.mxu0
        %3884 = vmatprep.mubr.bf16.mxu0 0
        %3885 = vmatmul.mubr.bf16.gmra.mxu0 %v2108
        %v3886 = vpop.f32.mrf.mxu0
        %v3887 = vadd.f32 %v3726, %v3886
        %v3888 = vpop.f32.mrf.mxu0
        %v3889 = vpop.f32.mrf.mxu0
        %v3890 = vadd.f32 %v3729, %v3889
        %v3891 = vpop.f32.mrf.mxu0
        %3892 = vmatprep.mubr.bf16.mxu0 0
        %3893 = vmatmul.mubr.bf16.gmra.mxu0 %v2109
        %v3894 = vpop.f32.mrf.mxu0
        %v3895 = vadd.f32 %v3734, %v3894
        %v3896 = vpop.f32.mrf.mxu0
        %v3897 = vpop.f32.mrf.mxu0
        %v3898 = vadd.f32 %v3737, %v3897
        %v3899 = vpop.f32.mrf.mxu0
        %3900 = vmatprep.mubr.bf16.mxu0 0
        %3901 = vmatmul.mubr.bf16.gmra.mxu0 %v2110
        %v3902 = vpop.f32.mrf.mxu0
        %v3903 = vadd.f32 %v3742, %v3902
        %v3904 = vpop.f32.mrf.mxu0
        %v3905 = vpop.f32.mrf.mxu0
        %v3906 = vadd.f32 %v3745, %v3905
        %v3907 = vpop.f32.mrf.mxu0
        %3908 = vmatprep.mubr.bf16.mxu0 0
        %3909 = vmatmul.mubr.bf16.gmra.mxu0 %v2111
        %v3910 = vpop.f32.mrf.mxu0
        %v3911 = vadd.f32 %v3750, %v3910
        %v3912 = vpop.f32.mrf.mxu0
        %v3913 = vpop.f32.mrf.mxu0
        %v3914 = vadd.f32 %v3753, %v3913
        %v3915 = vpop.f32.mrf.mxu0
        %3916 = vmatprep.mubr.bf16.mxu0 0
        %3917 = vmatmul.mubr.bf16.gmra.mxu0 %v2112
        %v3918 = vpop.f32.mrf.mxu0
        %v3919 = vadd.f32 %v3758, %v3918
        %v3920 = vpop.f32.mrf.mxu0
        %v3921 = vpop.f32.mrf.mxu0
        %v3922 = vadd.f32 %v3761, %v3921
        %v3923 = vpop.f32.mrf.mxu0
        %3924 = vmatprep.mubr.bf16.mxu0 0
        %3925 = vmatmul.mubr.bf16.gmra.mxu0 %v2113
        %v3926 = vpop.f32.mrf.mxu0
        %v3927 = vadd.f32 %v3766, %v3926
        %v3928 = vpop.f32.mrf.mxu0
        %v3929 = vpop.f32.mrf.mxu0
        %v3930 = vadd.f32 %v3769, %v3929
        %v3931 = vpop.f32.mrf.mxu0
        %3932 = vmatprep.mubr.bf16.mxu0 0
        %3933 = vmatmul.mubr.bf16.gmra.mxu0 %v2114
        %v3934 = vpop.f32.mrf.mxu0
        %v3935 = vadd.f32 %v3774, %v3934
        %v3936 = vpop.f32.mrf.mxu0
        %v3937 = vpop.f32.mrf.mxu0
        %v3938 = vadd.f32 %v3777, %v3937
        %v3939 = vpop.f32.mrf.mxu0
        %3940 = vmatprep.mubr.bf16.mxu0 0
        %3941 = vmatmul.mubr.bf16.gmra.mxu0 %v2115
        %v3942 = vpop.f32.mrf.mxu0
        %v3943 = vadd.f32 %v3782, %v3942
        %v3944 = vpop.f32.mrf.mxu0
        %v3945 = vpop.f32.mrf.mxu0
        %v3946 = vadd.f32 %v3785, %v3945
        %v3947 = vpop.f32.mrf.mxu0
        %3948 = vmatprep.mubr.bf16.mxu0 0
        %3949 = vmatmul.mubr.bf16.gmra.mxu0 %v2116
        %v3950 = vpop.f32.mrf.mxu0
        %v3951 = vadd.f32 %v3790, %v3950
        %v3952 = vpop.f32.mrf.mxu0
        %v3953 = vpop.f32.mrf.mxu0
        %v3954 = vadd.f32 %v3793, %v3953
        %v3955 = vpop.f32.mrf.mxu0
        %3956 = vmatprep.mubr.bf16.mxu0 0
        %3957 = vmatmul.mubr.bf16.gmra.mxu0 %v2117
        %v3958 = vpop.f32.mrf.mxu0
        %v3959 = vadd.f32 %v3798, %v3958
        %v3960 = vpop.f32.mrf.mxu0
        %v3961 = vpop.f32.mrf.mxu0
        %v3962 = vadd.f32 %v3801, %v3961
        %v3963 = vpop.f32.mrf.mxu0
        %3964 = vmatprep.mubr.bf16.mxu0 0
        %3965 = vmatmul.mubr.bf16.gmra.mxu0 %v2118
        %v3966 = vpop.f32.mrf.mxu0
        %v3967 = vadd.f32 %v3806, %v3966
        %v3968 = vpop.f32.mrf.mxu0
        %v3969 = vpop.f32.mrf.mxu0
        %v3970 = vadd.f32 %v3809, %v3969
        %v3971 = vpop.f32.mrf.mxu0
        %3972 = vmatprep.mubr.bf16.mxu0 0
        %3973 = vmatmul.mubr.bf16.gmra.mxu0 %v2119
        %v3974 = vpop.f32.mrf.mxu0
        %v3975 = vadd.f32 %v3814, %v3974
        %v3976 = vpop.f32.mrf.mxu0
        %v3977 = vpop.f32.mrf.mxu0
        %v3978 = vadd.f32 %v3817, %v3977
        %v3979 = vpop.f32.mrf.mxu0
        %3980 = vdwg.mxu0
        %s3981 = scalar_lea.vmem [#allocation2], 24
        %v3982 = vld [vmem:[%s3981] sm:$0xf]
        %v3983 = vld [vmem:[%s3981 + $0x4] sm:$0xf]
        %v3984 = vld [vmem:[%s3981 + $0xc] sm:$0xf]
        %v3985 = vld [vmem:[%s3981 + $0x10] sm:$0xf]
        %v3986 = vld [vmem:[%s3981 + $0x18] sm:$0xf]
        %v3987 = vld [vmem:[%s3981 + $0x1c] sm:$0xf]
        %v3988 = vld [vmem:[%s3981 + $0x24] sm:$0xf]
        %v3989 = vld [vmem:[%s3981 + $0x28] sm:$0xf]
        %v3990 = vld [vmem:[%s3981 + $0x30] sm:$0xf]
        %v3991 = vld [vmem:[%s3981 + $0x34] sm:$0xf]
        %v3992 = vld [vmem:[%s3981 + $0x3c] sm:$0xf]
        %v3993 = vld [vmem:[%s3981 + $0x40] sm:$0xf]
        %v3994 = vld [vmem:[%s3981 + $0x48] sm:$0xf]
        %v3995 = vld [vmem:[%s3981 + $0x4c] sm:$0xf]
        %v3996 = vld [vmem:[%s3981 + $0x54] sm:$0xf]
        %v3997 = vld [vmem:[%s3981 + $0x58] sm:$0xf]
        %v3998 = vld [vmem:[%s3981 + $0x60] sm:$0xf]
        %v3999 = vld [vmem:[%s3981 + $0x64] sm:$0xf]
        %v4000 = vld [vmem:[%s3981 + $0x6c] sm:$0xf]
        %v4001 = vld [vmem:[%s3981 + $0x70] sm:$0xf]
        %v4002 = vld [vmem:[%s3981 + $0x78] sm:$0xf]
        %v4003 = vld [vmem:[%s3981 + $0x7c] sm:$0xf]
        %v4004 = vld [vmem:[%s3981 + $0x84] sm:$0xf]
        %v4005 = vld [vmem:[%s3981 + $0x88] sm:$0xf]
        %v4006 = vld [vmem:[%s3981 + $0x90] sm:$0xf]
        %v4007 = vld [vmem:[%s3981 + $0x94] sm:$0xf]
        %v4008 = vld [vmem:[%s3981 + $0x9c] sm:$0xf]
        %v4009 = vld [vmem:[%s3981 + $0xa0] sm:$0xf]
        %v4010 = vld [vmem:[%s3981 + $0xa8] sm:$0xf]
        %v4011 = vld [vmem:[%s3981 + $0xac] sm:$0xf]
        %v4012 = vld [vmem:[%s3981 + $0xb4] sm:$0xf]
        %v4013 = vld [vmem:[%s3981 + $0xb8] sm:$0xf]
        %v4014 = vld [vmem:[%s3981 + $0x8] sm:$0x1]
        %v4015 = vld [vmem:[%s3981 + $0x14] sm:$0x1]
        %v4016 = vld [vmem:[%s3981 + $0x20] sm:$0x1]
        %v4017 = vld [vmem:[%s3981 + $0x2c] sm:$0x1]
        %v4018 = vld [vmem:[%s3981 + $0x38] sm:$0x1]
        %v4019 = vld [vmem:[%s3981 + $0x44] sm:$0x1]
        %v4020 = vld [vmem:[%s3981 + $0x50] sm:$0x1]
        %v4021 = vld [vmem:[%s3981 + $0x5c] sm:$0x1]
        %v4022 = vld [vmem:[%s3981 + $0x68] sm:$0x1]
        %v4023 = vld [vmem:[%s3981 + $0x74] sm:$0x1]
        %v4024 = vld [vmem:[%s3981 + $0x80] sm:$0x1]
        %v4025 = vld [vmem:[%s3981 + $0x8c] sm:$0x1]
        %v4026 = vld [vmem:[%s3981 + $0x98] sm:$0x1]
        %v4027 = vld [vmem:[%s3981 + $0xa4] sm:$0x1]
        %v4028 = vld [vmem:[%s3981 + $0xb0] sm:$0x1]
        %v4029 = vld [vmem:[%s3981 + $0xbc] sm:$0x1]
        %v4031 = vshrl.u32 %v3982, 16
        %v4033 = vrot.slane %v4031, 4
        %v4034 = vshll.u32 %v3982, 16
        %v4036 = vrot.slane %v4034, 5
        %v4037 = vor.u32 %v4033, %v4036
        %v4038 = vrot.slane %v4037, 4
        %v4040 = vshll.u32 %v3983, 16
        %v4042 = vrot.slane %v4040, 5
        %v4043 = vsel %vm1364, %v4038, %v4042
        %v4044 = vshrl.u32 %v3983, 16
        %v4046 = vrot.slane %v4044, 4
        %v4047 = vor.u32 %v4046, %v4042
        %v4048 = vrot.slane %v4047, 4
        %v4050 = vshll.u32 %v4014, 16
        %v4052 = vrot.slane %v4050, 5
        %v4053 = vsel %vm1364, %v4048, %v4052
        %v4055 = vshrl.u32 %v3984, 16
        %v4057 = vrot.slane %v4055, 4
        %v4058 = vshll.u32 %v3984, 16
        %v4060 = vrot.slane %v4058, 5
        %v4061 = vor.u32 %v4057, %v4060
        %v4062 = vrot.slane %v4061, 4
        %v4064 = vshll.u32 %v3985, 16
        %v4066 = vrot.slane %v4064, 5
        %v4067 = vsel %vm1364, %v4062, %v4066
        %v4068 = vshrl.u32 %v3985, 16
        %v4070 = vrot.slane %v4068, 4
        %v4071 = vor.u32 %v4070, %v4066
        %v4072 = vrot.slane %v4071, 4
        %v4074 = vshll.u32 %v4015, 16
        %v4076 = vrot.slane %v4074, 5
        %v4077 = vsel %vm1364, %v4072, %v4076
        %v4079 = vshrl.u32 %v3986, 16
        %v4081 = vrot.slane %v4079, 4
        %v4082 = vshll.u32 %v3986, 16
        %v4084 = vrot.slane %v4082, 5
        %v4085 = vor.u32 %v4081, %v4084
        %v4086 = vrot.slane %v4085, 4
        %v4088 = vshll.u32 %v3987, 16
        %v4090 = vrot.slane %v4088, 5
        %v4091 = vsel %vm1364, %v4086, %v4090
        %v4092 = vshrl.u32 %v3987, 16
        %v4094 = vrot.slane %v4092, 4
        %v4095 = vor.u32 %v4094, %v4090
        %v4096 = vrot.slane %v4095, 4
        %v4098 = vshll.u32 %v4016, 16
        %v4100 = vrot.slane %v4098, 5
        %v4101 = vsel %vm1364, %v4096, %v4100
        %v4103 = vshrl.u32 %v3988, 16
        %v4105 = vrot.slane %v4103, 4
        %v4106 = vshll.u32 %v3988, 16
        %v4108 = vrot.slane %v4106, 5
        %v4109 = vor.u32 %v4105, %v4108
        %v4110 = vrot.slane %v4109, 4
        %v4112 = vshll.u32 %v3989, 16
        %v4114 = vrot.slane %v4112, 5
        %v4115 = vsel %vm1364, %v4110, %v4114
        %v4116 = vshrl.u32 %v3989, 16
        %v4118 = vrot.slane %v4116, 4
        %v4119 = vor.u32 %v4118, %v4114
        %v4120 = vrot.slane %v4119, 4
        %v4122 = vshll.u32 %v4017, 16
        %v4124 = vrot.slane %v4122, 5
        %v4125 = vsel %vm1364, %v4120, %v4124
        %v4127 = vshrl.u32 %v3990, 16
        %v4129 = vrot.slane %v4127, 4
        %v4130 = vshll.u32 %v3990, 16
        %v4132 = vrot.slane %v4130, 5
        %v4133 = vor.u32 %v4129, %v4132
        %v4134 = vrot.slane %v4133, 4
        %v4136 = vshll.u32 %v3991, 16
        %v4138 = vrot.slane %v4136, 5
        %v4139 = vsel %vm1364, %v4134, %v4138
        %v4140 = vshrl.u32 %v3991, 16
        %v4142 = vrot.slane %v4140, 4
        %v4143 = vor.u32 %v4142, %v4138
        %v4144 = vrot.slane %v4143, 4
        %v4146 = vshll.u32 %v4018, 16
        %v4148 = vrot.slane %v4146, 5
        %v4149 = vsel %vm1364, %v4144, %v4148
        %v4151 = vshrl.u32 %v3992, 16
        %v4153 = vrot.slane %v4151, 4
        %v4154 = vshll.u32 %v3992, 16
        %v4156 = vrot.slane %v4154, 5
        %v4157 = vor.u32 %v4153, %v4156
        %v4158 = vrot.slane %v4157, 4
        %v4160 = vshll.u32 %v3993, 16
        %v4162 = vrot.slane %v4160, 5
        %v4163 = vsel %vm1364, %v4158, %v4162
        %v4164 = vshrl.u32 %v3993, 16
        %v4166 = vrot.slane %v4164, 4
        %v4167 = vor.u32 %v4166, %v4162
        %v4168 = vrot.slane %v4167, 4
        %v4170 = vshll.u32 %v4019, 16
        %v4172 = vrot.slane %v4170, 5
        %v4173 = vsel %vm1364, %v4168, %v4172
        %v4175 = vshrl.u32 %v3994, 16
        %v4177 = vrot.slane %v4175, 4
        %v4178 = vshll.u32 %v3994, 16
        %v4180 = vrot.slane %v4178, 5
        %v4181 = vor.u32 %v4177, %v4180
        %v4182 = vrot.slane %v4181, 4
        %v4184 = vshll.u32 %v3995, 16
        %v4186 = vrot.slane %v4184, 5
        %v4187 = vsel %vm1364, %v4182, %v4186
        %v4188 = vshrl.u32 %v3995, 16
        %v4190 = vrot.slane %v4188, 4
        %v4191 = vor.u32 %v4190, %v4186
        %v4192 = vrot.slane %v4191, 4
        %v4194 = vshll.u32 %v4020, 16
        %v4196 = vrot.slane %v4194, 5
        %v4197 = vsel %vm1364, %v4192, %v4196
        %v4199 = vshrl.u32 %v3996, 16
        %v4201 = vrot.slane %v4199, 4
        %v4202 = vshll.u32 %v3996, 16
        %v4204 = vrot.slane %v4202, 5
        %v4205 = vor.u32 %v4201, %v4204
        %v4206 = vrot.slane %v4205, 4
        %v4208 = vshll.u32 %v3997, 16
        %v4210 = vrot.slane %v4208, 5
        %v4211 = vsel %vm1364, %v4206, %v4210
        %v4212 = vshrl.u32 %v3997, 16
        %v4214 = vrot.slane %v4212, 4
        %v4215 = vor.u32 %v4214, %v4210
        %v4216 = vrot.slane %v4215, 4
        %v4218 = vshll.u32 %v4021, 16
        %v4220 = vrot.slane %v4218, 5
        %v4221 = vsel %vm1364, %v4216, %v4220
        %v4223 = vshrl.u32 %v3998, 16
        %v4225 = vrot.slane %v4223, 4
        %v4226 = vshll.u32 %v3998, 16
        %v4228 = vrot.slane %v4226, 5
        %v4229 = vor.u32 %v4225, %v4228
        %v4230 = vrot.slane %v4229, 4
        %v4232 = vshll.u32 %v3999, 16
        %v4234 = vrot.slane %v4232, 5
        %v4235 = vsel %vm1364, %v4230, %v4234
        %v4236 = vshrl.u32 %v3999, 16
        %v4238 = vrot.slane %v4236, 4
        %v4239 = vor.u32 %v4238, %v4234
        %v4240 = vrot.slane %v4239, 4
        %v4242 = vshll.u32 %v4022, 16
        %v4244 = vrot.slane %v4242, 5
        %v4245 = vsel %vm1364, %v4240, %v4244
        %v4247 = vshrl.u32 %v4000, 16
        %v4249 = vrot.slane %v4247, 4
        %v4250 = vshll.u32 %v4000, 16
        %v4252 = vrot.slane %v4250, 5
        %v4253 = vor.u32 %v4249, %v4252
        %v4254 = vrot.slane %v4253, 4
        %v4256 = vshll.u32 %v4001, 16
        %v4258 = vrot.slane %v4256, 5
        %v4259 = vsel %vm1364, %v4254, %v4258
        %v4260 = vshrl.u32 %v4001, 16
        %v4262 = vrot.slane %v4260, 4
        %v4263 = vor.u32 %v4262, %v4258
        %v4264 = vrot.slane %v4263, 4
        %v4266 = vshll.u32 %v4023, 16
        %v4268 = vrot.slane %v4266, 5
        %v4269 = vsel %vm1364, %v4264, %v4268
        %v4271 = vshrl.u32 %v4002, 16
        %v4273 = vrot.slane %v4271, 4
        %v4274 = vshll.u32 %v4002, 16
        %v4276 = vrot.slane %v4274, 5
        %v4277 = vor.u32 %v4273, %v4276
        %v4278 = vrot.slane %v4277, 4
        %v4280 = vshll.u32 %v4003, 16
        %v4282 = vrot.slane %v4280, 5
        %v4283 = vsel %vm1364, %v4278, %v4282
        %v4284 = vshrl.u32 %v4003, 16
        %v4286 = vrot.slane %v4284, 4
        %v4287 = vor.u32 %v4286, %v4282
        %v4288 = vrot.slane %v4287, 4
        %v4290 = vshll.u32 %v4024, 16
        %v4292 = vrot.slane %v4290, 5
        %v4293 = vsel %vm1364, %v4288, %v4292
        %v4295 = vshrl.u32 %v4004, 16
        %v4297 = vrot.slane %v4295, 4
        %v4298 = vshll.u32 %v4004, 16
        %v4300 = vrot.slane %v4298, 5
        %v4301 = vor.u32 %v4297, %v4300
        %v4302 = vrot.slane %v4301, 4
        %v4304 = vshll.u32 %v4005, 16
        %v4306 = vrot.slane %v4304, 5
        %v4307 = vsel %vm1364, %v4302, %v4306
        %v4308 = vshrl.u32 %v4005, 16
        %v4310 = vrot.slane %v4308, 4
        %v4311 = vor.u32 %v4310, %v4306
        %v4312 = vrot.slane %v4311, 4
        %v4314 = vshll.u32 %v4025, 16
        %v4316 = vrot.slane %v4314, 5
        %v4317 = vsel %vm1364, %v4312, %v4316
        %v4319 = vshrl.u32 %v4006, 16
        %v4321 = vrot.slane %v4319, 4
        %v4322 = vshll.u32 %v4006, 16
        %v4324 = vrot.slane %v4322, 5
        %v4325 = vor.u32 %v4321, %v4324
        %v4326 = vrot.slane %v4325, 4
        %v4328 = vshll.u32 %v4007, 16
        %v4330 = vrot.slane %v4328, 5
        %v4331 = vsel %vm1364, %v4326, %v4330
        %v4332 = vshrl.u32 %v4007, 16
        %v4334 = vrot.slane %v4332, 4
        %v4335 = vor.u32 %v4334, %v4330
        %v4336 = vrot.slane %v4335, 4
        %v4338 = vshll.u32 %v4026, 16
        %v4340 = vrot.slane %v4338, 5
        %v4341 = vsel %vm1364, %v4336, %v4340
        %v4343 = vshrl.u32 %v4008, 16
        %v4345 = vrot.slane %v4343, 4
        %v4346 = vshll.u32 %v4008, 16
        %v4348 = vrot.slane %v4346, 5
        %v4349 = vor.u32 %v4345, %v4348
        %v4350 = vrot.slane %v4349, 4
        %v4352 = vshll.u32 %v4009, 16
        %v4354 = vrot.slane %v4352, 5
        %v4355 = vsel %vm1364, %v4350, %v4354
        %v4356 = vshrl.u32 %v4009, 16
        %v4358 = vrot.slane %v4356, 4
        %v4359 = vor.u32 %v4358, %v4354
        %v4360 = vrot.slane %v4359, 4
        %v4362 = vshll.u32 %v4027, 16
        %v4364 = vrot.slane %v4362, 5
        %v4365 = vsel %vm1364, %v4360, %v4364
        %v4367 = vshrl.u32 %v4010, 16
        %v4369 = vrot.slane %v4367, 4
        %v4370 = vshll.u32 %v4010, 16
        %v4372 = vrot.slane %v4370, 5
        %v4373 = vor.u32 %v4369, %v4372
        %v4374 = vrot.slane %v4373, 4
        %v4376 = vshll.u32 %v4011, 16
        %v4378 = vrot.slane %v4376, 5
        %v4379 = vsel %vm1364, %v4374, %v4378
        %v4380 = vshrl.u32 %v4011, 16
        %v4382 = vrot.slane %v4380, 4
        %v4383 = vor.u32 %v4382, %v4378
        %v4384 = vrot.slane %v4383, 4
        %v4386 = vshll.u32 %v4028, 16
        %v4388 = vrot.slane %v4386, 5
        %v4389 = vsel %vm1364, %v4384, %v4388
        %v4391 = vshrl.u32 %v4012, 16
        %v4393 = vrot.slane %v4391, 4
        %v4394 = vshll.u32 %v4012, 16
        %v4396 = vrot.slane %v4394, 5
        %v4397 = vor.u32 %v4393, %v4396
        %v4398 = vrot.slane %v4397, 4
        %v4400 = vshll.u32 %v4013, 16
        %v4402 = vrot.slane %v4400, 5
        %v4403 = vsel %vm1364, %v4398, %v4402
        %v4404 = vshrl.u32 %v4013, 16
        %v4406 = vrot.slane %v4404, 4
        %v4407 = vor.u32 %v4406, %v4402
        %v4408 = vrot.slane %v4407, 4
        %v4410 = vshll.u32 %v4029, 16
        %v4412 = vrot.slane %v4410, 5
        %v4413 = vsel %vm1364, %v4408, %v4412
        %v4414 = vld [vmem:[%s3981] sm:$0xe]
        %v4415 = vld [vmem:[%s3981 + $0xc] sm:$0xe]
        %v4416 = vld [vmem:[%s3981 + $0x18] sm:$0xe]
        %v4417 = vld [vmem:[%s3981 + $0x24] sm:$0xe]
        %v4418 = vld [vmem:[%s3981 + $0x30] sm:$0xe]
        %v4419 = vld [vmem:[%s3981 + $0x3c] sm:$0xe]
        %v4420 = vld [vmem:[%s3981 + $0x48] sm:$0xe]
        %v4421 = vld [vmem:[%s3981 + $0x54] sm:$0xe]
        %v4422 = vld [vmem:[%s3981 + $0x60] sm:$0xe]
        %v4423 = vld [vmem:[%s3981 + $0x6c] sm:$0xe]
        %v4424 = vld [vmem:[%s3981 + $0x78] sm:$0xe]
        %v4425 = vld [vmem:[%s3981 + $0x84] sm:$0xe]
        %v4426 = vld [vmem:[%s3981 + $0x90] sm:$0xe]
        %v4427 = vld [vmem:[%s3981 + $0x9c] sm:$0xe]
        %v4428 = vld [vmem:[%s3981 + $0xa8] sm:$0xe]
        %v4429 = vld [vmem:[%s3981 + $0xb4] sm:$0xe]
        %v4478 = vrot.slane %v4414, 5
        %v4479 = vrot.slane %v4478, 4
        %v4480 = vrot.slane %v3983, 5
        %v4481 = vsel %vm1815, %v4479, %v4480
        %v4482 = vrot.slane %v4480, 4
        %v4483 = vrot.slane %v4014, 5
        %v4484 = vsel %vm1815, %v4482, %v4483
        %v4485 = vrot.slane %v4415, 5
        %v4486 = vrot.slane %v4485, 4
        %v4487 = vrot.slane %v3985, 5
        %v4488 = vsel %vm1815, %v4486, %v4487
        %v4489 = vrot.slane %v4487, 4
        %v4490 = vrot.slane %v4015, 5
        %v4491 = vsel %vm1815, %v4489, %v4490
        %v4492 = vrot.slane %v4416, 5
        %v4493 = vrot.slane %v4492, 4
        %v4494 = vrot.slane %v3987, 5
        %v4495 = vsel %vm1815, %v4493, %v4494
        %v4496 = vrot.slane %v4494, 4
        %v4497 = vrot.slane %v4016, 5
        %v4498 = vsel %vm1815, %v4496, %v4497
        %v4499 = vrot.slane %v4417, 5
        %v4500 = vrot.slane %v4499, 4
        %v4501 = vrot.slane %v3989, 5
        %v4502 = vsel %vm1815, %v4500, %v4501
        %v4503 = vrot.slane %v4501, 4
        %v4504 = vrot.slane %v4017, 5
        %v4505 = vsel %vm1815, %v4503, %v4504
        %v4506 = vrot.slane %v4418, 5
        %v4507 = vrot.slane %v4506, 4
        %v4508 = vrot.slane %v3991, 5
        %v4509 = vsel %vm1815, %v4507, %v4508
        %v4510 = vrot.slane %v4508, 4
        %v4511 = vrot.slane %v4018, 5
        %v4512 = vsel %vm1815, %v4510, %v4511
        %v4513 = vrot.slane %v4419, 5
        %v4514 = vrot.slane %v4513, 4
        %v4515 = vrot.slane %v3993, 5
        %v4516 = vsel %vm1815, %v4514, %v4515
        %v4517 = vrot.slane %v4515, 4
        %v4518 = vrot.slane %v4019, 5
        %v4519 = vsel %vm1815, %v4517, %v4518
        %v4520 = vrot.slane %v4420, 5
        %v4521 = vrot.slane %v4520, 4
        %v4522 = vrot.slane %v3995, 5
        %v4523 = vsel %vm1815, %v4521, %v4522
        %v4524 = vrot.slane %v4522, 4
        %v4525 = vrot.slane %v4020, 5
        %v4526 = vsel %vm1815, %v4524, %v4525
        %v4527 = vrot.slane %v4421, 5
        %v4528 = vrot.slane %v4527, 4
        %v4529 = vrot.slane %v3997, 5
        %v4530 = vsel %vm1815, %v4528, %v4529
        %v4531 = vrot.slane %v4529, 4
        %v4532 = vrot.slane %v4021, 5
        %v4533 = vsel %vm1815, %v4531, %v4532
        %v4534 = vrot.slane %v4422, 5
        %v4535 = vrot.slane %v4534, 4
        %v4536 = vrot.slane %v3999, 5
        %v4537 = vsel %vm1815, %v4535, %v4536
        %v4538 = vrot.slane %v4536, 4
        %v4539 = vrot.slane %v4022, 5
        %v4540 = vsel %vm1815, %v4538, %v4539
        %v4541 = vrot.slane %v4423, 5
        %v4542 = vrot.slane %v4541, 4
        %v4543 = vrot.slane %v4001, 5
        %v4544 = vsel %vm1815, %v4542, %v4543
        %v4545 = vrot.slane %v4543, 4
        %v4546 = vrot.slane %v4023, 5
        %v4547 = vsel %vm1815, %v4545, %v4546
        %v4548 = vrot.slane %v4424, 5
        %v4549 = vrot.slane %v4548, 4
        %v4550 = vrot.slane %v4003, 5
        %v4551 = vsel %vm1815, %v4549, %v4550
        %v4552 = vrot.slane %v4550, 4
        %v4553 = vrot.slane %v4024, 5
        %v4554 = vsel %vm1815, %v4552, %v4553
        %v4555 = vrot.slane %v4425, 5
        %v4556 = vrot.slane %v4555, 4
        %v4557 = vrot.slane %v4005, 5
        %v4558 = vsel %vm1815, %v4556, %v4557
        %v4559 = vrot.slane %v4557, 4
        %v4560 = vrot.slane %v4025, 5
        %v4561 = vsel %vm1815, %v4559, %v4560
        %v4562 = vrot.slane %v4426, 5
        %v4563 = vrot.slane %v4562, 4
        %v4564 = vrot.slane %v4007, 5
        %v4565 = vsel %vm1815, %v4563, %v4564
        %v4566 = vrot.slane %v4564, 4
        %v4567 = vrot.slane %v4026, 5
        %v4568 = vsel %vm1815, %v4566, %v4567
        %v4569 = vrot.slane %v4427, 5
        %v4570 = vrot.slane %v4569, 4
        %v4571 = vrot.slane %v4009, 5
        %v4572 = vsel %vm1815, %v4570, %v4571
        %v4573 = vrot.slane %v4571, 4
        %v4574 = vrot.slane %v4027, 5
        %v4575 = vsel %vm1815, %v4573, %v4574
        %v4576 = vrot.slane %v4428, 5
        %v4577 = vrot.slane %v4576, 4
        %v4578 = vrot.slane %v4011, 5
        %v4579 = vsel %vm1815, %v4577, %v4578
        %v4580 = vrot.slane %v4578, 4
        %v4581 = vrot.slane %v4028, 5
        %v4582 = vsel %vm1815, %v4580, %v4581
        %v4583 = vrot.slane %v4429, 5
        %v4584 = vrot.slane %v4583, 4
        %v4585 = vrot.slane %v4013, 5
        %v4586 = vsel %vm1815, %v4584, %v4585
        %v4587 = vrot.slane %v4585, 4
        %v4588 = vrot.slane %v4029, 5
        %v4589 = vsel %vm1815, %v4587, %v4588
        %v4606 = vunpack.c.l.b16 %v3982
        %v4607 = vunpack.c.l.b16 %v3983
        %v4608 = vunpack.c.l.b16 %v3984
        %v4609 = vunpack.c.l.b16 %v3985
        %v4610 = vunpack.c.l.b16 %v3986
        %v4611 = vunpack.c.l.b16 %v3987
        %v4612 = vunpack.c.l.b16 %v3988
        %v4613 = vunpack.c.l.b16 %v3989
        %v4614 = vunpack.c.l.b16 %v3990
        %v4615 = vunpack.c.l.b16 %v3991
        %v4616 = vunpack.c.l.b16 %v3992
        %v4617 = vunpack.c.l.b16 %v3993
        %v4618 = vunpack.c.l.b16 %v3994
        %v4619 = vunpack.c.l.b16 %v3995
        %v4620 = vunpack.c.l.b16 %v3996
        %v4621 = vunpack.c.l.b16 %v3997
        %v4622 = vunpack.c.l.b16 %v3998
        %v4623 = vunpack.c.l.b16 %v3999
        %v4624 = vunpack.c.l.b16 %v4000
        %v4625 = vunpack.c.l.b16 %v4001
        %v4626 = vunpack.c.l.b16 %v4002
        %v4627 = vunpack.c.l.b16 %v4003
        %v4628 = vunpack.c.l.b16 %v4004
        %v4629 = vunpack.c.l.b16 %v4005
        %v4630 = vunpack.c.l.b16 %v4006
        %v4631 = vunpack.c.l.b16 %v4007
        %v4632 = vunpack.c.l.b16 %v4008
        %v4633 = vunpack.c.l.b16 %v4009
        %v4634 = vunpack.c.l.b16 %v4010
        %v4635 = vunpack.c.l.b16 %v4011
        %v4636 = vunpack.c.l.b16 %v4012
        %v4637 = vunpack.c.l.b16 %v4013
        %v4638 = vpack.c.b16 %v4607, %v4606
        %v4639 = vpack.c.b16 %v4609, %v4608
        %v4640 = vpack.c.b16 %v4611, %v4610
        %v4641 = vpack.c.b16 %v4613, %v4612
        %v4642 = vpack.c.b16 %v4615, %v4614
        %v4643 = vpack.c.b16 %v4617, %v4616
        %v4644 = vpack.c.b16 %v4619, %v4618
        %v4645 = vpack.c.b16 %v4621, %v4620
        %v4646 = vpack.c.b16 %v4623, %v4622
        %v4647 = vpack.c.b16 %v4625, %v4624
        %v4648 = vpack.c.b16 %v4627, %v4626
        %v4649 = vpack.c.b16 %v4629, %v4628
        %v4650 = vpack.c.b16 %v4631, %v4630
        %v4651 = vpack.c.b16 %v4633, %v4632
        %v4652 = vpack.c.b16 %v4635, %v4634
        %v4653 = vpack.c.b16 %v4637, %v4636
        %v4670 = vunpack.c.l.b16 %v4043
        %v4671 = vunpack.c.l.b16 %v4053
        %v4672 = vunpack.c.l.b16 %v4067
        %v4673 = vunpack.c.l.b16 %v4077
        %v4674 = vunpack.c.l.b16 %v4091
        %v4675 = vunpack.c.l.b16 %v4101
        %v4676 = vunpack.c.l.b16 %v4115
        %v4677 = vunpack.c.l.b16 %v4125
        %v4678 = vunpack.c.l.b16 %v4139
        %v4679 = vunpack.c.l.b16 %v4149
        %v4680 = vunpack.c.l.b16 %v4163
        %v4681 = vunpack.c.l.b16 %v4173
        %v4682 = vunpack.c.l.b16 %v4187
        %v4683 = vunpack.c.l.b16 %v4197
        %v4684 = vunpack.c.l.b16 %v4211
        %v4685 = vunpack.c.l.b16 %v4221
        %v4686 = vunpack.c.l.b16 %v4235
        %v4687 = vunpack.c.l.b16 %v4245
        %v4688 = vunpack.c.l.b16 %v4259
        %v4689 = vunpack.c.l.b16 %v4269
        %v4690 = vunpack.c.l.b16 %v4283
        %v4691 = vunpack.c.l.b16 %v4293
        %v4692 = vunpack.c.l.b16 %v4307
        %v4693 = vunpack.c.l.b16 %v4317
        %v4694 = vunpack.c.l.b16 %v4331
        %v4695 = vunpack.c.l.b16 %v4341
        %v4696 = vunpack.c.l.b16 %v4355
        %v4697 = vunpack.c.l.b16 %v4365
        %v4698 = vunpack.c.l.b16 %v4379
        %v4699 = vunpack.c.l.b16 %v4389
        %v4700 = vunpack.c.l.b16 %v4403
        %v4701 = vunpack.c.l.b16 %v4413
        %v4702 = vpack.c.b16 %v4671, %v4670
        %v4703 = vpack.c.b16 %v4673, %v4672
        %v4704 = vpack.c.b16 %v4675, %v4674
        %v4705 = vpack.c.b16 %v4677, %v4676
        %v4706 = vpack.c.b16 %v4679, %v4678
        %v4707 = vpack.c.b16 %v4681, %v4680
        %v4708 = vpack.c.b16 %v4683, %v4682
        %v4709 = vpack.c.b16 %v4685, %v4684
        %v4710 = vpack.c.b16 %v4687, %v4686
        %v4711 = vpack.c.b16 %v4689, %v4688
        %v4712 = vpack.c.b16 %v4691, %v4690
        %v4713 = vpack.c.b16 %v4693, %v4692
        %v4714 = vpack.c.b16 %v4695, %v4694
        %v4715 = vpack.c.b16 %v4697, %v4696
        %v4716 = vpack.c.b16 %v4699, %v4698
        %v4717 = vpack.c.b16 %v4701, %v4700
        %v4734 = vunpack.c.l.b16 %v4481
        %v4735 = vunpack.c.l.b16 %v4484
        %v4736 = vunpack.c.l.b16 %v4488
        %v4737 = vunpack.c.l.b16 %v4491
        %v4738 = vunpack.c.l.b16 %v4495
        %v4739 = vunpack.c.l.b16 %v4498
        %v4740 = vunpack.c.l.b16 %v4502
        %v4741 = vunpack.c.l.b16 %v4505
        %v4742 = vunpack.c.l.b16 %v4509
        %v4743 = vunpack.c.l.b16 %v4512
        %v4744 = vunpack.c.l.b16 %v4516
        %v4745 = vunpack.c.l.b16 %v4519
        %v4746 = vunpack.c.l.b16 %v4523
        %v4747 = vunpack.c.l.b16 %v4526
        %v4748 = vunpack.c.l.b16 %v4530
        %v4749 = vunpack.c.l.b16 %v4533
        %v4750 = vunpack.c.l.b16 %v4537
        %v4751 = vunpack.c.l.b16 %v4540
        %v4752 = vunpack.c.l.b16 %v4544
        %v4753 = vunpack.c.l.b16 %v4547
        %v4754 = vunpack.c.l.b16 %v4551
        %v4755 = vunpack.c.l.b16 %v4554
        %v4756 = vunpack.c.l.b16 %v4558
        %v4757 = vunpack.c.l.b16 %v4561
        %v4758 = vunpack.c.l.b16 %v4565
        %v4759 = vunpack.c.l.b16 %v4568
        %v4760 = vunpack.c.l.b16 %v4572
        %v4761 = vunpack.c.l.b16 %v4575
        %v4762 = vunpack.c.l.b16 %v4579
        %v4763 = vunpack.c.l.b16 %v4582
        %v4764 = vunpack.c.l.b16 %v4586
        %v4765 = vunpack.c.l.b16 %v4589
        %v4766 = vpack.c.b16 %v4735, %v4734
        %v4767 = vpack.c.b16 %v4737, %v4736
        %v4768 = vpack.c.b16 %v4739, %v4738
        %v4769 = vpack.c.b16 %v4741, %v4740
        %v4770 = vpack.c.b16 %v4743, %v4742
        %v4771 = vpack.c.b16 %v4745, %v4744
        %v4772 = vpack.c.b16 %v4747, %v4746
        %v4773 = vpack.c.b16 %v4749, %v4748
        %v4774 = vpack.c.b16 %v4751, %v4750
        %v4775 = vpack.c.b16 %v4753, %v4752
        %v4776 = vpack.c.b16 %v4755, %v4754
        %v4777 = vpack.c.b16 %v4757, %v4756
        %v4778 = vpack.c.b16 %v4759, %v4758
        %v4779 = vpack.c.b16 %v4761, %v4760
        %v4780 = vpack.c.b16 %v4763, %v4762
        %v4781 = vpack.c.b16 %v4765, %v4764
        %s4798 = scalar_lea.vmem %s3, 384
        %v4799 = vld [vmem:[%s4798] sm:$0xf]
        %v4800 = vld [vmem:[%s4798 + $0x4] sm:$0xf]
        %v4801 = vld [vmem:[%s4798 + $0x8] sm:$0xf]
        %v4802 = vld [vmem:[%s4798 + $0xc] sm:$0xf]
        %v4803 = vld [vmem:[%s4798 + $0x10] sm:$0xf]
        %v4804 = vld [vmem:[%s4798 + $0x14] sm:$0xf]
        %v4805 = vld [vmem:[%s4798 + $0x18] sm:$0xf]
        %v4806 = vld [vmem:[%s4798 + $0x1c] sm:$0xf]
        %v4807 = vld [vmem:[%s4798 + $0x20] sm:$0xf]
        %v4808 = vld [vmem:[%s4798 + $0x24] sm:$0xf]
        %v4809 = vld [vmem:[%s4798 + $0x28] sm:$0xf]
        %v4810 = vld [vmem:[%s4798 + $0x2c] sm:$0xf]
        %v4811 = vld [vmem:[%s4798 + $0x30] sm:$0xf]
        %v4812 = vld [vmem:[%s4798 + $0x34] sm:$0xf]
        %v4813 = vld [vmem:[%s4798 + $0x38] sm:$0xf]
        %v4814 = vld [vmem:[%s4798 + $0x3c] sm:$0xf]
        %v4815 = vld [vmem:[%s4798 + $0x40] sm:$0xf]
        %v4816 = vld [vmem:[%s4798 + $0x44] sm:$0xf]
        %v4817 = vld [vmem:[%s4798 + $0x48] sm:$0xf]
        %v4818 = vld [vmem:[%s4798 + $0x4c] sm:$0xf]
        %v4819 = vld [vmem:[%s4798 + $0x50] sm:$0xf]
        %v4820 = vld [vmem:[%s4798 + $0x54] sm:$0xf]
        %v4821 = vld [vmem:[%s4798 + $0x58] sm:$0xf]
        %v4822 = vld [vmem:[%s4798 + $0x5c] sm:$0xf]
        %v4823 = vld [vmem:[%s4798 + $0x60] sm:$0xf]
        %v4824 = vld [vmem:[%s4798 + $0x64] sm:$0xf]
        %v4825 = vld [vmem:[%s4798 + $0x68] sm:$0xf]
        %v4826 = vld [vmem:[%s4798 + $0x6c] sm:$0xf]
        %v4827 = vld [vmem:[%s4798 + $0x70] sm:$0xf]
        %v4828 = vld [vmem:[%s4798 + $0x74] sm:$0xf]
        %v4829 = vld [vmem:[%s4798 + $0x78] sm:$0xf]
        %v4830 = vld [vmem:[%s4798 + $0x7c] sm:$0xf]
        %v4831 = vld [vmem:[%s4798 + $0x80] sm:$0xf]
        %v4832 = vld [vmem:[%s4798 + $0x84] sm:$0xf]
        %v4833 = vld [vmem:[%s4798 + $0x88] sm:$0xf]
        %v4834 = vld [vmem:[%s4798 + $0x8c] sm:$0xf]
        %v4835 = vld [vmem:[%s4798 + $0x90] sm:$0xf]
        %v4836 = vld [vmem:[%s4798 + $0x94] sm:$0xf]
        %v4837 = vld [vmem:[%s4798 + $0x98] sm:$0xf]
        %v4838 = vld [vmem:[%s4798 + $0x9c] sm:$0xf]
        %v4839 = vld [vmem:[%s4798 + $0xa0] sm:$0xf]
        %v4840 = vld [vmem:[%s4798 + $0xa4] sm:$0xf]
        %v4841 = vld [vmem:[%s4798 + $0xa8] sm:$0xf]
        %v4842 = vld [vmem:[%s4798 + $0xac] sm:$0xf]
        %v4843 = vld [vmem:[%s4798 + $0xb0] sm:$0xf]
        %v4844 = vld [vmem:[%s4798 + $0xb4] sm:$0xf]
        %v4845 = vld [vmem:[%s4798 + $0xb8] sm:$0xf]
        %v4846 = vld [vmem:[%s4798 + $0xbc] sm:$0xf]
        %v4895 = vunpack.c.l.b16 %v4799
        %v4896 = vunpack.c.l.b16 %v4800
        %v4897 = vunpack.c.l.b16 %v4801
        %v4898 = vunpack.c.l.b16 %v4802
        %v4899 = vunpack.c.l.b16 %v4803
        %v4900 = vunpack.c.l.b16 %v4804
        %v4901 = vunpack.c.l.b16 %v4805
        %v4902 = vunpack.c.l.b16 %v4806
        %v4903 = vunpack.c.l.b16 %v4807
        %v4904 = vunpack.c.l.b16 %v4808
        %v4905 = vunpack.c.l.b16 %v4809
        %v4906 = vunpack.c.l.b16 %v4810
        %v4907 = vunpack.c.l.b16 %v4811
        %v4908 = vunpack.c.l.b16 %v4812
        %v4909 = vunpack.c.l.b16 %v4813
        %v4910 = vunpack.c.l.b16 %v4814
        %v4911 = vunpack.c.l.b16 %v4815
        %v4912 = vunpack.c.l.b16 %v4816
        %v4913 = vunpack.c.l.b16 %v4817
        %v4914 = vunpack.c.l.b16 %v4818
        %v4915 = vunpack.c.l.b16 %v4819
        %v4916 = vunpack.c.l.b16 %v4820
        %v4917 = vunpack.c.l.b16 %v4821
        %v4918 = vunpack.c.l.b16 %v4822
        %v4919 = vunpack.c.l.b16 %v4823
        %v4920 = vunpack.c.l.b16 %v4824
        %v4921 = vunpack.c.l.b16 %v4825
        %v4922 = vunpack.c.l.b16 %v4826
        %v4923 = vunpack.c.l.b16 %v4827
        %v4924 = vunpack.c.l.b16 %v4828
        %v4925 = vunpack.c.l.b16 %v4829
        %v4926 = vunpack.c.l.b16 %v4830
        %v4927 = vunpack.c.l.b16 %v4831
        %v4928 = vunpack.c.l.b16 %v4832
        %v4929 = vunpack.c.l.b16 %v4833
        %v4930 = vunpack.c.l.b16 %v4834
        %v4931 = vunpack.c.l.b16 %v4835
        %v4932 = vunpack.c.l.b16 %v4836
        %v4933 = vunpack.c.l.b16 %v4837
        %v4934 = vunpack.c.l.b16 %v4838
        %v4935 = vunpack.c.l.b16 %v4839
        %v4936 = vunpack.c.l.b16 %v4840
        %v4937 = vunpack.c.l.b16 %v4841
        %v4938 = vunpack.c.l.b16 %v4842
        %v4939 = vunpack.c.l.b16 %v4843
        %v4940 = vunpack.c.l.b16 %v4844
        %v4941 = vunpack.c.l.b16 %v4845
        %v4942 = vunpack.c.l.b16 %v4846
        %v4943 = vpack.c.b16 %v4896, %v4895
        %v4944 = vpack.c.b16 %v4898, %v4897
        %v4945 = vpack.c.b16 %v4900, %v4899
        %v4946 = vpack.c.b16 %v4902, %v4901
        %v4947 = vpack.c.b16 %v4904, %v4903
        %v4948 = vpack.c.b16 %v4906, %v4905
        %v4949 = vpack.c.b16 %v4908, %v4907
        %v4950 = vpack.c.b16 %v4910, %v4909
        %v4951 = vpack.c.b16 %v4912, %v4911
        %v4952 = vpack.c.b16 %v4914, %v4913
        %v4953 = vpack.c.b16 %v4916, %v4915
        %v4954 = vpack.c.b16 %v4918, %v4917
        %v4955 = vpack.c.b16 %v4920, %v4919
        %v4956 = vpack.c.b16 %v4922, %v4921
        %v4957 = vpack.c.b16 %v4924, %v4923
        %v4958 = vpack.c.b16 %v4926, %v4925
        %v4959 = vpack.c.b16 %v4928, %v4927
        %v4960 = vpack.c.b16 %v4930, %v4929
        %v4961 = vpack.c.b16 %v4932, %v4931
        %v4962 = vpack.c.b16 %v4934, %v4933
        %v4963 = vpack.c.b16 %v4936, %v4935
        %v4964 = vpack.c.b16 %v4938, %v4937
        %v4965 = vpack.c.b16 %v4940, %v4939
        %v4966 = vpack.c.b16 %v4942, %v4941
        %4991 = vmatprep.subr.bf16.mxu0 0
        %4992 = vmatpush1.bf16.msra.mxu0 %v4950
        %4993 = vmatprep.subr.bf16.mxu0 0
        %4994 = vmatpush1.bf16.msra.mxu0 %v4949
        %4995 = vmatprep.subr.bf16.mxu0 0
        %4996 = vmatpush1.bf16.msra.mxu0 %v4948
        %4997 = vmatprep.subr.bf16.mxu0 0
        %4998 = vmatpush1.bf16.msra.mxu0 %v4947
        %4999 = vmatprep.subr.bf16.mxu0 0
        %5000 = vmatpush1.bf16.msra.mxu0 %v4946
        %5001 = vmatprep.subr.bf16.mxu0 0
        %5002 = vmatpush1.bf16.msra.mxu0 %v4945
        %5003 = vmatprep.subr.bf16.mxu0 0
        %5004 = vmatpush1.bf16.msra.mxu0 %v4944
        %5005 = vmatprep.subr.bf16.mxu0 0
        %5006 = vmatpush1.bf16.msra.mxu0 %v4943
        %5007 = vmatprep.subr.bf16.mxu0 0
        %5008 = vmatpush2.bf16.msra.mxu0 %v4958
        %5009 = vmatprep.subr.bf16.mxu0 0
        %5010 = vmatpush2.bf16.msra.mxu0 %v4957
        %5011 = vmatprep.subr.bf16.mxu0 0
        %5012 = vmatpush2.bf16.msra.mxu0 %v4956
        %5013 = vmatprep.subr.bf16.mxu0 0
        %5014 = vmatpush2.bf16.msra.mxu0 %v4955
        %5015 = vmatprep.subr.bf16.mxu0 0
        %5016 = vmatpush2.bf16.msra.mxu0 %v4954
        %5017 = vmatprep.subr.bf16.mxu0 0
        %5018 = vmatpush2.bf16.msra.mxu0 %v4953
        %5019 = vmatprep.subr.bf16.mxu0 0
        %5020 = vmatpush2.bf16.msra.mxu0 %v4952
        %5021 = vmatprep.subr.bf16.mxu0 0
        %5022 = vmatpush2.bf16.msra.mxu0 %v4951
        %5023 = vmatprep.mubr.bf16.mxu0 %v4702
        %5024 = vmatmul.mubr.bf16.gmra.mxu0 %v4638
        %v5025 = vpop.f32.mrf.mxu0
        %v5026 = vadd.f32 0.0, %v5025
        %v5027 = vpop.f32.mrf.mxu0
        %v5028 = vpop.f32.mrf.mxu0
        %v5029 = vadd.f32 0.0, %v5028
        %v5030 = vpop.f32.mrf.mxu0
        %5031 = vmatprep.mubr.bf16.mxu0 %v4703
        %5032 = vmatmul.mubr.bf16.gmra.mxu0 %v4639
        %v5033 = vpop.f32.mrf.mxu0
        %v5034 = vadd.f32 0.0, %v5033
        %v5035 = vpop.f32.mrf.mxu0
        %v5036 = vpop.f32.mrf.mxu0
        %v5037 = vadd.f32 0.0, %v5036
        %v5038 = vpop.f32.mrf.mxu0
        %5039 = vmatprep.mubr.bf16.mxu0 %v4704
        %5040 = vmatmul.mubr.bf16.gmra.mxu0 %v4640
        %v5041 = vpop.f32.mrf.mxu0
        %v5042 = vadd.f32 0.0, %v5041
        %v5043 = vpop.f32.mrf.mxu0
        %v5044 = vpop.f32.mrf.mxu0
        %v5045 = vadd.f32 0.0, %v5044
        %v5046 = vpop.f32.mrf.mxu0
        %5047 = vmatprep.mubr.bf16.mxu0 %v4705
        %5048 = vmatmul.mubr.bf16.gmra.mxu0 %v4641
        %v5049 = vpop.f32.mrf.mxu0
        %v5050 = vadd.f32 0.0, %v5049
        %v5051 = vpop.f32.mrf.mxu0
        %v5052 = vpop.f32.mrf.mxu0
        %v5053 = vadd.f32 0.0, %v5052
        %v5054 = vpop.f32.mrf.mxu0
        %5055 = vmatprep.mubr.bf16.mxu0 %v4706
        %5056 = vmatmul.mubr.bf16.gmra.mxu0 %v4642
        %v5057 = vpop.f32.mrf.mxu0
        %v5058 = vadd.f32 0.0, %v5057
        %v5059 = vpop.f32.mrf.mxu0
        %v5060 = vpop.f32.mrf.mxu0
        %v5061 = vadd.f32 0.0, %v5060
        %v5062 = vpop.f32.mrf.mxu0
        %5063 = vmatprep.mubr.bf16.mxu0 %v4707
        %5064 = vmatmul.mubr.bf16.gmra.mxu0 %v4643
        %v5065 = vpop.f32.mrf.mxu0
        %v5066 = vadd.f32 0.0, %v5065
        %v5067 = vpop.f32.mrf.mxu0
        %v5068 = vpop.f32.mrf.mxu0
        %v5069 = vadd.f32 0.0, %v5068
        %v5070 = vpop.f32.mrf.mxu0
        %5071 = vmatprep.mubr.bf16.mxu0 %v4708
        %5072 = vmatmul.mubr.bf16.gmra.mxu0 %v4644
        %v5073 = vpop.f32.mrf.mxu0
        %v5074 = vadd.f32 0.0, %v5073
        %v5075 = vpop.f32.mrf.mxu0
        %v5076 = vpop.f32.mrf.mxu0
        %v5077 = vadd.f32 0.0, %v5076
        %v5078 = vpop.f32.mrf.mxu0
        %5079 = vmatprep.mubr.bf16.mxu0 %v4709
        %5080 = vmatmul.mubr.bf16.gmra.mxu0 %v4645
        %v5081 = vpop.f32.mrf.mxu0
        %v5082 = vadd.f32 0.0, %v5081
        %v5083 = vpop.f32.mrf.mxu0
        %v5084 = vpop.f32.mrf.mxu0
        %v5085 = vadd.f32 0.0, %v5084
        %v5086 = vpop.f32.mrf.mxu0
        %5087 = vmatprep.mubr.bf16.mxu0 %v4710
        %5088 = vmatmul.mubr.bf16.gmra.mxu0 %v4646
        %v5089 = vpop.f32.mrf.mxu0
        %v5090 = vadd.f32 0.0, %v5089
        %v5091 = vpop.f32.mrf.mxu0
        %v5092 = vpop.f32.mrf.mxu0
        %v5093 = vadd.f32 0.0, %v5092
        %v5094 = vpop.f32.mrf.mxu0
        %5095 = vmatprep.mubr.bf16.mxu0 %v4711
        %5096 = vmatmul.mubr.bf16.gmra.mxu0 %v4647
        %v5097 = vpop.f32.mrf.mxu0
        %v5098 = vadd.f32 0.0, %v5097
        %v5099 = vpop.f32.mrf.mxu0
        %v5100 = vpop.f32.mrf.mxu0
        %v5101 = vadd.f32 0.0, %v5100
        %v5102 = vpop.f32.mrf.mxu0
        %5103 = vmatprep.mubr.bf16.mxu0 %v4712
        %5104 = vmatmul.mubr.bf16.gmra.mxu0 %v4648
        %v5105 = vpop.f32.mrf.mxu0
        %v5106 = vadd.f32 0.0, %v5105
        %v5107 = vpop.f32.mrf.mxu0
        %v5108 = vpop.f32.mrf.mxu0
        %v5109 = vadd.f32 0.0, %v5108
        %v5110 = vpop.f32.mrf.mxu0
        %5111 = vmatprep.mubr.bf16.mxu0 %v4713
        %5112 = vmatmul.mubr.bf16.gmra.mxu0 %v4649
        %v5113 = vpop.f32.mrf.mxu0
        %v5114 = vadd.f32 0.0, %v5113
        %v5115 = vpop.f32.mrf.mxu0
        %v5116 = vpop.f32.mrf.mxu0
        %v5117 = vadd.f32 0.0, %v5116
        %v5118 = vpop.f32.mrf.mxu0
        %5119 = vmatprep.mubr.bf16.mxu0 %v4714
        %5120 = vmatmul.mubr.bf16.gmra.mxu0 %v4650
        %v5121 = vpop.f32.mrf.mxu0
        %v5122 = vadd.f32 0.0, %v5121
        %v5123 = vpop.f32.mrf.mxu0
        %v5124 = vpop.f32.mrf.mxu0
        %v5125 = vadd.f32 0.0, %v5124
        %v5126 = vpop.f32.mrf.mxu0
        %5127 = vmatprep.mubr.bf16.mxu0 %v4715
        %5128 = vmatmul.mubr.bf16.gmra.mxu0 %v4651
        %v5129 = vpop.f32.mrf.mxu0
        %v5130 = vadd.f32 0.0, %v5129
        %v5131 = vpop.f32.mrf.mxu0
        %v5132 = vpop.f32.mrf.mxu0
        %v5133 = vadd.f32 0.0, %v5132
        %v5134 = vpop.f32.mrf.mxu0
        %5135 = vmatprep.mubr.bf16.mxu0 %v4716
        %5136 = vmatmul.mubr.bf16.gmra.mxu0 %v4652
        %v5137 = vpop.f32.mrf.mxu0
        %v5138 = vadd.f32 0.0, %v5137
        %v5139 = vpop.f32.mrf.mxu0
        %v5140 = vpop.f32.mrf.mxu0
        %v5141 = vadd.f32 0.0, %v5140
        %v5142 = vpop.f32.mrf.mxu0
        %5143 = vmatprep.mubr.bf16.mxu0 %v4717
        %5144 = vmatmul.mubr.bf16.gmra.mxu0 %v4653
        %v5145 = vpop.f32.mrf.mxu0
        %v5146 = vadd.f32 0.0, %v5145
        %v5147 = vpop.f32.mrf.mxu0
        %v5148 = vpop.f32.mrf.mxu0
        %v5149 = vadd.f32 0.0, %v5148
        %v5150 = vpop.f32.mrf.mxu0
        %5151 = vdwg.mxu0
        %5152 = vmatprep.subr.bf16.mxu0 0
        %5153 = vmatpush1.bf16.msra.mxu0 %v4966
        %5154 = vmatprep.subr.bf16.mxu0 0
        %5155 = vmatpush1.bf16.msra.mxu0 %v4965
        %5156 = vmatprep.subr.bf16.mxu0 0
        %5157 = vmatpush1.bf16.msra.mxu0 %v4964
        %5158 = vmatprep.subr.bf16.mxu0 0
        %5159 = vmatpush1.bf16.msra.mxu0 %v4963
        %5160 = vmatprep.subr.bf16.mxu0 0
        %5161 = vmatpush1.bf16.msra.mxu0 %v4962
        %5162 = vmatprep.subr.bf16.mxu0 0
        %5163 = vmatpush1.bf16.msra.mxu0 %v4961
        %5164 = vmatprep.subr.bf16.mxu0 0
        %5165 = vmatpush1.bf16.msra.mxu0 %v4960
        %5166 = vmatprep.subr.bf16.mxu0 0
        %5167 = vmatpush1.bf16.msra.mxu0 %v4959
        %5168 = vmatprep.subr.bf16.mxu0 0
        %5169 = vmatpush2.bf16.msra.mxu0 0
        %5170 = vmatprep.subr.bf16.mxu0 0
        %5171 = vmatpush2.bf16.msra.mxu0 0
        %5172 = vmatprep.subr.bf16.mxu0 0
        %5173 = vmatpush2.bf16.msra.mxu0 0
        %5174 = vmatprep.subr.bf16.mxu0 0
        %5175 = vmatpush2.bf16.msra.mxu0 0
        %5176 = vmatprep.subr.bf16.mxu0 0
        %5177 = vmatpush2.bf16.msra.mxu0 0
        %5178 = vmatprep.subr.bf16.mxu0 0
        %5179 = vmatpush2.bf16.msra.mxu0 0
        %5180 = vmatprep.subr.bf16.mxu0 0
        %5181 = vmatpush2.bf16.msra.mxu0 0
        %5182 = vmatprep.subr.bf16.mxu0 0
        %5183 = vmatpush2.bf16.msra.mxu0 0
        %5184 = vmatprep.mubr.bf16.mxu0 0
        %5185 = vmatmul.mubr.bf16.gmra.mxu0 %v4766
        %v5186 = vpop.f32.mrf.mxu0
        %v5187 = vadd.f32 %v5026, %v5186
        %v5188 = vpop.f32.mrf.mxu0
        %v5189 = vpop.f32.mrf.mxu0
        %v5190 = vadd.f32 %v5029, %v5189
        %v5191 = vpop.f32.mrf.mxu0
        %5192 = vmatprep.mubr.bf16.mxu0 0
        %5193 = vmatmul.mubr.bf16.gmra.mxu0 %v4767
        %v5194 = vpop.f32.mrf.mxu0
        %v5195 = vadd.f32 %v5034, %v5194
        %v5196 = vpop.f32.mrf.mxu0
        %v5197 = vpop.f32.mrf.mxu0
        %v5198 = vadd.f32 %v5037, %v5197
        %v5199 = vpop.f32.mrf.mxu0
        %5200 = vmatprep.mubr.bf16.mxu0 0
        %5201 = vmatmul.mubr.bf16.gmra.mxu0 %v4768
        %v5202 = vpop.f32.mrf.mxu0
        %v5203 = vadd.f32 %v5042, %v5202
        %v5204 = vpop.f32.mrf.mxu0
        %v5205 = vpop.f32.mrf.mxu0
        %v5206 = vadd.f32 %v5045, %v5205
        %v5207 = vpop.f32.mrf.mxu0
        %5208 = vmatprep.mubr.bf16.mxu0 0
        %5209 = vmatmul.mubr.bf16.gmra.mxu0 %v4769
        %v5210 = vpop.f32.mrf.mxu0
        %v5211 = vadd.f32 %v5050, %v5210
        %v5212 = vpop.f32.mrf.mxu0
        %v5213 = vpop.f32.mrf.mxu0
        %v5214 = vadd.f32 %v5053, %v5213
        %v5215 = vpop.f32.mrf.mxu0
        %5216 = vmatprep.mubr.bf16.mxu0 0
        %5217 = vmatmul.mubr.bf16.gmra.mxu0 %v4770
        %v5218 = vpop.f32.mrf.mxu0
        %v5219 = vadd.f32 %v5058, %v5218
        %v5220 = vpop.f32.mrf.mxu0
        %v5221 = vpop.f32.mrf.mxu0
        %v5222 = vadd.f32 %v5061, %v5221
        %v5223 = vpop.f32.mrf.mxu0
        %5224 = vmatprep.mubr.bf16.mxu0 0
        %5225 = vmatmul.mubr.bf16.gmra.mxu0 %v4771
        %v5226 = vpop.f32.mrf.mxu0
        %v5227 = vadd.f32 %v5066, %v5226
        %v5228 = vpop.f32.mrf.mxu0
        %v5229 = vpop.f32.mrf.mxu0
        %v5230 = vadd.f32 %v5069, %v5229
        %v5231 = vpop.f32.mrf.mxu0
        %5232 = vmatprep.mubr.bf16.mxu0 0
        %5233 = vmatmul.mubr.bf16.gmra.mxu0 %v4772
        %v5234 = vpop.f32.mrf.mxu0
        %v5235 = vadd.f32 %v5074, %v5234
        %v5236 = vpop.f32.mrf.mxu0
        %v5237 = vpop.f32.mrf.mxu0
        %v5238 = vadd.f32 %v5077, %v5237
        %v5239 = vpop.f32.mrf.mxu0
        %5240 = vmatprep.mubr.bf16.mxu0 0
        %5241 = vmatmul.mubr.bf16.gmra.mxu0 %v4773
        %v5242 = vpop.f32.mrf.mxu0
        %v5243 = vadd.f32 %v5082, %v5242
        %v5244 = vpop.f32.mrf.mxu0
        %v5245 = vpop.f32.mrf.mxu0
        %v5246 = vadd.f32 %v5085, %v5245
        %v5247 = vpop.f32.mrf.mxu0
        %5248 = vmatprep.mubr.bf16.mxu0 0
        %5249 = vmatmul.mubr.bf16.gmra.mxu0 %v4774
        %v5250 = vpop.f32.mrf.mxu0
        %v5251 = vadd.f32 %v5090, %v5250
        %v5252 = vpop.f32.mrf.mxu0
        %v5253 = vpop.f32.mrf.mxu0
        %v5254 = vadd.f32 %v5093, %v5253
        %v5255 = vpop.f32.mrf.mxu0
        %5256 = vmatprep.mubr.bf16.mxu0 0
        %5257 = vmatmul.mubr.bf16.gmra.mxu0 %v4775
        %v5258 = vpop.f32.mrf.mxu0
        %v5259 = vadd.f32 %v5098, %v5258
        %v5260 = vpop.f32.mrf.mxu0
        %v5261 = vpop.f32.mrf.mxu0
        %v5262 = vadd.f32 %v5101, %v5261
        %v5263 = vpop.f32.mrf.mxu0
        %5264 = vmatprep.mubr.bf16.mxu0 0
        %5265 = vmatmul.mubr.bf16.gmra.mxu0 %v4776
        %v5266 = vpop.f32.mrf.mxu0
        %v5267 = vadd.f32 %v5106, %v5266
        %v5268 = vpop.f32.mrf.mxu0
        %v5269 = vpop.f32.mrf.mxu0
        %v5270 = vadd.f32 %v5109, %v5269
        %v5271 = vpop.f32.mrf.mxu0
        %5272 = vmatprep.mubr.bf16.mxu0 0
        %5273 = vmatmul.mubr.bf16.gmra.mxu0 %v4777
        %v5274 = vpop.f32.mrf.mxu0
        %v5275 = vadd.f32 %v5114, %v5274
        %v5276 = vpop.f32.mrf.mxu0
        %v5277 = vpop.f32.mrf.mxu0
        %v5278 = vadd.f32 %v5117, %v5277
        %v5279 = vpop.f32.mrf.mxu0
        %5280 = vmatprep.mubr.bf16.mxu0 0
        %5281 = vmatmul.mubr.bf16.gmra.mxu0 %v4778
        %v5282 = vpop.f32.mrf.mxu0
        %v5283 = vadd.f32 %v5122, %v5282
        %v5284 = vpop.f32.mrf.mxu0
        %v5285 = vpop.f32.mrf.mxu0
        %v5286 = vadd.f32 %v5125, %v5285
        %v5287 = vpop.f32.mrf.mxu0
        %5288 = vmatprep.mubr.bf16.mxu0 0
        %5289 = vmatmul.mubr.bf16.gmra.mxu0 %v4779
        %v5290 = vpop.f32.mrf.mxu0
        %v5291 = vadd.f32 %v5130, %v5290
        %v5292 = vpop.f32.mrf.mxu0
        %v5293 = vpop.f32.mrf.mxu0
        %v5294 = vadd.f32 %v5133, %v5293
        %v5295 = vpop.f32.mrf.mxu0
        %5296 = vmatprep.mubr.bf16.mxu0 0
        %5297 = vmatmul.mubr.bf16.gmra.mxu0 %v4780
        %v5298 = vpop.f32.mrf.mxu0
        %v5299 = vadd.f32 %v5138, %v5298
        %v5300 = vpop.f32.mrf.mxu0
        %v5301 = vpop.f32.mrf.mxu0
        %v5302 = vadd.f32 %v5141, %v5301
        %v5303 = vpop.f32.mrf.mxu0
        %5304 = vmatprep.mubr.bf16.mxu0 0
        %5305 = vmatmul.mubr.bf16.gmra.mxu0 %v4781
        %v5306 = vpop.f32.mrf.mxu0
        %v5307 = vadd.f32 %v5146, %v5306
        %v5308 = vpop.f32.mrf.mxu0
        %v5309 = vpop.f32.mrf.mxu0
        %v5310 = vadd.f32 %v5149, %v5309
        %v5311 = vpop.f32.mrf.mxu0
        %5312 = vdwg.mxu0
        %v5313 = vadd.f32 %v3855, %v5187
        %v5314 = vadd.f32 %v3858, %v5190
        %v5315 = vadd.f32 %v3863, %v5195
        %v5316 = vadd.f32 %v3866, %v5198
        %v5317 = vadd.f32 %v3871, %v5203
        %v5318 = vadd.f32 %v3874, %v5206
        %v5319 = vadd.f32 %v3879, %v5211
        %v5320 = vadd.f32 %v3882, %v5214
        %v5321 = vadd.f32 %v3887, %v5219
        %v5322 = vadd.f32 %v3890, %v5222
        %v5323 = vadd.f32 %v3895, %v5227
        %v5324 = vadd.f32 %v3898, %v5230
        %v5325 = vadd.f32 %v3903, %v5235
        %v5326 = vadd.f32 %v3906, %v5238
        %v5327 = vadd.f32 %v3911, %v5243
        %v5328 = vadd.f32 %v3914, %v5246
        %v5329 = vadd.f32 %v3919, %v5251
        %v5330 = vadd.f32 %v3922, %v5254
        %v5331 = vadd.f32 %v3927, %v5259
        %v5332 = vadd.f32 %v3930, %v5262
        %v5333 = vadd.f32 %v3935, %v5267
        %v5334 = vadd.f32 %v3938, %v5270
        %v5335 = vadd.f32 %v3943, %v5275
        %v5336 = vadd.f32 %v3946, %v5278
        %v5337 = vadd.f32 %v3951, %v5283
        %v5338 = vadd.f32 %v3954, %v5286
        %v5339 = vadd.f32 %v3959, %v5291
        %v5340 = vadd.f32 %v3962, %v5294
        %v5341 = vadd.f32 %v3967, %v5299
        %v5342 = vadd.f32 %v3970, %v5302
        %v5343 = vadd.f32 %v3975, %v5307
        %v5344 = vadd.f32 %v3978, %v5310
        %v5345 = vld [vmem:[%s4] sm:$0x1]
        %v5347 = vlaneseq
        %v5348 = vshrl.u32 %v5347, 7
        %v5349 = vsub.s32 0, %v5348
        %v5350 = vrot.slane %v5345, %v5349
        %v5352 = vadd.f32 %v5313, %v5350
        %v5353 = vadd.f32 %v5314, %v5350
        %v5354 = vadd.f32 %v5315, %v5350
        %v5355 = vadd.f32 %v5316, %v5350
        %v5356 = vadd.f32 %v5317, %v5350
        %v5357 = vadd.f32 %v5318, %v5350
        %v5358 = vadd.f32 %v5319, %v5350
        %v5359 = vadd.f32 %v5320, %v5350
        %v5360 = vadd.f32 %v5321, %v5350
        %v5361 = vadd.f32 %v5322, %v5350
        %v5362 = vadd.f32 %v5323, %v5350
        %v5363 = vadd.f32 %v5324, %v5350
        %v5364 = vadd.f32 %v5325, %v5350
        %v5365 = vadd.f32 %v5326, %v5350
        %v5366 = vadd.f32 %v5327, %v5350
        %v5367 = vadd.f32 %v5328, %v5350
        %v5368 = vadd.f32 %v5329, %v5350
        %v5369 = vadd.f32 %v5330, %v5350
        %v5370 = vadd.f32 %v5331, %v5350
        %v5371 = vadd.f32 %v5332, %v5350
        %v5372 = vadd.f32 %v5333, %v5350
        %v5373 = vadd.f32 %v5334, %v5350
        %v5374 = vadd.f32 %v5335, %v5350
        %v5375 = vadd.f32 %v5336, %v5350
        %v5376 = vadd.f32 %v5337, %v5350
        %v5377 = vadd.f32 %v5338, %v5350
        %v5378 = vadd.f32 %v5339, %v5350
        %v5379 = vadd.f32 %v5340, %v5350
        %v5380 = vadd.f32 %v5341, %v5350
        %v5381 = vadd.f32 %v5342, %v5350
        %v5382 = vadd.f32 %v5343, %v5350
        %v5383 = vadd.f32 %v5344, %v5350
        %v5384 = vmax.f32 %v5352, 0.0
        %v5385 = vmax.f32 %v5353, 0.0
        %v5386 = vmax.f32 %v5354, 0.0
        %v5387 = vmax.f32 %v5355, 0.0
        %v5388 = vmax.f32 %v5356, 0.0
        %v5389 = vmax.f32 %v5357, 0.0
        %v5390 = vmax.f32 %v5358, 0.0
        %v5391 = vmax.f32 %v5359, 0.0
        %v5392 = vmax.f32 %v5360, 0.0
        %v5393 = vmax.f32 %v5361, 0.0
        %v5394 = vmax.f32 %v5362, 0.0
        %v5395 = vmax.f32 %v5363, 0.0
        %v5396 = vmax.f32 %v5364, 0.0
        %v5397 = vmax.f32 %v5365, 0.0
        %v5398 = vmax.f32 %v5366, 0.0
        %v5399 = vmax.f32 %v5367, 0.0
        %v5400 = vmax.f32 %v5368, 0.0
        %v5401 = vmax.f32 %v5369, 0.0
        %v5402 = vmax.f32 %v5370, 0.0
        %v5403 = vmax.f32 %v5371, 0.0
        %v5404 = vmax.f32 %v5372, 0.0
        %v5405 = vmax.f32 %v5373, 0.0
        %v5406 = vmax.f32 %v5374, 0.0
        %v5407 = vmax.f32 %v5375, 0.0
        %v5408 = vmax.f32 %v5376, 0.0
        %v5409 = vmax.f32 %v5377, 0.0
        %v5410 = vmax.f32 %v5378, 0.0
        %v5411 = vmax.f32 %v5379, 0.0
        %v5412 = vmax.f32 %v5380, 0.0
        %v5413 = vmax.f32 %v5381, 0.0
        %v5414 = vmax.f32 %v5382, 0.0
        %v5415 = vmax.f32 %v5383, 0.0
        %5416 = vst.msk [vmem:[#allocation3] sm:$0xff] %vm348, -inf
        %5417 = vst.msk [vmem:[#allocation3 + $0x8] sm:$0xff] %vm348, -inf
        %vm5418 = vcmask 25600
        %5419 = vst.msk [vmem:[#allocation3 + $0x10] sm:$0x3] %vm5418, -inf
        %s5420 = scalar_lea.vmem [#allocation3], 408
        %5421 = vst.msk [vmem:[%s5420] sm:$0xff] %vm348, -inf
        %5422 = vst.msk [vmem:[%s5420 + $0x8] sm:$0xff] %vm348, -inf
        %5423 = vst.msk [vmem:[%s5420 + $0x10] sm:$0x3] %vm5418, -inf
        %vm5424 = vcmask 24576
        %5425 = vst.msk [vmem:[#allocation3] sm:$0x1] %vm5424, -inf
        %5426 = vst.msk [vmem:[#allocation3 + $0x18] sm:$0x1] %vm5424, -inf
        %5427 = vst.msk [vmem:[#allocation3 + $0x30] sm:$0x1] %vm5424, -inf
        %5428 = vst.msk [vmem:[#allocation3 + $0x48] sm:$0x1] %vm5424, -inf
        %5429 = vst.msk [vmem:[#allocation3 + $0x60] sm:$0x1] %vm5424, -inf
        %5430 = vst.msk [vmem:[#allocation3 + $0x78] sm:$0x1] %vm5424, -inf
        %5431 = vst.msk [vmem:[#allocation3 + $0x90] sm:$0x1] %vm5424, -inf
        %5432 = vst.msk [vmem:[#allocation3 + $0xa8] sm:$0x1] %vm5424, -inf
        %5433 = vst.msk [vmem:[#allocation3 + $0xc0] sm:$0x1] %vm5424, -inf
        %5434 = vst.msk [vmem:[#allocation3 + $0xd8] sm:$0x1] %vm5424, -inf
        %5435 = vst.msk [vmem:[#allocation3 + $0xf0] sm:$0x1] %vm5424, -inf
        %5436 = vst.msk [vmem:[#allocation3 + $0x108] sm:$0x1] %vm5424, -inf
        %5437 = vst.msk [vmem:[#allocation3 + $0x120] sm:$0x1] %vm5424, -inf
        %5438 = vst.msk [vmem:[#allocation3 + $0x138] sm:$0x1] %vm5424, -inf
        %5439 = vst.msk [vmem:[#allocation3 + $0x150] sm:$0x1] %vm5424, -inf
        %5440 = vst.msk [vmem:[#allocation3 + $0x168] sm:$0x1] %vm5424, -inf
        %5441 = vst.msk [vmem:[#allocation3 + $0x180] sm:$0x1] %vm5424, -inf
        %5442 = vst.msk [vmem:[#allocation3 + $0x198] sm:$0x1] %vm5424, -inf
        %5443 = vst.msk [vmem:[#allocation3 + $0x11] sm:$0x1] %vm5424, -inf
        %5444 = vst.msk [vmem:[#allocation3 + $0x29] sm:$0x1] %vm5424, -inf
        %5445 = vst.msk [vmem:[#allocation3 + $0x41] sm:$0x1] %vm5424, -inf
        %5446 = vst.msk [vmem:[#allocation3 + $0x59] sm:$0x1] %vm5424, -inf
        %5447 = vst.msk [vmem:[#allocation3 + $0x71] sm:$0x1] %vm5424, -inf
        %5448 = vst.msk [vmem:[#allocation3 + $0x89] sm:$0x1] %vm5424, -inf
        %5449 = vst.msk [vmem:[#allocation3 + $0xa1] sm:$0x1] %vm5424, -inf
        %5450 = vst.msk [vmem:[#allocation3 + $0xb9] sm:$0x1] %vm5424, -inf
        %5451 = vst.msk [vmem:[#allocation3 + $0xd1] sm:$0x1] %vm5424, -inf
        %5452 = vst.msk [vmem:[#allocation3 + $0xe9] sm:$0x1] %vm5424, -inf
        %5453 = vst.msk [vmem:[#allocation3 + $0x101] sm:$0x1] %vm5424, -inf
        %5454 = vst.msk [vmem:[#allocation3 + $0x119] sm:$0x1] %vm5424, -inf
        %5455 = vst.msk [vmem:[#allocation3 + $0x131] sm:$0x1] %vm5424, -inf
        %5456 = vst.msk [vmem:[#allocation3 + $0x149] sm:$0x1] %vm5424, -inf
        %5457 = vst.msk [vmem:[#allocation3 + $0x161] sm:$0x1] %vm5424, -inf
        %5458 = vst.msk [vmem:[#allocation3 + $0x179] sm:$0x1] %vm5424, -inf
        %5459 = vst.msk [vmem:[#allocation3 + $0x191] sm:$0x1] %vm5424, -inf
        %5460 = vst.msk [vmem:[#allocation3 + $0x1a9] sm:$0x1] %vm5424, -inf
        %s5461 = scalar_lea.vmem [#allocation3], 24
        %5462 = vst.msk [vmem:[%s5461 + $0x1] sm:$0xff] %vm348, %v278
        %5463 = vst.msk [vmem:[%s5461 + $0x9] sm:$0xff] %vm348, %v279
        %5464 = vst.msk [vmem:[%s5461 + $0x19] sm:$0xff] %vm348, %v280
        %5465 = vst.msk [vmem:[%s5461 + $0x21] sm:$0xff] %vm348, %v281
        %5466 = vst.msk [vmem:[%s5461 + $0x31] sm:$0xff] %vm348, %v282
        %5467 = vst.msk [vmem:[%s5461 + $0x39] sm:$0xff] %vm348, %v283
        %5468 = vst.msk [vmem:[%s5461 + $0x49] sm:$0xff] %vm348, %v284
        %5469 = vst.msk [vmem:[%s5461 + $0x51] sm:$0xff] %vm348, %v285
        %5470 = vst.msk [vmem:[%s5461 + $0x61] sm:$0xff] %vm348, %v286
        %5471 = vst.msk [vmem:[%s5461 + $0x69] sm:$0xff] %vm348, %v287
        %5472 = vst.msk [vmem:[%s5461 + $0x79] sm:$0xff] %vm348, %v288
        %5473 = vst.msk [vmem:[%s5461 + $0x81] sm:$0xff] %vm348, %v289
        %5474 = vst.msk [vmem:[%s5461 + $0x91] sm:$0xff] %vm348, %v290
        %5475 = vst.msk [vmem:[%s5461 + $0x99] sm:$0xff] %vm348, %v291
        %5476 = vst.msk [vmem:[%s5461 + $0xa9] sm:$0xff] %vm348, %v292
        %5477 = vst.msk [vmem:[%s5461 + $0xb1] sm:$0xff] %vm348, %v293
        %5478 = vst.msk [vmem:[%s5461 + $0xc1] sm:$0xff] %vm348, %v294
        %5479 = vst.msk [vmem:[%s5461 + $0xc9] sm:$0xff] %vm348, %v295
        %5480 = vst.msk [vmem:[%s5461 + $0xd9] sm:$0xff] %vm348, %v296
        %5481 = vst.msk [vmem:[%s5461 + $0xe1] sm:$0xff] %vm348, %v297
        %5482 = vst.msk [vmem:[%s5461 + $0xf1] sm:$0xff] %vm348, %v298
        %5483 = vst.msk [vmem:[%s5461 + $0xf9] sm:$0xff] %vm348, %v299
        %5484 = vst.msk [vmem:[%s5461 + $0x109] sm:$0xff] %vm348, %v300
        %5485 = vst.msk [vmem:[%s5461 + $0x111] sm:$0xff] %vm348, %v301
        %5486 = vst.msk [vmem:[%s5461 + $0x121] sm:$0xff] %vm348, %v302
        %5487 = vst.msk [vmem:[%s5461 + $0x129] sm:$0xff] %vm348, %v303
        %5488 = vst.msk [vmem:[%s5461 + $0x139] sm:$0xff] %vm348, %v304
        %5489 = vst.msk [vmem:[%s5461 + $0x141] sm:$0xff] %vm348, %v305
        %5490 = vst.msk [vmem:[%s5461 + $0x151] sm:$0xff] %vm348, %v306
        %5491 = vst.msk [vmem:[%s5461 + $0x159] sm:$0xff] %vm348, %v307
        %5492 = vst.msk [vmem:[%s5461 + $0x169] sm:$0xff] %vm348, %v308
        %5493 = vst.msk [vmem:[%s5461 + $0x171] sm:$0xff] %vm348, %v309
        %v5494 = vld [vmem:[#allocation3] sm:$0xff]
        %v5495 = vld [vmem:[#allocation3 + $0x8] sm:$0xff]
        %v5496 = vld [vmem:[#allocation3 + $0x10] sm:$0x3]
        %v5497 = vld [vmem:[#allocation3 + $0x18] sm:$0xff]
        %v5498 = vld [vmem:[#allocation3 + $0x20] sm:$0xff]
        %v5499 = vld [vmem:[#allocation3 + $0x28] sm:$0x3]
        %v5500 = vld [vmem:[#allocation3 + $0x30] sm:$0xff]
        %v5501 = vld [vmem:[#allocation3 + $0x38] sm:$0xff]
        %v5502 = vld [vmem:[#allocation3 + $0x40] sm:$0x3]
        %v5503 = vld [vmem:[#allocation3 + $0x48] sm:$0xff]
        %v5504 = vld [vmem:[#allocation3 + $0x50] sm:$0xff]
        %v5505 = vld [vmem:[#allocation3 + $0x58] sm:$0x3]
        %v5506 = vld [vmem:[#allocation3 + $0x60] sm:$0xff]
        %v5507 = vld [vmem:[#allocation3 + $0x68] sm:$0xff]
        %v5508 = vld [vmem:[#allocation3 + $0x70] sm:$0x3]
        %v5509 = vld [vmem:[#allocation3 + $0x78] sm:$0xff]
        %v5510 = vld [vmem:[#allocation3 + $0x80] sm:$0xff]
        %v5511 = vld [vmem:[#allocation3 + $0x88] sm:$0x3]
        %v5512 = vld [vmem:[#allocation3 + $0x90] sm:$0xff]
        %v5513 = vld [vmem:[#allocation3 + $0x98] sm:$0xff]
        %v5514 = vld [vmem:[#allocation3 + $0xa0] sm:$0x3]
        %v5515 = vld [vmem:[#allocation3 + $0xa8] sm:$0xff]
        %v5516 = vld [vmem:[#allocation3 + $0xb0] sm:$0xff]
        %v5517 = vld [vmem:[#allocation3 + $0xb8] sm:$0x3]
        %v5518 = vld [vmem:[#allocation3 + $0xc0] sm:$0xff]
        %v5519 = vld [vmem:[#allocation3 + $0xc8] sm:$0xff]
        %v5520 = vld [vmem:[#allocation3 + $0xd0] sm:$0x3]
        %v5521 = vld [vmem:[#allocation3 + $0xd8] sm:$0xff]
        %v5522 = vld [vmem:[#allocation3 + $0xe0] sm:$0xff]
        %v5523 = vld [vmem:[#allocation3 + $0xe8] sm:$0x3]
        %v5524 = vld [vmem:[#allocation3 + $0xf0] sm:$0xff]
        %v5525 = vld [vmem:[#allocation3 + $0xf8] sm:$0xff]
        %v5526 = vld [vmem:[#allocation3 + $0x100] sm:$0x3]
        %v5527 = vld [vmem:[#allocation3 + $0x108] sm:$0xff]
        %v5528 = vld [vmem:[#allocation3 + $0x110] sm:$0xff]
        %v5529 = vld [vmem:[#allocation3 + $0x118] sm:$0x3]
        %v5530 = vld [vmem:[#allocation3 + $0x120] sm:$0xff]
        %v5531 = vld [vmem:[#allocation3 + $0x128] sm:$0xff]
        %v5532 = vld [vmem:[#allocation3 + $0x130] sm:$0x3]
        %v5533 = vld [vmem:[#allocation3 + $0x138] sm:$0xff]
        %v5534 = vld [vmem:[#allocation3 + $0x140] sm:$0xff]
        %v5535 = vld [vmem:[#allocation3 + $0x148] sm:$0x3]
        %v5536 = vld [vmem:[#allocation3 + $0x150] sm:$0xff]
        %v5537 = vld [vmem:[#allocation3 + $0x158] sm:$0xff]
        %v5538 = vld [vmem:[#allocation3 + $0x160] sm:$0x3]
        %v5539 = vld [vmem:[#allocation3 + $0x168] sm:$0xff]
        %v5540 = vld [vmem:[#allocation3 + $0x170] sm:$0xff]
        %v5541 = vld [vmem:[#allocation3 + $0x178] sm:$0x3]
        %v5542 = vld [vmem:[%s5461] sm:$0xff]
        %v5543 = vld [vmem:[%s5461 + $0x8] sm:$0xff]
        %v5544 = vld [vmem:[%s5461 + $0x10] sm:$0x3]
        %v5545 = vld [vmem:[%s5461 + $0x18] sm:$0xff]
        %v5546 = vld [vmem:[%s5461 + $0x20] sm:$0xff]
        %v5547 = vld [vmem:[%s5461 + $0x28] sm:$0x3]
        %v5548 = vld [vmem:[%s5461 + $0x30] sm:$0xff]
        %v5549 = vld [vmem:[%s5461 + $0x38] sm:$0xff]
        %v5550 = vld [vmem:[%s5461 + $0x40] sm:$0x3]
        %v5551 = vld [vmem:[%s5461 + $0x48] sm:$0xff]
        %v5552 = vld [vmem:[%s5461 + $0x50] sm:$0xff]
        %v5553 = vld [vmem:[%s5461 + $0x58] sm:$0x3]
        %v5554 = vld [vmem:[%s5461 + $0x60] sm:$0xff]
        %v5555 = vld [vmem:[%s5461 + $0x68] sm:$0xff]
        %v5556 = vld [vmem:[%s5461 + $0x70] sm:$0x3]
        %v5557 = vld [vmem:[%s5461 + $0x78] sm:$0xff]
        %v5558 = vld [vmem:[%s5461 + $0x80] sm:$0xff]
        %v5559 = vld [vmem:[%s5461 + $0x88] sm:$0x3]
        %v5560 = vld [vmem:[%s5461 + $0x90] sm:$0xff]
        %v5561 = vld [vmem:[%s5461 + $0x98] sm:$0xff]
        %v5562 = vld [vmem:[%s5461 + $0xa0] sm:$0x3]
        %v5563 = vld [vmem:[%s5461 + $0xa8] sm:$0xff]
        %v5564 = vld [vmem:[%s5461 + $0xb0] sm:$0xff]
        %v5565 = vld [vmem:[%s5461 + $0xb8] sm:$0x3]
        %v5566 = vld [vmem:[%s5461 + $0xc0] sm:$0xff]
        %v5567 = vld [vmem:[%s5461 + $0xc8] sm:$0xff]
        %v5568 = vld [vmem:[%s5461 + $0xd0] sm:$0x3]
        %v5569 = vld [vmem:[%s5461 + $0xd8] sm:$0xff]
        %v5570 = vld [vmem:[%s5461 + $0xe0] sm:$0xff]
        %v5571 = vld [vmem:[%s5461 + $0xe8] sm:$0x3]
        %v5572 = vld [vmem:[%s5461 + $0xf0] sm:$0xff]
        %v5573 = vld [vmem:[%s5461 + $0xf8] sm:$0xff]
        %v5574 = vld [vmem:[%s5461 + $0x100] sm:$0x3]
        %v5575 = vld [vmem:[%s5461 + $0x108] sm:$0xff]
        %v5576 = vld [vmem:[%s5461 + $0x110] sm:$0xff]
        %v5577 = vld [vmem:[%s5461 + $0x118] sm:$0x3]
        %v5578 = vld [vmem:[%s5461 + $0x120] sm:$0xff]
        %v5579 = vld [vmem:[%s5461 + $0x128] sm:$0xff]
        %v5580 = vld [vmem:[%s5461 + $0x130] sm:$0x3]
        %v5581 = vld [vmem:[%s5461 + $0x138] sm:$0xff]
        %v5582 = vld [vmem:[%s5461 + $0x140] sm:$0xff]
        %v5583 = vld [vmem:[%s5461 + $0x148] sm:$0x3]
        %v5584 = vld [vmem:[%s5461 + $0x150] sm:$0xff]
        %v5585 = vld [vmem:[%s5461 + $0x158] sm:$0xff]
        %v5586 = vld [vmem:[%s5461 + $0x160] sm:$0x3]
        %v5587 = vld [vmem:[%s5461 + $0x168] sm:$0xff]
        %v5588 = vld [vmem:[%s5461 + $0x170] sm:$0xff]
        %v5589 = vld [vmem:[%s5461 + $0x178] sm:$0x3]
        %v5590 = vmax.f32 %v5494, %v5542
        %v5591 = vmax.f32 %v5495, %v5543
        %v5592 = vmax.f32 %v5496, %v5544
        %v5593 = vmax.f32 %v5497, %v5545
        %v5594 = vmax.f32 %v5498, %v5546
        %v5595 = vmax.f32 %v5499, %v5547
        %v5596 = vmax.f32 %v5500, %v5548
        %v5597 = vmax.f32 %v5501, %v5549
        %v5598 = vmax.f32 %v5502, %v5550
        %v5599 = vmax.f32 %v5503, %v5551
        %v5600 = vmax.f32 %v5504, %v5552
        %v5601 = vmax.f32 %v5505, %v5553
        %v5602 = vmax.f32 %v5506, %v5554
        %v5603 = vmax.f32 %v5507, %v5555
        %v5604 = vmax.f32 %v5508, %v5556
        %v5605 = vmax.f32 %v5509, %v5557
        %v5606 = vmax.f32 %v5510, %v5558
        %v5607 = vmax.f32 %v5511, %v5559
        %v5608 = vmax.f32 %v5512, %v5560
        %v5609 = vmax.f32 %v5513, %v5561
        %v5610 = vmax.f32 %v5514, %v5562
        %v5611 = vmax.f32 %v5515, %v5563
        %v5612 = vmax.f32 %v5516, %v5564
        %v5613 = vmax.f32 %v5517, %v5565
        %v5614 = vmax.f32 %v5518, %v5566
        %v5615 = vmax.f32 %v5519, %v5567
        %v5616 = vmax.f32 %v5520, %v5568
        %v5617 = vmax.f32 %v5521, %v5569
        %v5618 = vmax.f32 %v5522, %v5570
        %v5619 = vmax.f32 %v5523, %v5571
        %v5620 = vmax.f32 %v5524, %v5572
        %v5621 = vmax.f32 %v5525, %v5573
        %v5622 = vmax.f32 %v5526, %v5574
        %v5623 = vmax.f32 %v5527, %v5575
        %v5624 = vmax.f32 %v5528, %v5576
        %v5625 = vmax.f32 %v5529, %v5577
        %v5626 = vmax.f32 %v5530, %v5578
        %v5627 = vmax.f32 %v5531, %v5579
        %v5628 = vmax.f32 %v5532, %v5580
        %v5629 = vmax.f32 %v5533, %v5581
        %v5630 = vmax.f32 %v5534, %v5582
        %v5631 = vmax.f32 %v5535, %v5583
        %v5632 = vmax.f32 %v5536, %v5584
        %v5633 = vmax.f32 %v5537, %v5585
        %v5634 = vmax.f32 %v5538, %v5586
        %v5635 = vmax.f32 %v5539, %v5587
        %v5636 = vmax.f32 %v5540, %v5588
        %v5637 = vmax.f32 %v5541, %v5589
        %s5638 = scalar_lea.vmem [#allocation3], 48
        %v5639 = vld [vmem:[%s5638] sm:$0xff]
        %v5640 = vld [vmem:[%s5638 + $0x8] sm:$0xff]
        %v5641 = vld [vmem:[%s5638 + $0x10] sm:$0x3]
        %v5642 = vld [vmem:[%s5638 + $0x18] sm:$0xff]
        %v5643 = vld [vmem:[%s5638 + $0x20] sm:$0xff]
        %v5644 = vld [vmem:[%s5638 + $0x28] sm:$0x3]
        %v5645 = vld [vmem:[%s5638 + $0x30] sm:$0xff]
        %v5646 = vld [vmem:[%s5638 + $0x38] sm:$0xff]
        %v5647 = vld [vmem:[%s5638 + $0x40] sm:$0x3]
        %v5648 = vld [vmem:[%s5638 + $0x48] sm:$0xff]
        %v5649 = vld [vmem:[%s5638 + $0x50] sm:$0xff]
        %v5650 = vld [vmem:[%s5638 + $0x58] sm:$0x3]
        %v5651 = vld [vmem:[%s5638 + $0x60] sm:$0xff]
        %v5652 = vld [vmem:[%s5638 + $0x68] sm:$0xff]
        %v5653 = vld [vmem:[%s5638 + $0x70] sm:$0x3]
        %v5654 = vld [vmem:[%s5638 + $0x78] sm:$0xff]
        %v5655 = vld [vmem:[%s5638 + $0x80] sm:$0xff]
        %v5656 = vld [vmem:[%s5638 + $0x88] sm:$0x3]
        %v5657 = vld [vmem:[%s5638 + $0x90] sm:$0xff]
        %v5658 = vld [vmem:[%s5638 + $0x98] sm:$0xff]
        %v5659 = vld [vmem:[%s5638 + $0xa0] sm:$0x3]
        %v5660 = vld [vmem:[%s5638 + $0xa8] sm:$0xff]
        %v5661 = vld [vmem:[%s5638 + $0xb0] sm:$0xff]
        %v5662 = vld [vmem:[%s5638 + $0xb8] sm:$0x3]
        %v5663 = vld [vmem:[%s5638 + $0xc0] sm:$0xff]
        %v5664 = vld [vmem:[%s5638 + $0xc8] sm:$0xff]
        %v5665 = vld [vmem:[%s5638 + $0xd0] sm:$0x3]
        %v5666 = vld [vmem:[%s5638 + $0xd8] sm:$0xff]
        %v5667 = vld [vmem:[%s5638 + $0xe0] sm:$0xff]
        %v5668 = vld [vmem:[%s5638 + $0xe8] sm:$0x3]
        %v5669 = vld [vmem:[%s5638 + $0xf0] sm:$0xff]
        %v5670 = vld [vmem:[%s5638 + $0xf8] sm:$0xff]
        %v5671 = vld [vmem:[%s5638 + $0x100] sm:$0x3]
        %v5672 = vld [vmem:[%s5638 + $0x108] sm:$0xff]
        %v5673 = vld [vmem:[%s5638 + $0x110] sm:$0xff]
        %v5674 = vld [vmem:[%s5638 + $0x118] sm:$0x3]
        %v5675 = vld [vmem:[%s5638 + $0x120] sm:$0xff]
        %v5676 = vld [vmem:[%s5638 + $0x128] sm:$0xff]
        %v5677 = vld [vmem:[%s5638 + $0x130] sm:$0x3]
        %v5678 = vld [vmem:[%s5638 + $0x138] sm:$0xff]
        %v5679 = vld [vmem:[%s5638 + $0x140] sm:$0xff]
        %v5680 = vld [vmem:[%s5638 + $0x148] sm:$0x3]
        %v5681 = vld [vmem:[%s5638 + $0x150] sm:$0xff]
        %v5682 = vld [vmem:[%s5638 + $0x158] sm:$0xff]
        %v5683 = vld [vmem:[%s5638 + $0x160] sm:$0x3]
        %v5684 = vld [vmem:[%s5638 + $0x168] sm:$0xff]
        %v5685 = vld [vmem:[%s5638 + $0x170] sm:$0xff]
        %v5686 = vld [vmem:[%s5638 + $0x178] sm:$0x3]
        %v5687 = vmax.f32 %v5590, %v5639
        %v5688 = vmax.f32 %v5591, %v5640
        %v5689 = vmax.f32 %v5592, %v5641
        %v5690 = vmax.f32 %v5593, %v5642
        %v5691 = vmax.f32 %v5594, %v5643
        %v5692 = vmax.f32 %v5595, %v5644
        %v5693 = vmax.f32 %v5596, %v5645
        %v5694 = vmax.f32 %v5597, %v5646
        %v5695 = vmax.f32 %v5598, %v5647
        %v5696 = vmax.f32 %v5599, %v5648
        %v5697 = vmax.f32 %v5600, %v5649
        %v5698 = vmax.f32 %v5601, %v5650
        %v5699 = vmax.f32 %v5602, %v5651
        %v5700 = vmax.f32 %v5603, %v5652
        %v5701 = vmax.f32 %v5604, %v5653
        %v5702 = vmax.f32 %v5605, %v5654
        %v5703 = vmax.f32 %v5606, %v5655
        %v5704 = vmax.f32 %v5607, %v5656
        %v5705 = vmax.f32 %v5608, %v5657
        %v5706 = vmax.f32 %v5609, %v5658
        %v5707 = vmax.f32 %v5610, %v5659
        %v5708 = vmax.f32 %v5611, %v5660
        %v5709 = vmax.f32 %v5612, %v5661
        %v5710 = vmax.f32 %v5613, %v5662
        %v5711 = vmax.f32 %v5614, %v5663
        %v5712 = vmax.f32 %v5615, %v5664
        %v5713 = vmax.f32 %v5616, %v5665
        %v5714 = vmax.f32 %v5617, %v5666
        %v5715 = vmax.f32 %v5618, %v5667
        %v5716 = vmax.f32 %v5619, %v5668
        %v5717 = vmax.f32 %v5620, %v5669
        %v5718 = vmax.f32 %v5621, %v5670
        %v5719 = vmax.f32 %v5622, %v5671
        %v5720 = vmax.f32 %v5623, %v5672
        %v5721 = vmax.f32 %v5624, %v5673
        %v5722 = vmax.f32 %v5625, %v5674
        %v5723 = vmax.f32 %v5626, %v5675
        %v5724 = vmax.f32 %v5627, %v5676
        %v5725 = vmax.f32 %v5628, %v5677
        %v5726 = vmax.f32 %v5629, %v5678
        %v5727 = vmax.f32 %v5630, %v5679
        %v5728 = vmax.f32 %v5631, %v5680
        %v5729 = vmax.f32 %v5632, %v5681
        %v5730 = vmax.f32 %v5633, %v5682
        %v5731 = vmax.f32 %v5634, %v5683
        %v5732 = vmax.f32 %v5635, %v5684
        %v5733 = vmax.f32 %v5636, %v5685
        %v5734 = vmax.f32 %v5637, %v5686
        %vm5783 = vcmask 1046528
        %v5784 = vrot.slane %v5687, 1
        %v5785 = vrot.slane %v5688, 1
        %v5786 = vsel %vm5783, %v5784, %v5785
        %v5787 = vrot.slane %v5689, 1
        %v5788 = vsel %vm5783, %v5785, %v5787
        %v5789 = vrot.slane %v5690, 1
        %v5790 = vrot.slane %v5691, 1
        %v5791 = vsel %vm5783, %v5789, %v5790
        %v5792 = vrot.slane %v5692, 1
        %v5793 = vsel %vm5783, %v5790, %v5792
        %v5794 = vrot.slane %v5693, 1
        %v5795 = vrot.slane %v5694, 1
        %v5796 = vsel %vm5783, %v5794, %v5795
        %v5797 = vrot.slane %v5695, 1
        %v5798 = vsel %vm5783, %v5795, %v5797
        %v5799 = vrot.slane %v5696, 1
        %v5800 = vrot.slane %v5697, 1
        %v5801 = vsel %vm5783, %v5799, %v5800
        %v5802 = vrot.slane %v5698, 1
        %v5803 = vsel %vm5783, %v5800, %v5802
        %v5804 = vrot.slane %v5699, 1
        %v5805 = vrot.slane %v5700, 1
        %v5806 = vsel %vm5783, %v5804, %v5805
        %v5807 = vrot.slane %v5701, 1
        %v5808 = vsel %vm5783, %v5805, %v5807
        %v5809 = vrot.slane %v5702, 1
        %v5810 = vrot.slane %v5703, 1
        %v5811 = vsel %vm5783, %v5809, %v5810
        %v5812 = vrot.slane %v5704, 1
        %v5813 = vsel %vm5783, %v5810, %v5812
        %v5814 = vrot.slane %v5705, 1
        %v5815 = vrot.slane %v5706, 1
        %v5816 = vsel %vm5783, %v5814, %v5815
        %v5817 = vrot.slane %v5707, 1
        %v5818 = vsel %vm5783, %v5815, %v5817
        %v5819 = vrot.slane %v5708, 1
        %v5820 = vrot.slane %v5709, 1
        %v5821 = vsel %vm5783, %v5819, %v5820
        %v5822 = vrot.slane %v5710, 1
        %v5823 = vsel %vm5783, %v5820, %v5822
        %v5824 = vrot.slane %v5711, 1
        %v5825 = vrot.slane %v5712, 1
        %v5826 = vsel %vm5783, %v5824, %v5825
        %v5827 = vrot.slane %v5713, 1
        %v5828 = vsel %vm5783, %v5825, %v5827
        %v5829 = vrot.slane %v5714, 1
        %v5830 = vrot.slane %v5715, 1
        %v5831 = vsel %vm5783, %v5829, %v5830
        %v5832 = vrot.slane %v5716, 1
        %v5833 = vsel %vm5783, %v5830, %v5832
        %v5834 = vrot.slane %v5717, 1
        %v5835 = vrot.slane %v5718, 1
        %v5836 = vsel %vm5783, %v5834, %v5835
        %v5837 = vrot.slane %v5719, 1
        %v5838 = vsel %vm5783, %v5835, %v5837
        %v5839 = vrot.slane %v5720, 1
        %v5840 = vrot.slane %v5721, 1
        %v5841 = vsel %vm5783, %v5839, %v5840
        %v5842 = vrot.slane %v5722, 1
        %v5843 = vsel %vm5783, %v5840, %v5842
        %v5844 = vrot.slane %v5723, 1
        %v5845 = vrot.slane %v5724, 1
        %v5846 = vsel %vm5783, %v5844, %v5845
        %v5847 = vrot.slane %v5725, 1
        %v5848 = vsel %vm5783, %v5845, %v5847
        %v5849 = vrot.slane %v5726, 1
        %v5850 = vrot.slane %v5727, 1
        %v5851 = vsel %vm5783, %v5849, %v5850
        %v5852 = vrot.slane %v5728, 1
        %v5853 = vsel %vm5783, %v5850, %v5852
        %v5854 = vrot.slane %v5729, 1
        %v5855 = vrot.slane %v5730, 1
        %v5856 = vsel %vm5783, %v5854, %v5855
        %v5857 = vrot.slane %v5731, 1
        %v5858 = vsel %vm5783, %v5855, %v5857
        %v5859 = vrot.slane %v5732, 1
        %v5860 = vrot.slane %v5733, 1
        %v5861 = vsel %vm5783, %v5859, %v5860
        %v5862 = vrot.slane %v5734, 1
        %v5863 = vsel %vm5783, %v5860, %v5862
        %v5896 = vmax.f32 %v5687, %v5786
        %v5897 = vmax.f32 %v5688, %v5788
        %v5898 = vmax.f32 %v5690, %v5791
        %v5899 = vmax.f32 %v5691, %v5793
        %v5900 = vmax.f32 %v5693, %v5796
        %v5901 = vmax.f32 %v5694, %v5798
        %v5902 = vmax.f32 %v5696, %v5801
        %v5903 = vmax.f32 %v5697, %v5803
        %v5904 = vmax.f32 %v5699, %v5806
        %v5905 = vmax.f32 %v5700, %v5808
        %v5906 = vmax.f32 %v5702, %v5811
        %v5907 = vmax.f32 %v5703, %v5813
        %v5908 = vmax.f32 %v5705, %v5816
        %v5909 = vmax.f32 %v5706, %v5818
        %v5910 = vmax.f32 %v5708, %v5821
        %v5911 = vmax.f32 %v5709, %v5823
        %v5912 = vmax.f32 %v5711, %v5826
        %v5913 = vmax.f32 %v5712, %v5828
        %v5914 = vmax.f32 %v5714, %v5831
        %v5915 = vmax.f32 %v5715, %v5833
        %v5916 = vmax.f32 %v5717, %v5836
        %v5917 = vmax.f32 %v5718, %v5838
        %v5918 = vmax.f32 %v5720, %v5841
        %v5919 = vmax.f32 %v5721, %v5843
        %v5920 = vmax.f32 %v5723, %v5846
        %v5921 = vmax.f32 %v5724, %v5848
        %v5922 = vmax.f32 %v5726, %v5851
        %v5923 = vmax.f32 %v5727, %v5853
        %v5924 = vmax.f32 %v5729, %v5856
        %v5925 = vmax.f32 %v5730, %v5858
        %v5926 = vmax.f32 %v5732, %v5861
        %v5927 = vmax.f32 %v5733, %v5863
        %vm5928 = vcmask 1045504
        %v5929 = vrot.slane %v5687, 2
        %v5930 = vrot.slane %v5688, 2
        %v5931 = vsel %vm5928, %v5929, %v5930
        %v5932 = vrot.slane %v5689, 2
        %v5933 = vsel %vm5928, %v5930, %v5932
        %v5934 = vrot.slane %v5690, 2
        %v5935 = vrot.slane %v5691, 2
        %v5936 = vsel %vm5928, %v5934, %v5935
        %v5937 = vrot.slane %v5692, 2
        %v5938 = vsel %vm5928, %v5935, %v5937
        %v5939 = vrot.slane %v5693, 2
        %v5940 = vrot.slane %v5694, 2
        %v5941 = vsel %vm5928, %v5939, %v5940
        %v5942 = vrot.slane %v5695, 2
        %v5943 = vsel %vm5928, %v5940, %v5942
        %v5944 = vrot.slane %v5696, 2
        %v5945 = vrot.slane %v5697, 2
        %v5946 = vsel %vm5928, %v5944, %v5945
        %v5947 = vrot.slane %v5698, 2
        %v5948 = vsel %vm5928, %v5945, %v5947
        %v5949 = vrot.slane %v5699, 2
        %v5950 = vrot.slane %v5700, 2
        %v5951 = vsel %vm5928, %v5949, %v5950
        %v5952 = vrot.slane %v5701, 2
        %v5953 = vsel %vm5928, %v5950, %v5952
        %v5954 = vrot.slane %v5702, 2
        %v5955 = vrot.slane %v5703, 2
        %v5956 = vsel %vm5928, %v5954, %v5955
        %v5957 = vrot.slane %v5704, 2
        %v5958 = vsel %vm5928, %v5955, %v5957
        %v5959 = vrot.slane %v5705, 2
        %v5960 = vrot.slane %v5706, 2
        %v5961 = vsel %vm5928, %v5959, %v5960
        %v5962 = vrot.slane %v5707, 2
        %v5963 = vsel %vm5928, %v5960, %v5962
        %v5964 = vrot.slane %v5708, 2
        %v5965 = vrot.slane %v5709, 2
        %v5966 = vsel %vm5928, %v5964, %v5965
        %v5967 = vrot.slane %v5710, 2
        %v5968 = vsel %vm5928, %v5965, %v5967
        %v5969 = vrot.slane %v5711, 2
        %v5970 = vrot.slane %v5712, 2
        %v5971 = vsel %vm5928, %v5969, %v5970
        %v5972 = vrot.slane %v5713, 2
        %v5973 = vsel %vm5928, %v5970, %v5972
        %v5974 = vrot.slane %v5714, 2
        %v5975 = vrot.slane %v5715, 2
        %v5976 = vsel %vm5928, %v5974, %v5975
        %v5977 = vrot.slane %v5716, 2
        %v5978 = vsel %vm5928, %v5975, %v5977
        %v5979 = vrot.slane %v5717, 2
        %v5980 = vrot.slane %v5718, 2
        %v5981 = vsel %vm5928, %v5979, %v5980
        %v5982 = vrot.slane %v5719, 2
        %v5983 = vsel %vm5928, %v5980, %v5982
        %v5984 = vrot.slane %v5720, 2
        %v5985 = vrot.slane %v5721, 2
        %v5986 = vsel %vm5928, %v5984, %v5985
        %v5987 = vrot.slane %v5722, 2
        %v5988 = vsel %vm5928, %v5985, %v5987
        %v5989 = vrot.slane %v5723, 2
        %v5990 = vrot.slane %v5724, 2
        %v5991 = vsel %vm5928, %v5989, %v5990
        %v5992 = vrot.slane %v5725, 2
        %v5993 = vsel %vm5928, %v5990, %v5992
        %v5994 = vrot.slane %v5726, 2
        %v5995 = vrot.slane %v5727, 2
        %v5996 = vsel %vm5928, %v5994, %v5995
        %v5997 = vrot.slane %v5728, 2
        %v5998 = vsel %vm5928, %v5995, %v5997
        %v5999 = vrot.slane %v5729, 2
        %v6000 = vrot.slane %v5730, 2
        %v6001 = vsel %vm5928, %v5999, %v6000
        %v6002 = vrot.slane %v5731, 2
        %v6003 = vsel %vm5928, %v6000, %v6002
        %v6004 = vrot.slane %v5732, 2
        %v6005 = vrot.slane %v5733, 2
        %v6006 = vsel %vm5928, %v6004, %v6005
        %v6007 = vrot.slane %v5734, 2
        %v6008 = vsel %vm5928, %v6005, %v6007
        %v6041 = vmax.f32 %v5896, %v5931
        %v6042 = vmax.f32 %v5897, %v5933
        %v6043 = vmax.f32 %v5898, %v5936
        %v6044 = vmax.f32 %v5899, %v5938
        %v6045 = vmax.f32 %v5900, %v5941
        %v6046 = vmax.f32 %v5901, %v5943
        %v6047 = vmax.f32 %v5902, %v5946
        %v6048 = vmax.f32 %v5903, %v5948
        %v6049 = vmax.f32 %v5904, %v5951
        %v6050 = vmax.f32 %v5905, %v5953
        %v6051 = vmax.f32 %v5906, %v5956
        %v6052 = vmax.f32 %v5907, %v5958
        %v6053 = vmax.f32 %v5908, %v5961
        %v6054 = vmax.f32 %v5909, %v5963
        %v6055 = vmax.f32 %v5910, %v5966
        %v6056 = vmax.f32 %v5911, %v5968
        %v6057 = vmax.f32 %v5912, %v5971
        %v6058 = vmax.f32 %v5913, %v5973
        %v6059 = vmax.f32 %v5914, %v5976
        %v6060 = vmax.f32 %v5915, %v5978
        %v6061 = vmax.f32 %v5916, %v5981
        %v6062 = vmax.f32 %v5917, %v5983
        %v6063 = vmax.f32 %v5918, %v5986
        %v6064 = vmax.f32 %v5919, %v5988
        %v6065 = vmax.f32 %v5920, %v5991
        %v6066 = vmax.f32 %v5921, %v5993
        %v6067 = vmax.f32 %v5922, %v5996
        %v6068 = vmax.f32 %v5923, %v5998
        %v6069 = vmax.f32 %v5924, %v6001
        %v6070 = vmax.f32 %v5925, %v6003
        %v6071 = vmax.f32 %v5926, %v6006
        %v6072 = vmax.f32 %v5927, %v6008
        %v6073 = vpack.c.bf16 %v6042, %v6041
        %v6074 = vpack.c.bf16 %v6044, %v6043
        %v6075 = vpack.c.bf16 %v6046, %v6045
        %v6076 = vpack.c.bf16 %v6048, %v6047
        %v6077 = vpack.c.bf16 %v6050, %v6049
        %v6078 = vpack.c.bf16 %v6052, %v6051
        %v6079 = vpack.c.bf16 %v6054, %v6053
        %v6080 = vpack.c.bf16 %v6056, %v6055
        %v6081 = vpack.c.bf16 %v6058, %v6057
        %v6082 = vpack.c.bf16 %v6060, %v6059
        %v6083 = vpack.c.bf16 %v6062, %v6061
        %v6084 = vpack.c.bf16 %v6064, %v6063
        %v6085 = vpack.c.bf16 %v6066, %v6065
        %v6086 = vpack.c.bf16 %v6068, %v6067
        %v6087 = vpack.c.bf16 %v6070, %v6069
        %v6088 = vpack.c.bf16 %v6072, %v6071
        %v6089 = vld [vmem:[%s5] sm:$0x3]
        %v6090 = vld [vmem:[%s6] sm:$0x1]
        %v6092 = vlaneseq
        %v6093 = vshrl.u32 %v6092, 7
        %v6094 = vsub.s32 0, %v6093
        %v6095 = vrot.slane %v6090, %v6094
        %v6098 = vsel %vm348, %v6073, 0
        %v6101 = vsel %vm348, %v6074, 0
        %v6104 = vsel %vm348, %v6075, 0
        %v6107 = vsel %vm348, %v6076, 0
        %v6110 = vsel %vm348, %v6077, 0
        %v6113 = vsel %vm348, %v6078, 0
        %v6116 = vsel %vm348, %v6079, 0
        %v6119 = vsel %vm348, %v6080, 0
        %v6122 = vsel %vm348, %v6081, 0
        %v6125 = vsel %vm348, %v6082, 0
        %v6128 = vsel %vm348, %v6083, 0
        %v6131 = vsel %vm348, %v6084, 0
        %v6134 = vsel %vm348, %v6085, 0
        %v6137 = vsel %vm348, %v6086, 0
        %v6140 = vsel %vm348, %v6087, 0
        %v6143 = vsel %vm348, %v6088, 0
        %v6146 = vsel %vm397, %v6089, 0
        %6148 = vmatprep.subr.bf16.mxu0 0
        %6149 = vmatpush1.bf16.msra.mxu0 0
        %6150 = vmatprep.subr.bf16.mxu0 0
        %6151 = vmatpush1.bf16.msra.mxu0 0
        %6152 = vmatprep.subr.bf16.mxu0 0
        %6153 = vmatpush1.bf16.msra.mxu0 0
        %6154 = vmatprep.subr.bf16.mxu0 0
        %6155 = vmatpush1.bf16.msra.mxu0 0
        %6156 = vmatprep.subr.bf16.mxu0 0
        %6157 = vmatpush1.bf16.msra.mxu0 0
        %6158 = vmatprep.subr.bf16.mxu0 0
        %6159 = vmatpush1.bf16.msra.mxu0 0
        %6160 = vmatprep.subr.bf16.mxu0 0
        %6161 = vmatpush1.bf16.msra.mxu0 0
        %6162 = vmatprep.subr.bf16.mxu0 0
        %6163 = vmatpush1.bf16.msra.mxu0 %v6146
        %6164 = vmatprep.subr.bf16.mxu0 0
        %6165 = vmatpush2.bf16.msra.mxu0 0
        %6166 = vmatprep.subr.bf16.mxu0 0
        %6167 = vmatpush2.bf16.msra.mxu0 0
        %6168 = vmatprep.subr.bf16.mxu0 0
        %6169 = vmatpush2.bf16.msra.mxu0 0
        %6170 = vmatprep.subr.bf16.mxu0 0
        %6171 = vmatpush2.bf16.msra.mxu0 0
        %6172 = vmatprep.subr.bf16.mxu0 0
        %6173 = vmatpush2.bf16.msra.mxu0 0
        %6174 = vmatprep.subr.bf16.mxu0 0
        %6175 = vmatpush2.bf16.msra.mxu0 0
        %6176 = vmatprep.subr.bf16.mxu0 0
        %6177 = vmatpush2.bf16.msra.mxu0 0
        %6178 = vmatprep.subr.bf16.mxu0 0
        %6179 = vmatpush2.bf16.msra.mxu0 0
        %6180 = vmatprep.mubr.bf16.mxu0 0
        %6181 = vmatmul.mubr.bf16.gmra.mxu0 %v6098
        %v6182 = vpop.f32.mrf.mxu0
        %v6183 = vadd.f32 %v6095, %v6182
        %v6184 = vpop.f32.mrf.mxu0
        %v6185 = vpop.f32.mrf.mxu0
        %v6186 = vadd.f32 %v6095, %v6185
        %v6187 = vpop.f32.mrf.mxu0
        %6188 = vmatprep.mubr.bf16.mxu0 0
        %6189 = vmatmul.mubr.bf16.gmra.mxu0 %v6101
        %v6190 = vpop.f32.mrf.mxu0
        %v6191 = vadd.f32 %v6095, %v6190
        %v6192 = vpop.f32.mrf.mxu0
        %v6193 = vpop.f32.mrf.mxu0
        %v6194 = vadd.f32 %v6095, %v6193
        %v6195 = vpop.f32.mrf.mxu0
        %6196 = vmatprep.mubr.bf16.mxu0 0
        %6197 = vmatmul.mubr.bf16.gmra.mxu0 %v6104
        %v6198 = vpop.f32.mrf.mxu0
        %v6199 = vadd.f32 %v6095, %v6198
        %v6200 = vpop.f32.mrf.mxu0
        %v6201 = vpop.f32.mrf.mxu0
        %v6202 = vadd.f32 %v6095, %v6201
        %v6203 = vpop.f32.mrf.mxu0
        %6204 = vmatprep.mubr.bf16.mxu0 0
        %6205 = vmatmul.mubr.bf16.gmra.mxu0 %v6107
        %v6206 = vpop.f32.mrf.mxu0
        %v6207 = vadd.f32 %v6095, %v6206
        %v6208 = vpop.f32.mrf.mxu0
        %v6209 = vpop.f32.mrf.mxu0
        %v6210 = vadd.f32 %v6095, %v6209
        %v6211 = vpop.f32.mrf.mxu0
        %6212 = vmatprep.mubr.bf16.mxu0 0
        %6213 = vmatmul.mubr.bf16.gmra.mxu0 %v6110
        %v6214 = vpop.f32.mrf.mxu0
        %v6215 = vadd.f32 %v6095, %v6214
        %v6216 = vpop.f32.mrf.mxu0
        %v6217 = vpop.f32.mrf.mxu0
        %v6218 = vadd.f32 %v6095, %v6217
        %v6219 = vpop.f32.mrf.mxu0
        %6220 = vmatprep.mubr.bf16.mxu0 0
        %6221 = vmatmul.mubr.bf16.gmra.mxu0 %v6113
        %v6222 = vpop.f32.mrf.mxu0
        %v6223 = vadd.f32 %v6095, %v6222
        %v6224 = vpop.f32.mrf.mxu0
        %v6225 = vpop.f32.mrf.mxu0
        %v6226 = vadd.f32 %v6095, %v6225
        %v6227 = vpop.f32.mrf.mxu0
        %6228 = vmatprep.mubr.bf16.mxu0 0
        %6229 = vmatmul.mubr.bf16.gmra.mxu0 %v6116
        %v6230 = vpop.f32.mrf.mxu0
        %v6231 = vadd.f32 %v6095, %v6230
        %v6232 = vpop.f32.mrf.mxu0
        %v6233 = vpop.f32.mrf.mxu0
        %v6234 = vadd.f32 %v6095, %v6233
        %v6235 = vpop.f32.mrf.mxu0
        %6236 = vmatprep.mubr.bf16.mxu0 0
        %6237 = vmatmul.mubr.bf16.gmra.mxu0 %v6119
        %v6238 = vpop.f32.mrf.mxu0
        %v6239 = vadd.f32 %v6095, %v6238
        %v6240 = vpop.f32.mrf.mxu0
        %v6241 = vpop.f32.mrf.mxu0
        %v6242 = vadd.f32 %v6095, %v6241
        %v6243 = vpop.f32.mrf.mxu0
        %6244 = vmatprep.mubr.bf16.mxu0 0
        %6245 = vmatmul.mubr.bf16.gmra.mxu0 %v6122
        %v6246 = vpop.f32.mrf.mxu0
        %v6247 = vadd.f32 %v6095, %v6246
        %v6248 = vpop.f32.mrf.mxu0
        %v6249 = vpop.f32.mrf.mxu0
        %v6250 = vadd.f32 %v6095, %v6249
        %v6251 = vpop.f32.mrf.mxu0
        %6252 = vmatprep.mubr.bf16.mxu0 0
        %6253 = vmatmul.mubr.bf16.gmra.mxu0 %v6125
        %v6254 = vpop.f32.mrf.mxu0
        %v6255 = vadd.f32 %v6095, %v6254
        %v6256 = vpop.f32.mrf.mxu0
        %v6257 = vpop.f32.mrf.mxu0
        %v6258 = vadd.f32 %v6095, %v6257
        %v6259 = vpop.f32.mrf.mxu0
        %6260 = vmatprep.mubr.bf16.mxu0 0
        %6261 = vmatmul.mubr.bf16.gmra.mxu0 %v6128
        %v6262 = vpop.f32.mrf.mxu0
        %v6263 = vadd.f32 %v6095, %v6262
        %v6264 = vpop.f32.mrf.mxu0
        %v6265 = vpop.f32.mrf.mxu0
        %v6266 = vadd.f32 %v6095, %v6265
        %v6267 = vpop.f32.mrf.mxu0
        %6268 = vmatprep.mubr.bf16.mxu0 0
        %6269 = vmatmul.mubr.bf16.gmra.mxu0 %v6131
        %v6270 = vpop.f32.mrf.mxu0
        %v6271 = vadd.f32 %v6095, %v6270
        %v6272 = vpop.f32.mrf.mxu0
        %v6273 = vpop.f32.mrf.mxu0
        %v6274 = vadd.f32 %v6095, %v6273
        %v6275 = vpop.f32.mrf.mxu0
        %6276 = vmatprep.mubr.bf16.mxu0 0
        %6277 = vmatmul.mubr.bf16.gmra.mxu0 %v6134
        %v6278 = vpop.f32.mrf.mxu0
        %v6279 = vadd.f32 %v6095, %v6278
        %v6280 = vpop.f32.mrf.mxu0
        %v6281 = vpop.f32.mrf.mxu0
        %v6282 = vadd.f32 %v6095, %v6281
        %v6283 = vpop.f32.mrf.mxu0
        %6284 = vmatprep.mubr.bf16.mxu0 0
        %6285 = vmatmul.mubr.bf16.gmra.mxu0 %v6137
        %v6286 = vpop.f32.mrf.mxu0
        %v6287 = vadd.f32 %v6095, %v6286
        %v6288 = vpop.f32.mrf.mxu0
        %v6289 = vpop.f32.mrf.mxu0
        %v6290 = vadd.f32 %v6095, %v6289
        %v6291 = vpop.f32.mrf.mxu0
        %6292 = vmatprep.mubr.bf16.mxu0 0
        %6293 = vmatmul.mubr.bf16.gmra.mxu0 %v6140
        %v6294 = vpop.f32.mrf.mxu0
        %v6295 = vadd.f32 %v6095, %v6294
        %v6296 = vpop.f32.mrf.mxu0
        %v6297 = vpop.f32.mrf.mxu0
        %v6298 = vadd.f32 %v6095, %v6297
        %v6299 = vpop.f32.mrf.mxu0
        %6300 = vmatprep.mubr.bf16.mxu0 0
        %6301 = vmatmul.mubr.bf16.gmra.mxu0 %v6143
        %v6302 = vpop.f32.mrf.mxu0
        %v6303 = vadd.f32 %v6095, %v6302
        %v6304 = vpop.f32.mrf.mxu0
        %v6305 = vpop.f32.mrf.mxu0
        %v6306 = vadd.f32 %v6095, %v6305
        %v6307 = vpop.f32.mrf.mxu0
        %6308 = vdwg.mxu0
        %v6309 = vmax.f32 %v6183, 0.0
        %v6310 = vmax.f32 %v6186, 0.0
        %v6311 = vmax.f32 %v6191, 0.0
        %v6312 = vmax.f32 %v6194, 0.0
        %v6313 = vmax.f32 %v6199, 0.0
        %v6314 = vmax.f32 %v6202, 0.0
        %v6315 = vmax.f32 %v6207, 0.0
        %v6316 = vmax.f32 %v6210, 0.0
        %v6317 = vmax.f32 %v6215, 0.0
        %v6318 = vmax.f32 %v6218, 0.0
        %v6319 = vmax.f32 %v6223, 0.0
        %v6320 = vmax.f32 %v6226, 0.0
        %v6321 = vmax.f32 %v6231, 0.0
        %v6322 = vmax.f32 %v6234, 0.0
        %v6323 = vmax.f32 %v6239, 0.0
        %v6324 = vmax.f32 %v6242, 0.0
        %v6325 = vmax.f32 %v6247, 0.0
        %v6326 = vmax.f32 %v6250, 0.0
        %v6327 = vmax.f32 %v6255, 0.0
        %v6328 = vmax.f32 %v6258, 0.0
        %v6329 = vmax.f32 %v6263, 0.0
        %v6330 = vmax.f32 %v6266, 0.0
        %v6331 = vmax.f32 %v6271, 0.0
        %v6332 = vmax.f32 %v6274, 0.0
        %v6333 = vmax.f32 %v6279, 0.0
        %v6334 = vmax.f32 %v6282, 0.0
        %v6335 = vmax.f32 %v6287, 0.0
        %v6336 = vmax.f32 %v6290, 0.0
        %v6337 = vmax.f32 %v6295, 0.0
        %v6338 = vmax.f32 %v6298, 0.0
        %v6339 = vmax.f32 %v6303, 0.0
        %v6340 = vmax.f32 %v6306, 0.0
        %6373 = vrot.lane.b32.xlu0 %v5384, 8
        %v6374 = vpop.permute.xlu0 %6373
        %6375 = vrot.lane.b32.xlu0 %v5385, 8
        %v6376 = vpop.permute.xlu0 %6375
        %6377 = vrot.lane.b32.xlu0 %v5386, 8
        %v6378 = vpop.permute.xlu0 %6377
        %6379 = vrot.lane.b32.xlu0 %v5387, 8
        %v6380 = vpop.permute.xlu0 %6379
        %6381 = vrot.lane.b32.xlu0 %v5388, 8
        %v6382 = vpop.permute.xlu0 %6381
        %6383 = vrot.lane.b32.xlu0 %v5389, 8
        %v6384 = vpop.permute.xlu0 %6383
        %6385 = vrot.lane.b32.xlu0 %v5390, 8
        %v6386 = vpop.permute.xlu0 %6385
        %6387 = vrot.lane.b32.xlu0 %v5391, 8
        %v6388 = vpop.permute.xlu0 %6387
        %6389 = vrot.lane.b32.xlu0 %v5392, 8
        %v6390 = vpop.permute.xlu0 %6389
        %6391 = vrot.lane.b32.xlu0 %v5393, 8
        %v6392 = vpop.permute.xlu0 %6391
        %6393 = vrot.lane.b32.xlu0 %v5394, 8
        %v6394 = vpop.permute.xlu0 %6393
        %6395 = vrot.lane.b32.xlu0 %v5395, 8
        %v6396 = vpop.permute.xlu0 %6395
        %6397 = vrot.lane.b32.xlu0 %v5396, 8
        %v6398 = vpop.permute.xlu0 %6397
        %6399 = vrot.lane.b32.xlu0 %v5397, 8
        %v6400 = vpop.permute.xlu0 %6399
        %6401 = vrot.lane.b32.xlu0 %v5398, 8
        %v6402 = vpop.permute.xlu0 %6401
        %6403 = vrot.lane.b32.xlu0 %v5399, 8
        %v6404 = vpop.permute.xlu0 %6403
        %6405 = vrot.lane.b32.xlu0 %v5400, 8
        %v6406 = vpop.permute.xlu0 %6405
        %6407 = vrot.lane.b32.xlu0 %v5401, 8
        %v6408 = vpop.permute.xlu0 %6407
        %6409 = vrot.lane.b32.xlu0 %v5402, 8
        %v6410 = vpop.permute.xlu0 %6409
        %6411 = vrot.lane.b32.xlu0 %v5403, 8
        %v6412 = vpop.permute.xlu0 %6411
        %6413 = vrot.lane.b32.xlu0 %v5404, 8
        %v6414 = vpop.permute.xlu0 %6413
        %6415 = vrot.lane.b32.xlu0 %v5405, 8
        %v6416 = vpop.permute.xlu0 %6415
        %6417 = vrot.lane.b32.xlu0 %v5406, 8
        %v6418 = vpop.permute.xlu0 %6417
        %6419 = vrot.lane.b32.xlu0 %v5407, 8
        %v6420 = vpop.permute.xlu0 %6419
        %6421 = vrot.lane.b32.xlu0 %v5408, 8
        %v6422 = vpop.permute.xlu0 %6421
        %6423 = vrot.lane.b32.xlu0 %v5409, 8
        %v6424 = vpop.permute.xlu0 %6423
        %6425 = vrot.lane.b32.xlu0 %v5410, 8
        %v6426 = vpop.permute.xlu0 %6425
        %6427 = vrot.lane.b32.xlu0 %v5411, 8
        %v6428 = vpop.permute.xlu0 %6427
        %6429 = vrot.lane.b32.xlu0 %v5412, 8
        %v6430 = vpop.permute.xlu0 %6429
        %6431 = vrot.lane.b32.xlu0 %v5413, 8
        %v6432 = vpop.permute.xlu0 %6431
        %6433 = vrot.lane.b32.xlu0 %v5414, 8
        %v6434 = vpop.permute.xlu0 %6433
        %6435 = vrot.lane.b32.xlu0 %v5415, 8
        %v6436 = vpop.permute.xlu0 %6435
        %6501 = vrot.lane.b32.xlu0 %v6309, 24
        %v6502 = vpop.permute.xlu0 %6501
        %6503 = vrot.lane.b32.xlu0 %v6310, 24
        %v6504 = vpop.permute.xlu0 %6503
        %6505 = vrot.lane.b32.xlu0 %v6311, 24
        %v6506 = vpop.permute.xlu0 %6505
        %6507 = vrot.lane.b32.xlu0 %v6312, 24
        %v6508 = vpop.permute.xlu0 %6507
        %6509 = vrot.lane.b32.xlu0 %v6313, 24
        %v6510 = vpop.permute.xlu0 %6509
        %6511 = vrot.lane.b32.xlu0 %v6314, 24
        %v6512 = vpop.permute.xlu0 %6511
        %6513 = vrot.lane.b32.xlu0 %v6315, 24
        %v6514 = vpop.permute.xlu0 %6513
        %6515 = vrot.lane.b32.xlu0 %v6316, 24
        %v6516 = vpop.permute.xlu0 %6515
        %6517 = vrot.lane.b32.xlu0 %v6317, 24
        %v6518 = vpop.permute.xlu0 %6517
        %6519 = vrot.lane.b32.xlu0 %v6318, 24
        %v6520 = vpop.permute.xlu0 %6519
        %6521 = vrot.lane.b32.xlu0 %v6319, 24
        %v6522 = vpop.permute.xlu0 %6521
        %6523 = vrot.lane.b32.xlu0 %v6320, 24
        %v6524 = vpop.permute.xlu0 %6523
        %6525 = vrot.lane.b32.xlu0 %v6321, 24
        %v6526 = vpop.permute.xlu0 %6525
        %6527 = vrot.lane.b32.xlu0 %v6322, 24
        %v6528 = vpop.permute.xlu0 %6527
        %6529 = vrot.lane.b32.xlu0 %v6323, 24
        %v6530 = vpop.permute.xlu0 %6529
        %6531 = vrot.lane.b32.xlu0 %v6324, 24
        %v6532 = vpop.permute.xlu0 %6531
        %6533 = vrot.lane.b32.xlu0 %v6325, 24
        %v6534 = vpop.permute.xlu0 %6533
        %6535 = vrot.lane.b32.xlu0 %v6326, 24
        %v6536 = vpop.permute.xlu0 %6535
        %6537 = vrot.lane.b32.xlu0 %v6327, 24
        %v6538 = vpop.permute.xlu0 %6537
        %6539 = vrot.lane.b32.xlu0 %v6328, 24
        %v6540 = vpop.permute.xlu0 %6539
        %6541 = vrot.lane.b32.xlu0 %v6329, 24
        %v6542 = vpop.permute.xlu0 %6541
        %6543 = vrot.lane.b32.xlu0 %v6330, 24
        %v6544 = vpop.permute.xlu0 %6543
        %6545 = vrot.lane.b32.xlu0 %v6331, 24
        %v6546 = vpop.permute.xlu0 %6545
        %6547 = vrot.lane.b32.xlu0 %v6332, 24
        %v6548 = vpop.permute.xlu0 %6547
        %6549 = vrot.lane.b32.xlu0 %v6333, 24
        %v6550 = vpop.permute.xlu0 %6549
        %6551 = vrot.lane.b32.xlu0 %v6334, 24
        %v6552 = vpop.permute.xlu0 %6551
        %6553 = vrot.lane.b32.xlu0 %v6335, 24
        %v6554 = vpop.permute.xlu0 %6553
        %6555 = vrot.lane.b32.xlu0 %v6336, 24
        %v6556 = vpop.permute.xlu0 %6555
        %6557 = vrot.lane.b32.xlu0 %v6337, 24
        %v6558 = vpop.permute.xlu0 %6557
        %6559 = vrot.lane.b32.xlu0 %v6338, 24
        %v6560 = vpop.permute.xlu0 %6559
        %6561 = vrot.lane.b32.xlu0 %v6339, 24
        %v6562 = vpop.permute.xlu0 %6561
        %6563 = vrot.lane.b32.xlu0 %v6340, 24
        %v6564 = vpop.permute.xlu0 %6563
        %vm6597 = vcmask 64512
        %v6598 = vsel %vm6597, %v597, %v6374
        %v6599 = vsel %vm6597, %v599, %v6376
        %v6600 = vsel %vm6597, %v601, %v6378
        %v6601 = vsel %vm6597, %v603, %v6380
        %v6602 = vsel %vm6597, %v605, %v6382
        %v6603 = vsel %vm6597, %v607, %v6384
        %v6604 = vsel %vm6597, %v609, %v6386
        %v6605 = vsel %vm6597, %v611, %v6388
        %v6606 = vsel %vm6597, %v613, %v6390
        %v6607 = vsel %vm6597, %v615, %v6392
        %v6608 = vsel %vm6597, %v617, %v6394
        %v6609 = vsel %vm6597, %v619, %v6396
        %v6610 = vsel %vm6597, %v621, %v6398
        %v6611 = vsel %vm6597, %v623, %v6400
        %v6612 = vsel %vm6597, %v625, %v6402
        %v6613 = vsel %vm6597, %v627, %v6404
        %v6614 = vsel %vm6597, %v629, %v6406
        %v6615 = vsel %vm6597, %v631, %v6408
        %v6616 = vsel %vm6597, %v633, %v6410
        %v6617 = vsel %vm6597, %v635, %v6412
        %v6618 = vsel %vm6597, %v637, %v6414
        %v6619 = vsel %vm6597, %v639, %v6416
        %v6620 = vsel %vm6597, %v641, %v6418
        %v6621 = vsel %vm6597, %v643, %v6420
        %v6622 = vsel %vm6597, %v645, %v6422
        %v6623 = vsel %vm6597, %v647, %v6424
        %v6624 = vsel %vm6597, %v649, %v6426
        %v6625 = vsel %vm6597, %v651, %v6428
        %v6626 = vsel %vm6597, %v653, %v6430
        %v6627 = vsel %vm6597, %v655, %v6432
        %v6628 = vsel %vm6597, %v657, %v6434
        %v6629 = vsel %vm6597, %v659, %v6436
        %vm6630 = vcmask 195584
        %v6631 = vsel %vm6630, %v6598, %v6502
        %v6632 = vsel %vm6630, %v6599, %v6504
        %v6633 = vsel %vm6630, %v6600, %v6506
        %v6634 = vsel %vm6630, %v6601, %v6508
        %v6635 = vsel %vm6630, %v6602, %v6510
        %v6636 = vsel %vm6630, %v6603, %v6512
        %v6637 = vsel %vm6630, %v6604, %v6514
        %v6638 = vsel %vm6630, %v6605, %v6516
        %v6639 = vsel %vm6630, %v6606, %v6518
        %v6640 = vsel %vm6630, %v6607, %v6520
        %v6641 = vsel %vm6630, %v6608, %v6522
        %v6642 = vsel %vm6630, %v6609, %v6524
        %v6643 = vsel %vm6630, %v6610, %v6526
        %v6644 = vsel %vm6630, %v6611, %v6528
        %v6645 = vsel %vm6630, %v6612, %v6530
        %v6646 = vsel %vm6630, %v6613, %v6532
        %v6647 = vsel %vm6630, %v6614, %v6534
        %v6648 = vsel %vm6630, %v6615, %v6536
        %v6649 = vsel %vm6630, %v6616, %v6538
        %v6650 = vsel %vm6630, %v6617, %v6540
        %v6651 = vsel %vm6630, %v6618, %v6542
        %v6652 = vsel %vm6630, %v6619, %v6544
        %v6653 = vsel %vm6630, %v6620, %v6546
        %v6654 = vsel %vm6630, %v6621, %v6548
        %v6655 = vsel %vm6630, %v6622, %v6550
        %v6656 = vsel %vm6630, %v6623, %v6552
        %v6657 = vsel %vm6630, %v6624, %v6554
        %v6658 = vsel %vm6630, %v6625, %v6556
        %v6659 = vsel %vm6630, %v6626, %v6558
        %v6660 = vsel %vm6630, %v6627, %v6560
        %v6661 = vsel %vm6630, %v6628, %v6562
        %v6662 = vsel %vm6630, %v6629, %v6564
        %vm6663 = vcmask 261120
        %6664 = vst.msk [vmem:[%s271] sm:$0xff] %vm6663, %v6631
        %6665 = vst.msk [vmem:[%s271 + $0x8] sm:$0xff] %vm6663, %v6632
        %6666 = vst.msk [vmem:[%s271 + $0x10] sm:$0xff] %vm6663, %v6633
        %6667 = vst.msk [vmem:[%s271 + $0x18] sm:$0xff] %vm6663, %v6634
        %6668 = vst.msk [vmem:[%s271 + $0x20] sm:$0xff] %vm6663, %v6635
        %6669 = vst.msk [vmem:[%s271 + $0x28] sm:$0xff] %vm6663, %v6636
        %6670 = vst.msk [vmem:[%s271 + $0x30] sm:$0xff] %vm6663, %v6637
        %6671 = vst.msk [vmem:[%s271 + $0x38] sm:$0xff] %vm6663, %v6638
        %6672 = vst.msk [vmem:[%s271 + $0x40] sm:$0xff] %vm6663, %v6639
        %6673 = vst.msk [vmem:[%s271 + $0x48] sm:$0xff] %vm6663, %v6640
        %6674 = vst.msk [vmem:[%s271 + $0x50] sm:$0xff] %vm6663, %v6641
        %6675 = vst.msk [vmem:[%s271 + $0x58] sm:$0xff] %vm6663, %v6642
        %6676 = vst.msk [vmem:[%s271 + $0x60] sm:$0xff] %vm6663, %v6643
        %6677 = vst.msk [vmem:[%s271 + $0x68] sm:$0xff] %vm6663, %v6644
        %6678 = vst.msk [vmem:[%s271 + $0x70] sm:$0xff] %vm6663, %v6645
        %6679 = vst.msk [vmem:[%s271 + $0x78] sm:$0xff] %vm6663, %v6646
        %6680 = vst.msk [vmem:[%s271 + $0x80] sm:$0xff] %vm6663, %v6647
        %6681 = vst.msk [vmem:[%s271 + $0x88] sm:$0xff] %vm6663, %v6648
        %6682 = vst.msk [vmem:[%s271 + $0x90] sm:$0xff] %vm6663, %v6649
        %6683 = vst.msk [vmem:[%s271 + $0x98] sm:$0xff] %vm6663, %v6650
        %6684 = vst.msk [vmem:[%s271 + $0xa0] sm:$0xff] %vm6663, %v6651
        %6685 = vst.msk [vmem:[%s271 + $0xa8] sm:$0xff] %vm6663, %v6652
        %6686 = vst.msk [vmem:[%s271 + $0xb0] sm:$0xff] %vm6663, %v6653
        %6687 = vst.msk [vmem:[%s271 + $0xb8] sm:$0xff] %vm6663, %v6654
        %6688 = vst.msk [vmem:[%s271 + $0xc0] sm:$0xff] %vm6663, %v6655
        %6689 = vst.msk [vmem:[%s271 + $0xc8] sm:$0xff] %vm6663, %v6656
        %6690 = vst.msk [vmem:[%s271 + $0xd0] sm:$0xff] %vm6663, %v6657
        %6691 = vst.msk [vmem:[%s271 + $0xd8] sm:$0xff] %vm6663, %v6658
        %6692 = vst.msk [vmem:[%s271 + $0xe0] sm:$0xff] %vm6663, %v6659
        %6693 = vst.msk [vmem:[%s271 + $0xe8] sm:$0xff] %vm6663, %v6660
        %6694 = vst.msk [vmem:[%s271 + $0xf0] sm:$0xff] %vm6663, %v6661
        %6695 = vst.msk [vmem:[%s271 + $0xf8] sm:$0xff] %vm6663, %v6662
        %s6696 = sand.u32 %s181, 1
        %s6697 = scalar_lea.sflag [#allocation5], %s6696
        %s6698 = sand.u32 %s181, 1
        %s6699 = smul.addr %s6698, 256
        %s6700 = scalar_lea.vmem [#allocation4], %s6699
        // Predicated region
        $region49: #{inception_v1_forward.1} parent=47 // pred_check
          %p6701 = pneg %p191
        $region50: #{inception_v1_forward.1} parent=47 // pred_check_branch
          %6703 = sbr.rel (%p6701) target = $region52
        $region51: #{inception_v1_forward.1} parent=47 // pred_region
          %s6705 = ssub.s32 4096, 4096
          %6706 = vsyncadd %s6697, %s6705
          %s6707 = smul.addr %s21, 32
          %s6708 = smul.addr %s6707, 128
          %s6709 = scalar_lea.hbm %s7, %s6708
          %s6710 = sshll.u32 %s6700, 4
          %s6711 = int_to_ptr.vmem [resolvable:$true] %s6710
          %6716 = dma.vmem_to_hbm [thread:$0]  %s6711, 4096, %s6709, %s6697, 128, 128, 8
        $region52: #{inception_v1_forward.1} parent=47 // pred_fallthru
          _
      $region48: #{inception_v1_forward.1} parent=5 // pred_fallthru
        _
      %p6717 = scmp.le.s32.totalorder 2, %s16
      // Predicated region
      $region53: #{inception_v1_forward.1} parent=5 // pred_check
        %p6718 = pneg %p6717
      $region54: #{inception_v1_forward.1} parent=5 // pred_check_branch
        %6720 = sbr.rel (%p6718) target = $region56
      $region55: #{inception_v1_forward.1} parent=5 // pred_region
        %s6721 = ssub.s32 %s16, 2
        // Predicated region
        $region57: #{inception_v1_forward.1} parent=55 // pred_check
          %p6722 = pneg %p197
        $region58: #{inception_v1_forward.1} parent=55 // pred_check_branch
          %6724 = sbr.rel (%p6722) target = $region60
        $region59: #{inception_v1_forward.1} parent=55 // pred_region
          %s6725 = sand.u32 %s182, 1
          %s6726 = scalar_lea.sflag [#allocation5], %s6725
          %s6727 = sand.u32 %s182, 1
          %s6728 = smul.addr %s6727, 256
          %s6729 = scalar_lea.vmem [#allocation4], %s6728
          %6730 = dma.done %s6726, 4096
        $region60: #{inception_v1_forward.1} parent=55 // pred_fallthru
          _
      $region56: #{inception_v1_forward.1} parent=5 // pred_fallthru
        _
    $region6: #{inception_v1_forward.1} parent=1 // loop_footer
      %s20 = sadd.s32 1, %s16
    $region7: #{inception_v1_forward.1} parent=1 // loop_footer_branch
      %15 = sbr.rel target = $region3
    $region8: #{inception_v1_forward.1} parent=1 // loop_exit
      _
    %6731 = vsyncpa [#allocation5], 1
    %s6732 = scalar_lea.sflag [#allocation5], 1
    %6733 = vsyncpa %s6732, 1

</llo_original>
